<compile_context>
chip_gen: v5e
topology: v5e:2x2
jax: 0.10.0
libtpu: 0.0.40
codegen_flags: <defaults>
</compile_context>

<pallas_src>
import functools

import jax
import jax.numpy as jnp
from jax.experimental import pallas as pl
from jax.experimental.pallas import tpu as pltpu


# ----------------------------------------------------------------------------
# Fused encoder kernel (one grid step == one image)
# ----------------------------------------------------------------------------
def _fused_encoder_kernel(x_ref, w0_ref, b0_ref, w1_ref, b1_ref, w2_ref, b2_ref,
                          fcw_ref, fcb_ref, o_ref,
                          pad_in, pad_a, pad_b,
                          *, H, W, Cin, C, PAD):
    HW = H * W

    # Zero the halo rows every step.  Scratch is per-core; with a "parallel"
    # grid a core may never execute step 0, so no pl.when(program_id == 0)
    # one-shot init.  Cost: a handful of vreg stores per image.
    zin = jnp.zeros((PAD, Cin), jnp.float32)
    pad_in[pl.ds(0, PAD), :] = zin
    pad_in[pl.ds(PAD + HW, PAD), :] = zin
    zc = jnp.zeros((PAD, C), jnp.float32)
    for buf in (pad_a, pad_b):
        buf[pl.ds(0, PAD), :] = zc
        buf[pl.ds(PAD + HW, PAD), :] = zc

    # Stage this image's rows into the padded slab (channels on the lane axis).
    pad_in[pl.ds(PAD, HW), :] = x_ref[...]

    # Horizontal-boundary masks, hoisted out of the convs: they depend only on
    # the column index, so compute them once per image and reuse for all three
    # convs.  Vertically out-of-image taps land in the zeroed halo rows, so
    # only the ow = +-1 horizontal wrap needs masking.
    ww = jax.lax.broadcasted_iota(jnp.int32, (HW, 1), 0) % W
    left_ok = ww >= 1             # source column ww-1 is inside the image
    right_ok = ww <= (W - 2)      # source column ww+1 is inside the image

    taps_meta = []
    for oh in (-1, 0, 1):
        for ow in (-1, 0, 1):
            mask = left_ok if ow == -1 else (right_ok if ow == 1 else None)
            taps_meta.append((oh * W + ow, mask))

    def conv3x3_bn(src_ref, w_ref, b_ref):
        """3x3 / stride-1 / pad-1 conv (BN scale folded into w) as ONE GEMM.

        src_ref holds the activation rows at [PAD, PAD + HW); w_ref is
        (9*cin, C) bf16 tap-major; b_ref is the (1, C) folded-BN shift.
        Returns the (HW, C) f32 pre-activation.
        """
        taps = []
        for delta, mask in taps_meta:
            a = src_ref[pl.ds(PAD + delta, HW), :]            # (HW, cin) f32
            if mask is not None:
                a = jnp.where(mask, a, 0.0)
            taps.append(a)
        patch = jnp.concatenate(taps, axis=-1).astype(jnp.bfloat16)  # (HW, 9*cin)
        acc = jnp.dot(patch, w_ref[...], preferred_element_type=jnp.float32)
        return acc + b_ref[...]                               # BN shift

    # --- stem: conv3x3 -> BN -> ReLU ----------------------------------------
    y0 = jnp.maximum(conv3x3_bn(pad_in, w0_ref, b0_ref), 0.0)
    pad_a[pl.ds(PAD, HW), :] = y0

    # --- BasicBlock: conv-BN-ReLU, conv-BN, + identity, ReLU -----------------
    y1 = jnp.maximum(conv3x3_bn(pad_a, w1_ref, b1_ref), 0.0)
    pad_b[pl.ds(PAD, HW), :] = y1

    y2 = conv3x3_bn(pad_b, w2_ref, b2_ref) + pad_a[pl.ds(PAD, HW), :]
    y2 = jnp.maximum(y2, 0.0)                                 # (HW, C)

    # --- global average pool: sublane reduction (XLU), no pooling matmul -----
    feat = jnp.sum(y2, axis=0, keepdims=True) * (1.0 / HW)    # (1, C)

    # --- fc head: nn.Linear(dim_mlp, num_classes), lane-dense padded output --
    logits = jnp.dot(feat.astype(jnp.bfloat16), fcw_ref[...],
                     preferred_element_type=jnp.float32) + fcb_ref[...]
    o_ref[...] = logits.reshape(o_ref.shape).astype(o_ref.dtype)


# ----------------------------------------------------------------------------
# Wrapper: parameter prep (BN folding, bf16 cast, fc padding) + pallas_call
# ----------------------------------------------------------------------------
def _fold_bn(gamma, beta, mean, var, eps=1e-5):
    scale = gamma / jnp.sqrt(var + eps)
    shift = beta - mean * scale
    return scale, shift


def semi_scratch_forward(x_nchw, params):
    """x_nchw: (B, Cin, H, W) float32 -> logits (B, num_classes) float32."""
    B, Cin, H, W = x_nchw.shape
    C = params["w0"].shape[1]
    NC = params["fc_w"].shape[1]
    HW = H * W
    NCP = max(128, -(-NC // 128) * 128)          # lane-dense fc output width
    PAD = max(8, -(-(W + 1) // 8) * 8)           # >= W+1 halo rows, multiple of 8

    # Layout glue only: NCHW -> NHWC -> (B*H*W, Cin), channels on the lane axis.
    x2d = jnp.transpose(x_nchw, (0, 2, 3, 1)).reshape(B * HW, Cin)

    # Fold inference BatchNorm into conv weights (per-out-channel scale) + a
    # shift epilogue; pre-cast GEMM weights to bf16 (f32 accumulation in-kernel).
    def prep_conv(w_flat, bn, cin):
        scale, shift = _fold_bn(*bn)
        w = w_flat.reshape(9 * cin, C) * scale.reshape(1, C)
        return w.astype(jnp.bfloat16), shift.reshape(1, C).astype(jnp.float32)

    w0, b0 = prep_conv(params["w0"], params["bn0"], Cin)
    w1, b1 = prep_conv(params["w1"], params["bn1"], C)
    w2, b2 = prep_conv(params["w2"], params["bn2"], C)

    # fc head padded to a multiple of 128 output columns (sliced back below).
    fcw = jnp.zeros((C, NCP), jnp.float32).at[:, :NC].set(
        params["fc_w"].astype(jnp.float32)).astype(jnp.bfloat16)
    fcb = jnp.zeros((1, NCP), jnp.float32).at[:, :NC].set(
        params["fc_b"].reshape(1, NC).astype(jnp.float32))

    kernel = functools.partial(_fused_encoder_kernel,
                               H=H, W=W, Cin=Cin, C=C, PAD=PAD)

    def fixed(shape):  # full-array (resident) operand, 2-D
        return pl.BlockSpec(shape, lambda b: (0, 0))

    grid_spec = pltpu.PrefetchScalarGridSpec(
        num_scalar_prefetch=0,
        grid=(B,),                                    # one image per step
        in_specs=[
            pl.BlockSpec((HW, Cin), lambda b: (b, 0)),  # this image's rows
            fixed((9 * Cin, C)), fixed((1, C)),
            fixed((9 * C, C)), fixed((1, C)),
            fixed((9 * C, C)), fixed((1, C)),
            fixed((C, NCP)), fixed((1, NCP)),
        ],
        out_specs=pl.BlockSpec((1, 1, NCP), lambda b: (b, 0, 0)),
        scratch_shapes=[
            pltpu.VMEM((PAD + HW + PAD, Cin), jnp.float32),   # padded stem input
            pltpu.VMEM((PAD + HW + PAD, C), jnp.float32),     # padded stem output
            pltpu.VMEM((PAD + HW + PAD, C), jnp.float32),     # padded conv1 output
        ],
    )

    out = pl.pallas_call(
        kernel,
        out_shape=jax.ShapeDtypeStruct((B, 1, NCP), jnp.float32),
        grid_spec=grid_spec,
        compiler_params=pltpu.CompilerParams(
            # batch axis shards across the 2 TensorCores on v7x; neutral on
            # v5e/v6e.  Explicit VMEM budget fits all three generations.
            dimension_semantics=("parallel",),
            vmem_limit_bytes=32 * 1024 * 1024,
        ),
    )(x2d, w0, b0, w1, b1, w2, b2, fcw, fcb)

    return out.reshape(B, NCP)[:, :NC]


# ----------------------------------------------------------------------------
# Parameter init (deterministic small ResNet-style encoder + replaced fc head)
# ----------------------------------------------------------------------------
def init_params(key, cin=4, c=16, num_classes=10):
    ks = jax.random.split(key, 8)

    def conv_w(k, ci, co):
        # HWIO (3,3,ci,co) flattened to (9*ci, co); tap-major row ordering,
        # matching the in-kernel tap concatenation order.
        return (jax.random.normal(k, (3, 3, ci, co), jnp.float32) * 0.1
                ).reshape(9 * ci, co)

    def bn(k, co):
        k1, k2, k3, k4 = jax.random.split(k, 4)
        gamma = 1.0 + 0.1 * jax.random.normal(k1, (co,), jnp.float32)
        beta = 0.1 * jax.random.normal(k2, (co,), jnp.float32)
        mean = 0.1 * jax.random.normal(k3, (co,), jnp.float32)
        var = jnp.abs(1.0 + 0.1 * jax.random.normal(k4, (co,), jnp.float32))
        return (gamma, beta, mean, var)

    return {
        "w0": conv_w(ks[0], cin, c), "bn0": bn(ks[1], c),
        "w1": conv_w(ks[2], c, c),   "bn1": bn(ks[3], c),
        "w2": conv_w(ks[4], c, c),   "bn2": bn(ks[5], c),
        # fc = nn.Linear(dim_mlp=c, num_classes) -- the SemiScratch replacement head
        "fc_w": jax.random.normal(ks[6], (c, num_classes), jnp.float32) * 0.1,
        "fc_b": jax.random.normal(ks[7], (num_classes,), jnp.float32) * 0.1,
    }


if __name__ == "__main__":
    key = jax.random.PRNGKey(0)
    kx, kp = jax.random.split(key)

    B, Cin, H, W = 2, 4, 16, 16
    num_classes = 10
    x = jax.random.normal(kx, (B, Cin, H, W), jnp.float32)   # NCHW like PyTorch
    params = init_params(kp, cin=Cin, c=16, num_classes=num_classes)

    fwd = jax.jit(semi_scratch_forward)
    logits = fwd(x, params)
    logits = jax.block_until_ready(logits)
    assert logits.shape == (B, num_classes)
    assert bool(jnp.all(jnp.isfinite(logits)))
    print("KERNEL_OK")
</pallas_src>

<mosaic_0001>
module attributes {stable_mosaic.version = 11 : i64} {
  func.func @_fused_encoder_kernel(%arg0: i32, %arg1: memref<256x4xf32, #tpu.memory_space<vmem>>, %arg2: memref<36x16xbf16, #tpu.memory_space<vmem>>, %arg3: memref<1x16xf32, #tpu.memory_space<vmem>>, %arg4: memref<144x16xbf16, #tpu.memory_space<vmem>>, %arg5: memref<1x16xf32, #tpu.memory_space<vmem>>, %arg6: memref<144x16xbf16, #tpu.memory_space<vmem>>, %arg7: memref<1x16xf32, #tpu.memory_space<vmem>>, %arg8: memref<16x128xbf16, #tpu.memory_space<vmem>>, %arg9: memref<1x128xf32, #tpu.memory_space<vmem>>, %arg10: memref<1x1x128xf32, #tpu.memory_space<vmem>>, %arg11: memref<304x4xf32, #tpu.memory_space<vmem>>, %arg12: memref<304x16xf32, #tpu.memory_space<vmem>>, %arg13: memref<304x16xf32, #tpu.memory_space<vmem>>) attributes {dimension_semantics = [#tpu.dimension_semantics<parallel>], iteration_bounds = array<i64: 2>, scalar_prefetch = 0 : i64, scratch_operands = 3 : i64, tpu.core_type = #tpu.core_type<tc>, window_params = [{transform_indices = @transform_0, window_bounds = array<i64: 256, 4>}, {pipeline_mode = #tpu.pipeline_mode<synchronous>, transform_indices = @transform_1, window_bounds = array<i64: 36, 16>}, {pipeline_mode = #tpu.pipeline_mode<synchronous>, transform_indices = @transform_2, window_bounds = array<i64: 1, 16>}, {pipeline_mode = #tpu.pipeline_mode<synchronous>, transform_indices = @transform_3, window_bounds = array<i64: 144, 16>}, {pipeline_mode = #tpu.pipeline_mode<synchronous>, transform_indices = @transform_4, window_bounds = array<i64: 1, 16>}, {pipeline_mode = #tpu.pipeline_mode<synchronous>, transform_indices = @transform_5, window_bounds = array<i64: 144, 16>}, {pipeline_mode = #tpu.pipeline_mode<synchronous>, transform_indices = @transform_6, window_bounds = array<i64: 1, 16>}, {pipeline_mode = #tpu.pipeline_mode<synchronous>, transform_indices = @transform_7, window_bounds = array<i64: 16, 128>}, {pipeline_mode = #tpu.pipeline_mode<synchronous>, transform_indices = @transform_8, window_bounds = array<i64: 1, 128>}, {transform_indices = @transform_9, window_bounds = array<i64: 1, 1, 128>}]} {
    %cst = arith.constant 0.000000e+00 : f32
    %0 = vector.broadcast %cst : f32 to vector<24x4xf32>
    %c0 = arith.constant 0 : index
    %c0_0 = arith.constant 0 : index
    %1 = vector.load %arg11[%c0, %c0_0] : memref<304x4xf32, #tpu.memory_space<vmem>>, vector<24x4xf32>
    tpu.vector_store %arg11[%c0, %c0_0], %0 {strides = array<i32>} : memref<304x4xf32, #tpu.memory_space<vmem>>, vector<24x4xf32>,
    %c280 = arith.constant 280 : index
    %c0_1 = arith.constant 0 : index
    %2 = vector.load %arg11[%c280, %c0_1] : memref<304x4xf32, #tpu.memory_space<vmem>>, vector<24x4xf32>
    tpu.vector_store %arg11[%c280, %c0_1], %0 {strides = array<i32>} : memref<304x4xf32, #tpu.memory_space<vmem>>, vector<24x4xf32>,
    %cst_2 = arith.constant 0.000000e+00 : f32
    %3 = vector.broadcast %cst_2 : f32 to vector<24x16xf32>
    %c0_3 = arith.constant 0 : index
    %c0_4 = arith.constant 0 : index
    %4 = vector.load %arg12[%c0_3, %c0_4] : memref<304x16xf32, #tpu.memory_space<vmem>>, vector<24x16xf32>
    tpu.vector_store %arg12[%c0_3, %c0_4], %3 {strides = array<i32>} : memref<304x16xf32, #tpu.memory_space<vmem>>, vector<24x16xf32>,
    %c280_5 = arith.constant 280 : index
    %c0_6 = arith.constant 0 : index
    %5 = vector.load %arg12[%c280_5, %c0_6] : memref<304x16xf32, #tpu.memory_space<vmem>>, vector<24x16xf32>
    tpu.vector_store %arg12[%c280_5, %c0_6], %3 {strides = array<i32>} : memref<304x16xf32, #tpu.memory_space<vmem>>, vector<24x16xf32>,
    %c0_7 = arith.constant 0 : index
    %c0_8 = arith.constant 0 : index
    %6 = vector.load %arg13[%c0_7, %c0_8] : memref<304x16xf32, #tpu.memory_space<vmem>>, vector<24x16xf32>
    tpu.vector_store %arg13[%c0_7, %c0_8], %3 {strides = array<i32>} : memref<304x16xf32, #tpu.memory_space<vmem>>, vector<24x16xf32>,
    %c280_9 = arith.constant 280 : index
    %c0_10 = arith.constant 0 : index
    %7 = vector.load %arg13[%c280_9, %c0_10] : memref<304x16xf32, #tpu.memory_space<vmem>>, vector<24x16xf32>
    tpu.vector_store %arg13[%c280_9, %c0_10], %3 {strides = array<i32>} : memref<304x16xf32, #tpu.memory_space<vmem>>, vector<24x16xf32>,
    %c0_11 = arith.constant 0 : index
    %c0_12 = arith.constant 0 : index
    %8 = vector.load %arg1[%c0_11, %c0_12] : memref<256x4xf32, #tpu.memory_space<vmem>>, vector<256x4xf32>
    %c24 = arith.constant 24 : index
    %c0_13 = arith.constant 0 : index
    %9 = vector.load %arg11[%c24, %c0_13] : memref<304x4xf32, #tpu.memory_space<vmem>>, vector<256x4xf32>
    tpu.vector_store %arg11[%c24, %c0_13], %8 {strides = array<i32>} : memref<304x4xf32, #tpu.memory_space<vmem>>, vector<256x4xf32>,
    %10 = tpu.iota {dimensions = array<i32: 0>} : vector<256x1xi32>
    %c16_i32 = arith.constant 16 : i32
    %c0_i32 = arith.constant 0 : i32
    %11 = arith.cmpi eq, %c16_i32, %c0_i32 : i32
    %c1_i32 = arith.constant 1 : i32
    %12 = arith.select %11, %c1_i32, %c16_i32 : i32
    %13 = vector.broadcast %12 : i32 to vector<256x1xi32>
    %14 = arith.remsi %10, %13 : vector<256x1xi32>
    %c0_i32_14 = arith.constant 0 : i32
    %15 = vector.broadcast %c0_i32_14 : i32 to vector<256x1xi32>
    %16 = arith.cmpi ne, %14, %15 : vector<256x1xi32>
    %c0_i32_15 = arith.constant 0 : i32
    %17 = vector.broadcast %c0_i32_15 : i32 to vector<256x1xi32>
    %18 = arith.cmpi slt, %14, %17 : vector<256x1xi32>
    %c0_i32_16 = arith.constant 0 : i32
    %19 = arith.cmpi slt, %12, %c0_i32_16 : i32
    %20 = vector.broadcast %19 : i1 to vector<256x1xi1>
    %21 = vector.broadcast %20 : vector<256x1xi1> to vector<256x1xi1>
    %22 = arith.xori %18, %21 : vector<256x1xi1>
    %23 = arith.andi %22, %16 : vector<256x1xi1>
    %24 = vector.broadcast %12 : i32 to vector<256x1xi32>
    %25 = arith.addi %14, %24 : vector<256x1xi32>
    %26 = arith.select %23, %25, %14 : vector<256x1xi1>, vector<256x1xi32>
    %c1_i32_17 = arith.constant 1 : i32
    %27 = vector.broadcast %c1_i32_17 : i32 to vector<256x1xi32>
    %28 = arith.cmpi sge, %26, %27 : vector<256x1xi32>
    %c14_i32 = arith.constant 14 : i32
    %29 = vector.broadcast %c14_i32 : i32 to vector<256x1xi32>
    %30 = arith.cmpi sle, %26, %29 : vector<256x1xi32>
    %c7 = arith.constant 7 : index
    %c0_18 = arith.constant 0 : index
    %31 = vector.load %arg11[%c7, %c0_18] : memref<304x4xf32, #tpu.memory_space<vmem>>, vector<256x4xf32>
    %cst_19 = arith.constant 0.000000e+00 : f32
    %32 = vector.shape_cast %28 : vector<256x1xi1> to vector<256x1xi1>
    %33 = vector.broadcast %32 : vector<256x1xi1> to vector<256x4xi1>
    %34 = vector.broadcast %cst_19 : f32 to vector<256x4xf32>
    %35 = arith.select %33, %31, %34 : vector<256x4xi1>, vector<256x4xf32>
    %c8 = arith.constant 8 : index
    %c0_20 = arith.constant 0 : index
    %36 = vector.load %arg11[%c8, %c0_20] : memref<304x4xf32, #tpu.memory_space<vmem>>, vector<256x4xf32>
    %c9 = arith.constant 9 : index
    %c0_21 = arith.constant 0 : index
    %37 = vector.load %arg11[%c9, %c0_21] : memref<304x4xf32, #tpu.memory_space<vmem>>, vector<256x4xf32>
    %cst_22 = arith.constant 0.000000e+00 : f32
    %38 = vector.shape_cast %30 : vector<256x1xi1> to vector<256x1xi1>
    %39 = vector.broadcast %38 : vector<256x1xi1> to vector<256x4xi1>
    %40 = vector.broadcast %cst_22 : f32 to vector<256x4xf32>
    %41 = arith.select %39, %37, %40 : vector<256x4xi1>, vector<256x4xf32>
    %c23 = arith.constant 23 : index
    %c0_23 = arith.constant 0 : index
    %42 = vector.load %arg11[%c23, %c0_23] : memref<304x4xf32, #tpu.memory_space<vmem>>, vector<256x4xf32>
    %cst_24 = arith.constant 0.000000e+00 : f32
    %43 = vector.shape_cast %28 : vector<256x1xi1> to vector<256x1xi1>
    %44 = vector.broadcast %43 : vector<256x1xi1> to vector<256x4xi1>
    %45 = vector.broadcast %cst_24 : f32 to vector<256x4xf32>
    %46 = arith.select %44, %42, %45 : vector<256x4xi1>, vector<256x4xf32>
    %c24_25 = arith.constant 24 : index
    %c0_26 = arith.constant 0 : index
    %47 = vector.load %arg11[%c24_25, %c0_26] : memref<304x4xf32, #tpu.memory_space<vmem>>, vector<256x4xf32>
    %c25 = arith.constant 25 : index
    %c0_27 = arith.constant 0 : index
    %48 = vector.load %arg11[%c25, %c0_27] : memref<304x4xf32, #tpu.memory_space<vmem>>, vector<256x4xf32>
    %cst_28 = arith.constant 0.000000e+00 : f32
    %49 = vector.shape_cast %30 : vector<256x1xi1> to vector<256x1xi1>
    %50 = vector.broadcast %49 : vector<256x1xi1> to vector<256x4xi1>
    %51 = vector.broadcast %cst_28 : f32 to vector<256x4xf32>
    %52 = arith.select %50, %48, %51 : vector<256x4xi1>, vector<256x4xf32>
    %c39 = arith.constant 39 : index
    %c0_29 = arith.constant 0 : index
    %53 = vector.load %arg11[%c39, %c0_29] : memref<304x4xf32, #tpu.memory_space<vmem>>, vector<256x4xf32>
    %cst_30 = arith.constant 0.000000e+00 : f32
    %54 = vector.shape_cast %28 : vector<256x1xi1> to vector<256x1xi1>
    %55 = vector.broadcast %54 : vector<256x1xi1> to vector<256x4xi1>
    %56 = vector.broadcast %cst_30 : f32 to vector<256x4xf32>
    %57 = arith.select %55, %53, %56 : vector<256x4xi1>, vector<256x4xf32>
    %c40 = arith.constant 40 : index
    %c0_31 = arith.constant 0 : index
    %58 = vector.load %arg11[%c40, %c0_31] : memref<304x4xf32, #tpu.memory_space<vmem>>, vector<256x4xf32>
    %c41 = arith.constant 41 : index
    %c0_32 = arith.constant 0 : index
    %59 = vector.load %arg11[%c41, %c0_32] : memref<304x4xf32, #tpu.memory_space<vmem>>, vector<256x4xf32>
    %cst_33 = arith.constant 0.000000e+00 : f32
    %60 = vector.shape_cast %30 : vector<256x1xi1> to vector<256x1xi1>
    %61 = vector.broadcast %60 : vector<256x1xi1> to vector<256x4xi1>
    %62 = vector.broadcast %cst_33 : f32 to vector<256x4xf32>
    %63 = arith.select %61, %59, %62 : vector<256x4xi1>, vector<256x4xf32>
    %64 = tpu.concatenate %35, %36, %41, %46, %47, %52, %57, %58, %63 in 1 : vector<256x4xf32>, vector<256x4xf32>, vector<256x4xf32>, vector<256x4xf32>, vector<256x4xf32>, vector<256x4xf32>, vector<256x4xf32>, vector<256x4xf32>, vector<256x4xf32> -> vector<256x36xf32>
    %65 = arith.truncf %64 : vector<256x36xf32> to vector<256x36xbf16>
    %c0_34 = arith.constant 0 : index
    %c0_35 = arith.constant 0 : index
    %66 = vector.load %arg2[%c0_34, %c0_35] : memref<36x16xbf16, #tpu.memory_space<vmem>>, vector<36x16xbf16>
    %cst_36 = arith.constant dense<0.000000e+00> : vector<256x16xf32>
    %67 = tpu.matmul %65, %66, %cst_36 {dimension_numbers = #tpu.dot_dimension_numbers<[1], [0], [0], [1], [0, 0, 1, 1], [], []>} : vector<256x36xbf16>, vector<36x16xbf16>, vector<256x16xf32> -> vector<256x16xf32>
    %c0_37 = arith.constant 0 : index
    %c0_38 = arith.constant 0 : index
    %68 = vector.load %arg3[%c0_37, %c0_38] : memref<1x16xf32, #tpu.memory_space<vmem>>, vector<1x16xf32>
    %69 = vector.broadcast %68 : vector<1x16xf32> to vector<256x16xf32>
    %70 = arith.addf %67, %69 : vector<256x16xf32>
    %cst_39 = arith.constant 0.000000e+00 : f32
    %71 = vector.broadcast %cst_39 : f32 to vector<256x16xf32>
    %72 = arith.maximumf %70, %71 : vector<256x16xf32>
    %c24_40 = arith.constant 24 : index
    %c0_41 = arith.constant 0 : index
    %73 = vector.load %arg12[%c24_40, %c0_41] : memref<304x16xf32, #tpu.memory_space<vmem>>, vector<256x16xf32>
    tpu.vector_store %arg12[%c24_40, %c0_41], %72 {strides = array<i32>} : memref<304x16xf32, #tpu.memory_space<vmem>>, vector<256x16xf32>,
    %c7_42 = arith.constant 7 : index
    %c0_43 = arith.constant 0 : index
    %74 = vector.load %arg12[%c7_42, %c0_43] : memref<304x16xf32, #tpu.memory_space<vmem>>, vector<256x16xf32>
    %cst_44 = arith.constant 0.000000e+00 : f32
    %75 = vector.shape_cast %28 : vector<256x1xi1> to vector<256x1xi1>
    %76 = vector.broadcast %75 : vector<256x1xi1> to vector<256x16xi1>
    %77 = vector.broadcast %cst_44 : f32 to vector<256x16xf32>
    %78 = arith.select %76, %74, %77 : vector<256x16xi1>, vector<256x16xf32>
    %c8_45 = arith.constant 8 : index
    %c0_46 = arith.constant 0 : index
    %79 = vector.load %arg12[%c8_45, %c0_46] : memref<304x16xf32, #tpu.memory_space<vmem>>, vector<256x16xf32>
    %c9_47 = arith.constant 9 : index
    %c0_48 = arith.constant 0 : index
    %80 = vector.load %arg12[%c9_47, %c0_48] : memref<304x16xf32, #tpu.memory_space<vmem>>, vector<256x16xf32>
    %cst_49 = arith.constant 0.000000e+00 : f32
    %81 = vector.shape_cast %30 : vector<256x1xi1> to vector<256x1xi1>
    %82 = vector.broadcast %81 : vector<256x1xi1> to vector<256x16xi1>
    %83 = vector.broadcast %cst_49 : f32 to vector<256x16xf32>
    %84 = arith.select %82, %80, %83 : vector<256x16xi1>, vector<256x16xf32>
    %c23_50 = arith.constant 23 : index
    %c0_51 = arith.constant 0 : index
    %85 = vector.load %arg12[%c23_50, %c0_51] : memref<304x16xf32, #tpu.memory_space<vmem>>, vector<256x16xf32>
    %cst_52 = arith.constant 0.000000e+00 : f32
    %86 = vector.shape_cast %28 : vector<256x1xi1> to vector<256x1xi1>
    %87 = vector.broadcast %86 : vector<256x1xi1> to vector<256x16xi1>
    %88 = vector.broadcast %cst_52 : f32 to vector<256x16xf32>
    %89 = arith.select %87, %85, %88 : vector<256x16xi1>, vector<256x16xf32>
    %c24_53 = arith.constant 24 : index
    %c0_54 = arith.constant 0 : index
    %90 = vector.load %arg12[%c24_53, %c0_54] : memref<304x16xf32, #tpu.memory_space<vmem>>, vector<256x16xf32>
    %c25_55 = arith.constant 25 : index
    %c0_56 = arith.constant 0 : index
    %91 = vector.load %arg12[%c25_55, %c0_56] : memref<304x16xf32, #tpu.memory_space<vmem>>, vector<256x16xf32>
    %cst_57 = arith.constant 0.000000e+00 : f32
    %92 = vector.shape_cast %30 : vector<256x1xi1> to vector<256x1xi1>
    %93 = vector.broadcast %92 : vector<256x1xi1> to vector<256x16xi1>
    %94 = vector.broadcast %cst_57 : f32 to vector<256x16xf32>
    %95 = arith.select %93, %91, %94 : vector<256x16xi1>, vector<256x16xf32>
    %c39_58 = arith.constant 39 : index
    %c0_59 = arith.constant 0 : index
    %96 = vector.load %arg12[%c39_58, %c0_59] : memref<304x16xf32, #tpu.memory_space<vmem>>, vector<256x16xf32>
    %cst_60 = arith.constant 0.000000e+00 : f32
    %97 = vector.shape_cast %28 : vector<256x1xi1> to vector<256x1xi1>
    %98 = vector.broadcast %97 : vector<256x1xi1> to vector<256x16xi1>
    %99 = vector.broadcast %cst_60 : f32 to vector<256x16xf32>
    %100 = arith.select %98, %96, %99 : vector<256x16xi1>, vector<256x16xf32>
    %c40_61 = arith.constant 40 : index
    %c0_62 = arith.constant 0 : index
    %101 = vector.load %arg12[%c40_61, %c0_62] : memref<304x16xf32, #tpu.memory_space<vmem>>, vector<256x16xf32>
    %c41_63 = arith.constant 41 : index
    %c0_64 = arith.constant 0 : index
    %102 = vector.load %arg12[%c41_63, %c0_64] : memref<304x16xf32, #tpu.memory_space<vmem>>, vector<256x16xf32>
    %cst_65 = arith.constant 0.000000e+00 : f32
    %103 = vector.shape_cast %30 : vector<256x1xi1> to vector<256x1xi1>
    %104 = vector.broadcast %103 : vector<256x1xi1> to vector<256x16xi1>
    %105 = vector.broadcast %cst_65 : f32 to vector<256x16xf32>
    %106 = arith.select %104, %102, %105 : vector<256x16xi1>, vector<256x16xf32>
    %107 = tpu.concatenate %78, %79, %84, %89, %90, %95, %100, %101, %106 in 1 : vector<256x16xf32>, vector<256x16xf32>, vector<256x16xf32>, vector<256x16xf32>, vector<256x16xf32>, vector<256x16xf32>, vector<256x16xf32>, vector<256x16xf32>, vector<256x16xf32> -> vector<256x144xf32>
    %108 = arith.truncf %107 : vector<256x144xf32> to vector<256x144xbf16>
    %c0_66 = arith.constant 0 : index
    %c0_67 = arith.constant 0 : index
    %109 = vector.load %arg4[%c0_66, %c0_67] : memref<144x16xbf16, #tpu.memory_space<vmem>>, vector<144x16xbf16>
    %cst_68 = arith.constant dense<0.000000e+00> : vector<256x16xf32>
    %110 = tpu.matmul %108, %109, %cst_68 {dimension_numbers = #tpu.dot_dimension_numbers<[1], [0], [0], [1], [0, 0, 1, 1], [], []>} : vector<256x144xbf16>, vector<144x16xbf16>, vector<256x16xf32> -> vector<256x16xf32>
    %c0_69 = arith.constant 0 : index
    %c0_70 = arith.constant 0 : index
    %111 = vector.load %arg5[%c0_69, %c0_70] : memref<1x16xf32, #tpu.memory_space<vmem>>, vector<1x16xf32>
    %112 = vector.broadcast %111 : vector<1x16xf32> to vector<256x16xf32>
    %113 = arith.addf %110, %112 : vector<256x16xf32>
    %cst_71 = arith.constant 0.000000e+00 : f32
    %114 = vector.broadcast %cst_71 : f32 to vector<256x16xf32>
    %115 = arith.maximumf %113, %114 : vector<256x16xf32>
    %c24_72 = arith.constant 24 : index
    %c0_73 = arith.constant 0 : index
    %116 = vector.load %arg13[%c24_72, %c0_73] : memref<304x16xf32, #tpu.memory_space<vmem>>, vector<256x16xf32>
    tpu.vector_store %arg13[%c24_72, %c0_73], %115 {strides = array<i32>} : memref<304x16xf32, #tpu.memory_space<vmem>>, vector<256x16xf32>,
    %c7_74 = arith.constant 7 : index
    %c0_75 = arith.constant 0 : index
    %117 = vector.load %arg13[%c7_74, %c0_75] : memref<304x16xf32, #tpu.memory_space<vmem>>, vector<256x16xf32>
    %cst_76 = arith.constant 0.000000e+00 : f32
    %118 = vector.shape_cast %28 : vector<256x1xi1> to vector<256x1xi1>
    %119 = vector.broadcast %118 : vector<256x1xi1> to vector<256x16xi1>
    %120 = vector.broadcast %cst_76 : f32 to vector<256x16xf32>
    %121 = arith.select %119, %117, %120 : vector<256x16xi1>, vector<256x16xf32>
    %c8_77 = arith.constant 8 : index
    %c0_78 = arith.constant 0 : index
    %122 = vector.load %arg13[%c8_77, %c0_78] : memref<304x16xf32, #tpu.memory_space<vmem>>, vector<256x16xf32>
    %c9_79 = arith.constant 9 : index
    %c0_80 = arith.constant 0 : index
    %123 = vector.load %arg13[%c9_79, %c0_80] : memref<304x16xf32, #tpu.memory_space<vmem>>, vector<256x16xf32>
    %cst_81 = arith.constant 0.000000e+00 : f32
    %124 = vector.shape_cast %30 : vector<256x1xi1> to vector<256x1xi1>
    %125 = vector.broadcast %124 : vector<256x1xi1> to vector<256x16xi1>
    %126 = vector.broadcast %cst_81 : f32 to vector<256x16xf32>
    %127 = arith.select %125, %123, %126 : vector<256x16xi1>, vector<256x16xf32>
    %c23_82 = arith.constant 23 : index
    %c0_83 = arith.constant 0 : index
    %128 = vector.load %arg13[%c23_82, %c0_83] : memref<304x16xf32, #tpu.memory_space<vmem>>, vector<256x16xf32>
    %cst_84 = arith.constant 0.000000e+00 : f32
    %129 = vector.shape_cast %28 : vector<256x1xi1> to vector<256x1xi1>
    %130 = vector.broadcast %129 : vector<256x1xi1> to vector<256x16xi1>
    %131 = vector.broadcast %cst_84 : f32 to vector<256x16xf32>
    %132 = arith.select %130, %128, %131 : vector<256x16xi1>, vector<256x16xf32>
    %c24_85 = arith.constant 24 : index
    %c0_86 = arith.constant 0 : index
    %133 = vector.load %arg13[%c24_85, %c0_86] : memref<304x16xf32, #tpu.memory_space<vmem>>, vector<256x16xf32>
    %c25_87 = arith.constant 25 : index
    %c0_88 = arith.constant 0 : index
    %134 = vector.load %arg13[%c25_87, %c0_88] : memref<304x16xf32, #tpu.memory_space<vmem>>, vector<256x16xf32>
    %cst_89 = arith.constant 0.000000e+00 : f32
    %135 = vector.shape_cast %30 : vector<256x1xi1> to vector<256x1xi1>
    %136 = vector.broadcast %135 : vector<256x1xi1> to vector<256x16xi1>
    %137 = vector.broadcast %cst_89 : f32 to vector<256x16xf32>
    %138 = arith.select %136, %134, %137 : vector<256x16xi1>, vector<256x16xf32>
    %c39_90 = arith.constant 39 : index
    %c0_91 = arith.constant 0 : index
    %139 = vector.load %arg13[%c39_90, %c0_91] : memref<304x16xf32, #tpu.memory_space<vmem>>, vector<256x16xf32>
    %cst_92 = arith.constant 0.000000e+00 : f32
    %140 = vector.shape_cast %28 : vector<256x1xi1> to vector<256x1xi1>
    %141 = vector.broadcast %140 : vector<256x1xi1> to vector<256x16xi1>
    %142 = vector.broadcast %cst_92 : f32 to vector<256x16xf32>
    %143 = arith.select %141, %139, %142 : vector<256x16xi1>, vector<256x16xf32>
    %c40_93 = arith.constant 40 : index
    %c0_94 = arith.constant 0 : index
    %144 = vector.load %arg13[%c40_93, %c0_94] : memref<304x16xf32, #tpu.memory_space<vmem>>, vector<256x16xf32>
    %c41_95 = arith.constant 41 : index
    %c0_96 = arith.constant 0 : index
    %145 = vector.load %arg13[%c41_95, %c0_96] : memref<304x16xf32, #tpu.memory_space<vmem>>, vector<256x16xf32>
    %cst_97 = arith.constant 0.000000e+00 : f32
    %146 = vector.shape_cast %30 : vector<256x1xi1> to vector<256x1xi1>
    %147 = vector.broadcast %146 : vector<256x1xi1> to vector<256x16xi1>
    %148 = vector.broadcast %cst_97 : f32 to vector<256x16xf32>
    %149 = arith.select %147, %145, %148 : vector<256x16xi1>, vector<256x16xf32>
    %150 = tpu.concatenate %121, %122, %127, %132, %133, %138, %143, %144, %149 in 1 : vector<256x16xf32>, vector<256x16xf32>, vector<256x16xf32>, vector<256x16xf32>, vector<256x16xf32>, vector<256x16xf32>, vector<256x16xf32>, vector<256x16xf32>, vector<256x16xf32> -> vector<256x144xf32>
    %151 = arith.truncf %150 : vector<256x144xf32> to vector<256x144xbf16>
    %c0_98 = arith.constant 0 : index
    %c0_99 = arith.constant 0 : index
    %152 = vector.load %arg6[%c0_98, %c0_99] : memref<144x16xbf16, #tpu.memory_space<vmem>>, vector<144x16xbf16>
    %cst_100 = arith.constant dense<0.000000e+00> : vector<256x16xf32>
    %153 = tpu.matmul %151, %152, %cst_100 {dimension_numbers = #tpu.dot_dimension_numbers<[1], [0], [0], [1], [0, 0, 1, 1], [], []>} : vector<256x144xbf16>, vector<144x16xbf16>, vector<256x16xf32> -> vector<256x16xf32>
    %c0_101 = arith.constant 0 : index
    %c0_102 = arith.constant 0 : index
    %154 = vector.load %arg7[%c0_101, %c0_102] : memref<1x16xf32, #tpu.memory_space<vmem>>, vector<1x16xf32>
    %155 = vector.broadcast %154 : vector<1x16xf32> to vector<256x16xf32>
    %156 = arith.addf %153, %155 : vector<256x16xf32>
    %c24_103 = arith.constant 24 : index
    %c0_104 = arith.constant 0 : index
    %157 = vector.load %arg12[%c24_103, %c0_104] : memref<304x16xf32, #tpu.memory_space<vmem>>, vector<256x16xf32>
    %158 = arith.addf %156, %157 : vector<256x16xf32>
    %cst_105 = arith.constant 0.000000e+00 : f32
    %159 = vector.broadcast %cst_105 : f32 to vector<256x16xf32>
    %160 = arith.maximumf %158, %159 : vector<256x16xf32>
    %cst_106 = arith.constant dense<0.000000e+00> : vector<16xf32>
    %161 = vector.multi_reduction <add>, %160, %cst_106 [0] : vector<256x16xf32> to vector<16xf32>
    %162 = vector.shape_cast %161 : vector<16xf32> to vector<1x16xf32>
    %cst_107 = arith.constant 3.906250e-03 : f32
    %163 = vector.broadcast %cst_107 : f32 to vector<1x16xf32>
    %164 = arith.mulf %162, %163 : vector<1x16xf32>
    %165 = arith.truncf %164 : vector<1x16xf32> to vector<1x16xbf16>
    %c0_108 = arith.constant 0 : index
    %c0_109 = arith.constant 0 : index
    %166 = vector.load %arg8[%c0_108, %c0_109] : memref<16x128xbf16, #tpu.memory_space<vmem>>, vector<16x128xbf16>
    %cst_110 = arith.constant dense<0.000000e+00> : vector<1x128xf32>
    %167 = tpu.matmul %165, %166, %cst_110 {dimension_numbers = #tpu.dot_dimension_numbers<[1], [0], [0], [1], [0, 0, 1, 1], [], []>} : vector<1x16xbf16>, vector<16x128xbf16>, vector<1x128xf32> -> vector<1x128xf32>
    %c0_111 = arith.constant 0 : index
    %c0_112 = arith.constant 0 : index
    %168 = vector.load %arg9[%c0_111, %c0_112] : memref<1x128xf32, #tpu.memory_space<vmem>>, vector<1x128xf32>
    %169 = arith.addf %167, %168 : vector<1x128xf32>
    %170 = vector.shape_cast %169 : vector<1x128xf32> to vector<1x1x128xf32>
    %c0_113 = arith.constant 0 : index
    %c0_114 = arith.constant 0 : index
    %c0_115 = arith.constant 0 : index
    %171 = vector.load %arg10[%c0_113, %c0_114, %c0_115] : memref<1x1x128xf32, #tpu.memory_space<vmem>>, vector<1x1x128xf32>
    tpu.vector_store %arg10[%c0_113, %c0_114, %c0_115], %170 {strides = array<i32>} : memref<1x1x128xf32, #tpu.memory_space<vmem>>, vector<1x1x128xf32>,
    return
  }
  func.func @transform_0(%arg0: i32) -> (i32, i32) {
    %c0_i32 = arith.constant 0 : i32
    %c0_i32_0 = arith.constant 0 : i32
    return %arg0, %c0_i32 : i32, i32
  }
  func.func @transform_1(%arg0: i32) -> (i32, i32) {
    %c0_i32 = arith.constant 0 : i32
    %c0_i32_0 = arith.constant 0 : i32
    %c0_i32_1 = arith.constant 0 : i32
    return %c0_i32, %c0_i32_0 : i32, i32
  }
  func.func @transform_2(%arg0: i32) -> (i32, i32) {
    %c0_i32 = arith.constant 0 : i32
    %c0_i32_0 = arith.constant 0 : i32
    %c0_i32_1 = arith.constant 0 : i32
    return %c0_i32, %c0_i32_0 : i32, i32
  }
  func.func @transform_3(%arg0: i32) -> (i32, i32) {
    %c0_i32 = arith.constant 0 : i32
    %c0_i32_0 = arith.constant 0 : i32
    %c0_i32_1 = arith.constant 0 : i32
    return %c0_i32, %c0_i32_0 : i32, i32
  }
  func.func @transform_4(%arg0: i32) -> (i32, i32) {
    %c0_i32 = arith.constant 0 : i32
    %c0_i32_0 = arith.constant 0 : i32
    %c0_i32_1 = arith.constant 0 : i32
    return %c0_i32, %c0_i32_0 : i32, i32
  }
  func.func @transform_5(%arg0: i32) -> (i32, i32) {
    %c0_i32 = arith.constant 0 : i32
    %c0_i32_0 = arith.constant 0 : i32
    %c0_i32_1 = arith.constant 0 : i32
    return %c0_i32, %c0_i32_0 : i32, i32
  }
  func.func @transform_6(%arg0: i32) -> (i32, i32) {
    %c0_i32 = arith.constant 0 : i32
    %c0_i32_0 = arith.constant 0 : i32
    %c0_i32_1 = arith.constant 0 : i32
    return %c0_i32, %c0_i32_0 : i32, i32
  }
  func.func @transform_7(%arg0: i32) -> (i32, i32) {
    %c0_i32 = arith.constant 0 : i32
    %c0_i32_0 = arith.constant 0 : i32
    %c0_i32_1 = arith.constant 0 : i32
    return %c0_i32, %c0_i32_0 : i32, i32
  }
  func.func @transform_8(%arg0: i32) -> (i32, i32) {
    %c0_i32 = arith.constant 0 : i32
    %c0_i32_0 = arith.constant 0 : i32
    %c0_i32_1 = arith.constant 0 : i32
    return %c0_i32, %c0_i32_0 : i32, i32
  }
  func.func @transform_9(%arg0: i32) -> (i32, i32, i32) {
    %c0_i32 = arith.constant 0 : i32
    %c0_i32_0 = arith.constant 0 : i32
    %c0_i32_1 = arith.constant 0 : i32
    return %arg0, %c0_i32, %c0_i32_0 : i32, i32, i32
  }
}

</mosaic_0001>

<llo_original>
// kernel: semi_scratch_forward.1
$region0: #{semi_scratch_forward.1}
  #allocation0 [shape = 'u32[]', space=smem, size = 0x4, offset = 0x4, fixed_abs, tag = 'smem constant byte address 0x4 - core index']
  #allocation1 [shape = 'u32[72,128]{1,0:T(1,128)}', space=vmem, size = 0x9000, scoped, tag = 'internal scratch']
  #allocation2 [shape = 'f32[304,4]{1,0:T(8,128)}', space=vmem, size = 0x26000, scoped, tag = 'scratch operand']
  #allocation3 [shape = 'f32[304,16]{1,0:T(8,128)}', space=vmem, size = 0x26000, scoped, tag = 'scratch operand']
  #allocation4 [shape = 'f32[304,16]{1,0:T(8,128)}', space=vmem, size = 0x26000, scoped, tag = 'scratch operand']
  %s0 = inlined_call_operand.vmem [shape: f32[512,4], index: 0, kind: input, shape index: {}]
  %s1 = inlined_call_operand.vmem [shape: bf16[36,16], index: 1, kind: input, shape index: {}]
  %s2 = inlined_call_operand.vmem [shape: f32[1,16], index: 2, kind: input, shape index: {}]
  %s3 = inlined_call_operand.vmem [shape: bf16[144,16], index: 3, kind: input, shape index: {}]
  %s4 = inlined_call_operand.vmem [shape: f32[1,16], index: 4, kind: input, shape index: {}]
  %s5 = inlined_call_operand.vmem [shape: bf16[144,16], index: 5, kind: input, shape index: {}]
  %s6 = inlined_call_operand.vmem [shape: f32[1,16], index: 6, kind: input, shape index: {}]
  %s7 = inlined_call_operand.vmem [shape: bf16[16,128], index: 7, kind: input, shape index: {}]
  %s8 = inlined_call_operand.vmem [shape: f32[1,128], index: 8, kind: input, shape index: {}]
  %s9 = inlined_call_operand.hbm [shape: f32[2,1,128], index: 9, kind: output, shape index: {}]
  %s10 = sld [smem:[#allocation0]]
  $region69: #{semi_scratch_forward.1} parent=0
    _
  %s12 = ssub.s32 1, %s10
  %s13 = scalar_select 0, %s12, %s10
  $region1: #{semi_scratch_forward.1} parent=0
    #allocation5 [shape = 'u8[1024]{0}', space=vmem, size = 0x400, scoped, tag = 'output window, operand 0']
    #allocation6 [shape = 's32[2]{0}', space=sflag, size = 0x8, scoped, tag = 'scoped memory for semi_scratch_forward.1']
    %14 = vsyncpa [#allocation6], 0
    %s15 = scalar_lea.sflag [#allocation6], 1
    %16 = vsyncpa %s15, 0
    loop: start=0, step=1, limit=4
    $region2: #{semi_scratch_forward.1} parent=1 // loop_pre_header
      _
    $region3: #{semi_scratch_forward.1} parent=1 // loop_header
      %s18 = sphi 0, %s22
      %p19 = scmp.ge.s32.totalorder %s18, 4
      %s28 = sphi 0, %s30
      %s31 = sphi 0, %s28
      %s32 = sphi 0, %s31
      %s48 = sphi 0, %s32
      %s52 = sphi 0, %s52
      %s54 = sphi 0, %s52
      %s55 = sphi 0, %s54
      %s69 = sphi 0, %s55
      %s73 = sphi 0, %s73
      %s75 = sphi 0, %s73
      %s76 = sphi 0, %s75
      %s90 = sphi 0, %s76
      %s94 = sphi 0, %s94
      %s96 = sphi 0, %s94
      %s97 = sphi 0, %s96
      %s111 = sphi 0, %s97
      %s115 = sphi 0, %s115
      %s117 = sphi 0, %s115
      %s118 = sphi 0, %s117
      %s132 = sphi 0, %s118
      %s136 = sphi 0, %s136
      %s138 = sphi 0, %s136
      %s139 = sphi 0, %s138
      %s153 = sphi 0, %s139
      %s157 = sphi 0, %s157
      %s159 = sphi 0, %s157
      %s160 = sphi 0, %s159
      %s174 = sphi 0, %s160
      %s178 = sphi 0, %s178
      %s180 = sphi 0, %s178
      %s181 = sphi 0, %s180
      %s195 = sphi 0, %s181
      %s199 = sphi 0, %s199
      %s201 = sphi 0, %s199
      %s202 = sphi 0, %s201
      %s216 = sphi 0, %s202
      %s222 = sphi 0, %s224
      %s225 = sphi 0, %s222
      %s226 = sphi 0, %s225
      %s242 = sphi 0, %s226
    $region4: #{semi_scratch_forward.1} parent=1 // loop_header_branch
      %21 = sbr.rel (%p19) target = $region8
    $region5: #{semi_scratch_forward.1} parent=1 // loop_body
      %s23 = ssub.s32 %s18, 1
      %s24 = ssub.s32 %s18, 2
      %s25 = sadd.s32 %s18, 1
      %s26 = ssub.s32 %s18, %s25
      %p27 = scmp.eq.s32.totalorder %s26, 0
      %s29 = sadd.s32 %s28, 1
      %s30 = scalar_select %p27, %s28, %s29
      %p33 = pneg %p27
      %p34 = scmp.eq.s32.totalorder %s18, 1
      %p35 = por %p33, %p34
      %p36 = scmp.ne.s32.totalorder %s28, %s31
      %p37 = scmp.eq.s32.totalorder %s18, 0
      %p38 = por %p36, %p37
      %p39 = scmp.ne.s32.totalorder %s28, %s31
      %p40 = scmp.eq.s32.totalorder %s23, 1
      %p41 = por %p39, %p40
      %p42 = scmp.ne.s32.totalorder %s31, %s32
      %p43 = scmp.eq.s32.totalorder %s23, 0
      %p44 = por %p42, %p43
      %p45 = scmp.ne.s32.totalorder %s31, %s32
      %p46 = scmp.eq.s32.totalorder %s24, 1
      %p47 = por %p45, %p46
      %p49 = scmp.ne.s32.totalorder %s32, %s48
      %p50 = scmp.eq.s32.totalorder %s24, 0
      %p51 = por %p49, %p50
      %s53 = sadd.s32 %s52, 1
      %p56 = scmp.eq.s32.totalorder %s18, 1
      %p57 = scmp.ne.s32.totalorder %s52, %s54
      %p58 = scmp.eq.s32.totalorder %s18, 0
      %p59 = por %p57, %p58
      %p60 = scmp.ne.s32.totalorder %s52, %s54
      %p61 = scmp.eq.s32.totalorder %s23, 1
      %p62 = por %p60, %p61
      %p63 = scmp.ne.s32.totalorder %s54, %s55
      %p64 = scmp.eq.s32.totalorder %s23, 0
      %p65 = por %p63, %p64
      %p66 = scmp.ne.s32.totalorder %s54, %s55
      %p67 = scmp.eq.s32.totalorder %s24, 1
      %p68 = por %p66, %p67
      %p70 = scmp.ne.s32.totalorder %s55, %s69
      %p71 = scmp.eq.s32.totalorder %s24, 0
      %p72 = por %p70, %p71
      %s74 = sadd.s32 %s73, 1
      %p77 = scmp.eq.s32.totalorder %s18, 1
      %p78 = scmp.ne.s32.totalorder %s73, %s75
      %p79 = scmp.eq.s32.totalorder %s18, 0
      %p80 = por %p78, %p79
      %p81 = scmp.ne.s32.totalorder %s73, %s75
      %p82 = scmp.eq.s32.totalorder %s23, 1
      %p83 = por %p81, %p82
      %p84 = scmp.ne.s32.totalorder %s75, %s76
      %p85 = scmp.eq.s32.totalorder %s23, 0
      %p86 = por %p84, %p85
      %p87 = scmp.ne.s32.totalorder %s75, %s76
      %p88 = scmp.eq.s32.totalorder %s24, 1
      %p89 = por %p87, %p88
      %p91 = scmp.ne.s32.totalorder %s76, %s90
      %p92 = scmp.eq.s32.totalorder %s24, 0
      %p93 = por %p91, %p92
      %s95 = sadd.s32 %s94, 1
      %p98 = scmp.eq.s32.totalorder %s18, 1
      %p99 = scmp.ne.s32.totalorder %s94, %s96
      %p100 = scmp.eq.s32.totalorder %s18, 0
      %p101 = por %p99, %p100
      %p102 = scmp.ne.s32.totalorder %s94, %s96
      %p103 = scmp.eq.s32.totalorder %s23, 1
      %p104 = por %p102, %p103
      %p105 = scmp.ne.s32.totalorder %s96, %s97
      %p106 = scmp.eq.s32.totalorder %s23, 0
      %p107 = por %p105, %p106
      %p108 = scmp.ne.s32.totalorder %s96, %s97
      %p109 = scmp.eq.s32.totalorder %s24, 1
      %p110 = por %p108, %p109
      %p112 = scmp.ne.s32.totalorder %s97, %s111
      %p113 = scmp.eq.s32.totalorder %s24, 0
      %p114 = por %p112, %p113
      %s116 = sadd.s32 %s115, 1
      %p119 = scmp.eq.s32.totalorder %s18, 1
      %p120 = scmp.ne.s32.totalorder %s115, %s117
      %p121 = scmp.eq.s32.totalorder %s18, 0
      %p122 = por %p120, %p121
      %p123 = scmp.ne.s32.totalorder %s115, %s117
      %p124 = scmp.eq.s32.totalorder %s23, 1
      %p125 = por %p123, %p124
      %p126 = scmp.ne.s32.totalorder %s117, %s118
      %p127 = scmp.eq.s32.totalorder %s23, 0
      %p128 = por %p126, %p127
      %p129 = scmp.ne.s32.totalorder %s117, %s118
      %p130 = scmp.eq.s32.totalorder %s24, 1
      %p131 = por %p129, %p130
      %p133 = scmp.ne.s32.totalorder %s118, %s132
      %p134 = scmp.eq.s32.totalorder %s24, 0
      %p135 = por %p133, %p134
      %s137 = sadd.s32 %s136, 1
      %p140 = scmp.eq.s32.totalorder %s18, 1
      %p141 = scmp.ne.s32.totalorder %s136, %s138
      %p142 = scmp.eq.s32.totalorder %s18, 0
      %p143 = por %p141, %p142
      %p144 = scmp.ne.s32.totalorder %s136, %s138
      %p145 = scmp.eq.s32.totalorder %s23, 1
      %p146 = por %p144, %p145
      %p147 = scmp.ne.s32.totalorder %s138, %s139
      %p148 = scmp.eq.s32.totalorder %s23, 0
      %p149 = por %p147, %p148
      %p150 = scmp.ne.s32.totalorder %s138, %s139
      %p151 = scmp.eq.s32.totalorder %s24, 1
      %p152 = por %p150, %p151
      %p154 = scmp.ne.s32.totalorder %s139, %s153
      %p155 = scmp.eq.s32.totalorder %s24, 0
      %p156 = por %p154, %p155
      %s158 = sadd.s32 %s157, 1
      %p161 = scmp.eq.s32.totalorder %s18, 1
      %p162 = scmp.ne.s32.totalorder %s157, %s159
      %p163 = scmp.eq.s32.totalorder %s18, 0
      %p164 = por %p162, %p163
      %p165 = scmp.ne.s32.totalorder %s157, %s159
      %p166 = scmp.eq.s32.totalorder %s23, 1
      %p167 = por %p165, %p166
      %p168 = scmp.ne.s32.totalorder %s159, %s160
      %p169 = scmp.eq.s32.totalorder %s23, 0
      %p170 = por %p168, %p169
      %p171 = scmp.ne.s32.totalorder %s159, %s160
      %p172 = scmp.eq.s32.totalorder %s24, 1
      %p173 = por %p171, %p172
      %p175 = scmp.ne.s32.totalorder %s160, %s174
      %p176 = scmp.eq.s32.totalorder %s24, 0
      %p177 = por %p175, %p176
      %s179 = sadd.s32 %s178, 1
      %p182 = scmp.eq.s32.totalorder %s18, 1
      %p183 = scmp.ne.s32.totalorder %s178, %s180
      %p184 = scmp.eq.s32.totalorder %s18, 0
      %p185 = por %p183, %p184
      %p186 = scmp.ne.s32.totalorder %s178, %s180
      %p187 = scmp.eq.s32.totalorder %s23, 1
      %p188 = por %p186, %p187
      %p189 = scmp.ne.s32.totalorder %s180, %s181
      %p190 = scmp.eq.s32.totalorder %s23, 0
      %p191 = por %p189, %p190
      %p192 = scmp.ne.s32.totalorder %s180, %s181
      %p193 = scmp.eq.s32.totalorder %s24, 1
      %p194 = por %p192, %p193
      %p196 = scmp.ne.s32.totalorder %s181, %s195
      %p197 = scmp.eq.s32.totalorder %s24, 0
      %p198 = por %p196, %p197
      %s200 = sadd.s32 %s199, 1
      %p203 = scmp.eq.s32.totalorder %s18, 1
      %p204 = scmp.ne.s32.totalorder %s199, %s201
      %p205 = scmp.eq.s32.totalorder %s18, 0
      %p206 = por %p204, %p205
      %p207 = scmp.ne.s32.totalorder %s199, %s201
      %p208 = scmp.eq.s32.totalorder %s23, 1
      %p209 = por %p207, %p208
      %p210 = scmp.ne.s32.totalorder %s201, %s202
      %p211 = scmp.eq.s32.totalorder %s23, 0
      %p212 = por %p210, %p211
      %p213 = scmp.ne.s32.totalorder %s201, %s202
      %p214 = scmp.eq.s32.totalorder %s24, 1
      %p215 = por %p213, %p214
      %p217 = scmp.ne.s32.totalorder %s202, %s216
      %p218 = scmp.eq.s32.totalorder %s24, 0
      %p219 = por %p217, %p218
      %s220 = ssub.s32 %s18, %s25
      %p221 = scmp.eq.s32.totalorder %s220, 0
      %s223 = sadd.s32 %s222, 1
      %s224 = scalar_select %p221, %s222, %s223
      %p227 = pneg %p221
      %p228 = scmp.eq.s32.totalorder %s18, 1
      %p229 = por %p227, %p228
      %p230 = scmp.ne.s32.totalorder %s222, %s225
      %p231 = scmp.eq.s32.totalorder %s18, 0
      %p232 = por %p230, %p231
      %p233 = scmp.ne.s32.totalorder %s222, %s225
      %p234 = scmp.eq.s32.totalorder %s23, 1
      %p235 = por %p233, %p234
      %p236 = scmp.ne.s32.totalorder %s225, %s226
      %p237 = scmp.eq.s32.totalorder %s23, 0
      %p238 = por %p236, %p237
      %p239 = scmp.ne.s32.totalorder %s225, %s226
      %p240 = scmp.eq.s32.totalorder %s24, 1
      %p241 = por %p239, %p240
      %p243 = scmp.ne.s32.totalorder %s226, %s242
      %p244 = scmp.eq.s32.totalorder %s24, 0
      %p245 = por %p243, %p244
      %p246 = scmp.le.s32.totalorder 1, %s18
      %p247 = scmp.lt.s32.totalorder %s18, 3
      %p248 = pnand %p246, %p247
      %p249 = pneg %p248
      // Predicated region
      $region9: #{semi_scratch_forward.1} parent=5 // pred_check
        _
      $region10: #{semi_scratch_forward.1} parent=5 // pred_check_branch
        %251 = sbr.rel (%p248) target = $region12
      $region11: #{semi_scratch_forward.1} parent=5 // pred_region
        %s252 = ssub.s32 %s18, 1
        // Predicated region
        $region13: #{semi_scratch_forward.1} parent=11 // pred_check
          %p253 = pneg %p65
        $region14: #{semi_scratch_forward.1} parent=11 // pred_check_branch
          %255 = sbr.rel (%p253) target = $region16
        $region15: #{semi_scratch_forward.1} parent=11 // pred_region
          _
        $region16: #{semi_scratch_forward.1} parent=11 // pred_fallthru
          _
        // Predicated region
        $region17: #{semi_scratch_forward.1} parent=11 // pred_check
          %p256 = pneg %p86
        $region18: #{semi_scratch_forward.1} parent=11 // pred_check_branch
          %258 = sbr.rel (%p256) target = $region20
        $region19: #{semi_scratch_forward.1} parent=11 // pred_region
          _
        $region20: #{semi_scratch_forward.1} parent=11 // pred_fallthru
          _
        // Predicated region
        $region21: #{semi_scratch_forward.1} parent=11 // pred_check
          %p259 = pneg %p107
        $region22: #{semi_scratch_forward.1} parent=11 // pred_check_branch
          %261 = sbr.rel (%p259) target = $region24
        $region23: #{semi_scratch_forward.1} parent=11 // pred_region
          _
        $region24: #{semi_scratch_forward.1} parent=11 // pred_fallthru
          _
        // Predicated region
        $region25: #{semi_scratch_forward.1} parent=11 // pred_check
          %p262 = pneg %p128
        $region26: #{semi_scratch_forward.1} parent=11 // pred_check_branch
          %264 = sbr.rel (%p262) target = $region28
        $region27: #{semi_scratch_forward.1} parent=11 // pred_region
          _
        $region28: #{semi_scratch_forward.1} parent=11 // pred_fallthru
          _
        // Predicated region
        $region29: #{semi_scratch_forward.1} parent=11 // pred_check
          %p265 = pneg %p149
        $region30: #{semi_scratch_forward.1} parent=11 // pred_check_branch
          %267 = sbr.rel (%p265) target = $region32
        $region31: #{semi_scratch_forward.1} parent=11 // pred_region
          _
        $region32: #{semi_scratch_forward.1} parent=11 // pred_fallthru
          _
        // Predicated region
        $region33: #{semi_scratch_forward.1} parent=11 // pred_check
          %p268 = pneg %p170
        $region34: #{semi_scratch_forward.1} parent=11 // pred_check_branch
          %270 = sbr.rel (%p268) target = $region36
        $region35: #{semi_scratch_forward.1} parent=11 // pred_region
          _
        $region36: #{semi_scratch_forward.1} parent=11 // pred_fallthru
          _
        // Predicated region
        $region37: #{semi_scratch_forward.1} parent=11 // pred_check
          %p271 = pneg %p191
        $region38: #{semi_scratch_forward.1} parent=11 // pred_check_branch
          %273 = sbr.rel (%p271) target = $region40
        $region39: #{semi_scratch_forward.1} parent=11 // pred_region
          _
        $region40: #{semi_scratch_forward.1} parent=11 // pred_fallthru
          _
        // Predicated region
        $region41: #{semi_scratch_forward.1} parent=11 // pred_check
          %p274 = pneg %p212
        $region42: #{semi_scratch_forward.1} parent=11 // pred_check_branch
          %276 = sbr.rel (%p274) target = $region44
        $region43: #{semi_scratch_forward.1} parent=11 // pred_region
          _
        $region44: #{semi_scratch_forward.1} parent=11 // pred_fallthru
          _
      $region12: #{semi_scratch_forward.1} parent=5 // pred_fallthru
        _
      %p277 = scmp.lt.s32.totalorder %s18, 2
      // Predicated region
      $region45: #{semi_scratch_forward.1} parent=5 // pred_check
        %p278 = pneg %p277
      $region46: #{semi_scratch_forward.1} parent=5 // pred_check_branch
        %280 = sbr.rel (%p278) target = $region48
      $region47: #{semi_scratch_forward.1} parent=5 // pred_region
        // Predicated region
        $region49: #{semi_scratch_forward.1} parent=47 // pred_check
          %p281 = pneg %p38
        $region50: #{semi_scratch_forward.1} parent=47 // pred_check_branch
          %283 = sbr.rel (%p281) target = $region52
        $region51: #{semi_scratch_forward.1} parent=47 // pred_region
          %s284 = smul.u32 32, %s18
          %p285 = scmp.lt.s32.totalorder %s284, 63
          %s286 = scalar_select %p285, %s284, 63
          %s287 = smul.addr %s286, 8
          %s288 = scalar_lea.vmem %s0, %s287
          %s289 = smul.u32 32, %s18
        $region52: #{semi_scratch_forward.1} parent=47 // pred_fallthru
          _
      $region48: #{semi_scratch_forward.1} parent=5 // pred_fallthru
        _
      %p290 = scmp.le.s32.totalorder 1, %s18
      %p291 = scmp.lt.s32.totalorder %s18, 3
      %p292 = pnand %p290, %p291
      %p293 = pneg %p292
      // Predicated region
      $region53: #{semi_scratch_forward.1} parent=5 // pred_check
        _
      $region54: #{semi_scratch_forward.1} parent=5 // pred_check_branch
        %295 = sbr.rel (%p292) target = $region56
      $region55: #{semi_scratch_forward.1} parent=5 // pred_region
        %s296 = ssub.s32 %s18, 1
        %s297 = smul.u32 32, %s23
        %p298 = scmp.lt.s32.totalorder %s297, 63
        %s299 = scalar_select %p298, %s297, 63
        %s300 = smul.addr %s299, 8
        %s301 = scalar_lea.vmem %s0, %s300
        %p302 = pneg %p44
        %p303 = pneg %p41
        %p304 = pneg %p65
        %p305 = pneg %p62
        %p306 = pneg %p86
        %p307 = pneg %p83
        %p308 = pneg %p107
        %p309 = pneg %p104
        %p310 = pneg %p128
        %p311 = pneg %p125
        %p312 = pneg %p149
        %p313 = pneg %p146
        %p314 = pneg %p170
        %p315 = pneg %p167
        %p316 = pneg %p191
        %p317 = pneg %p188
        %p318 = pneg %p212
        %p319 = pneg %p209
        %p320 = pneg %p238
        %p321 = pneg %p235
        %s322 = sand.u32 %s225, 1
        %s323 = scalar_lea.sflag [#allocation6], %s322
        %s324 = sand.u32 %s225, 1
        %s325 = scalar_lea.vmem [#allocation5], %s324
        %s326 = smul.u32 32, %s23
        %p327 = scmp.lt.s32.totalorder %s326, 63
        %s328 = scalar_select %p327, %s326, 63
        %s329 = smul.addr %s328, 8
        %s330 = scalar_lea.vmem %s0, %s329
        %s331 = smul.u32 32, %s23
        %vm333 = vcmask 31744
        %334 = vst.msk [vmem:[#allocation2] sm:$0xff] %vm333, 0.0
        %335 = vst.msk [vmem:[#allocation2 + $0x8] sm:$0xff] %vm333, 0.0
        %336 = vst.msk [vmem:[#allocation2 + $0x10] sm:$0xff] %vm333, 0.0
        %337 = vst.msk [vmem:[#allocation2 + $0x118] sm:$0xff] %vm333, 0.0
        %338 = vst.msk [vmem:[#allocation2 + $0x120] sm:$0xff] %vm333, 0.0
        %339 = vst.msk [vmem:[#allocation2 + $0x128] sm:$0xff] %vm333, 0.0
        %vm340 = vcmask 130048
        %341 = vst.msk [vmem:[#allocation3] sm:$0xff] %vm340, 0.0
        %342 = vst.msk [vmem:[#allocation3 + $0x8] sm:$0xff] %vm340, 0.0
        %343 = vst.msk [vmem:[#allocation3 + $0x10] sm:$0xff] %vm340, 0.0
        %344 = vst.msk [vmem:[#allocation3 + $0x118] sm:$0xff] %vm340, 0.0
        %345 = vst.msk [vmem:[#allocation3 + $0x120] sm:$0xff] %vm340, 0.0
        %346 = vst.msk [vmem:[#allocation3 + $0x128] sm:$0xff] %vm340, 0.0
        %347 = vst.msk [vmem:[#allocation4] sm:$0xff] %vm340, 0.0
        %348 = vst.msk [vmem:[#allocation4 + $0x8] sm:$0xff] %vm340, 0.0
        %349 = vst.msk [vmem:[#allocation4 + $0x10] sm:$0xff] %vm340, 0.0
        %350 = vst.msk [vmem:[#allocation4 + $0x118] sm:$0xff] %vm340, 0.0
        %351 = vst.msk [vmem:[#allocation4 + $0x120] sm:$0xff] %vm340, 0.0
        %352 = vst.msk [vmem:[#allocation4 + $0x128] sm:$0xff] %vm340, 0.0
        %v353 = vld [vmem:[%s330] sm:$0xff]
        %v354 = vld [vmem:[%s330 + $0x8] sm:$0xff]
        %v355 = vld [vmem:[%s330 + $0x10] sm:$0xff]
        %v356 = vld [vmem:[%s330 + $0x18] sm:$0xff]
        %v357 = vld [vmem:[%s330 + $0x20] sm:$0xff]
        %v358 = vld [vmem:[%s330 + $0x28] sm:$0xff]
        %v359 = vld [vmem:[%s330 + $0x30] sm:$0xff]
        %v360 = vld [vmem:[%s330 + $0x38] sm:$0xff]
        %v361 = vld [vmem:[%s330 + $0x40] sm:$0xff]
        %v362 = vld [vmem:[%s330 + $0x48] sm:$0xff]
        %v363 = vld [vmem:[%s330 + $0x50] sm:$0xff]
        %v364 = vld [vmem:[%s330 + $0x58] sm:$0xff]
        %v365 = vld [vmem:[%s330 + $0x60] sm:$0xff]
        %v366 = vld [vmem:[%s330 + $0x68] sm:$0xff]
        %v367 = vld [vmem:[%s330 + $0x70] sm:$0xff]
        %v368 = vld [vmem:[%s330 + $0x78] sm:$0xff]
        %v369 = vld [vmem:[%s330 + $0x80] sm:$0xff]
        %v370 = vld [vmem:[%s330 + $0x88] sm:$0xff]
        %v371 = vld [vmem:[%s330 + $0x90] sm:$0xff]
        %v372 = vld [vmem:[%s330 + $0x98] sm:$0xff]
        %v373 = vld [vmem:[%s330 + $0xa0] sm:$0xff]
        %v374 = vld [vmem:[%s330 + $0xa8] sm:$0xff]
        %v375 = vld [vmem:[%s330 + $0xb0] sm:$0xff]
        %v376 = vld [vmem:[%s330 + $0xb8] sm:$0xff]
        %v377 = vld [vmem:[%s330 + $0xc0] sm:$0xff]
        %v378 = vld [vmem:[%s330 + $0xc8] sm:$0xff]
        %v379 = vld [vmem:[%s330 + $0xd0] sm:$0xff]
        %v380 = vld [vmem:[%s330 + $0xd8] sm:$0xff]
        %v381 = vld [vmem:[%s330 + $0xe0] sm:$0xff]
        %v382 = vld [vmem:[%s330 + $0xe8] sm:$0xff]
        %v383 = vld [vmem:[%s330 + $0xf0] sm:$0xff]
        %v384 = vld [vmem:[%s330 + $0xf8] sm:$0xff]
        %385 = vst.msk [vmem:[#allocation2 + $0x18] sm:$0xff] %vm333, %v353
        %386 = vst.msk [vmem:[#allocation2 + $0x20] sm:$0xff] %vm333, %v354
        %387 = vst.msk [vmem:[#allocation2 + $0x28] sm:$0xff] %vm333, %v355
        %388 = vst.msk [vmem:[#allocation2 + $0x30] sm:$0xff] %vm333, %v356
        %389 = vst.msk [vmem:[#allocation2 + $0x38] sm:$0xff] %vm333, %v357
        %390 = vst.msk [vmem:[#allocation2 + $0x40] sm:$0xff] %vm333, %v358
        %391 = vst.msk [vmem:[#allocation2 + $0x48] sm:$0xff] %vm333, %v359
        %392 = vst.msk [vmem:[#allocation2 + $0x50] sm:$0xff] %vm333, %v360
        %393 = vst.msk [vmem:[#allocation2 + $0x58] sm:$0xff] %vm333, %v361
        %394 = vst.msk [vmem:[#allocation2 + $0x60] sm:$0xff] %vm333, %v362
        %395 = vst.msk [vmem:[#allocation2 + $0x68] sm:$0xff] %vm333, %v363
        %396 = vst.msk [vmem:[#allocation2 + $0x70] sm:$0xff] %vm333, %v364
        %397 = vst.msk [vmem:[#allocation2 + $0x78] sm:$0xff] %vm333, %v365
        %398 = vst.msk [vmem:[#allocation2 + $0x80] sm:$0xff] %vm333, %v366
        %399 = vst.msk [vmem:[#allocation2 + $0x88] sm:$0xff] %vm333, %v367
        %400 = vst.msk [vmem:[#allocation2 + $0x90] sm:$0xff] %vm333, %v368
        %401 = vst.msk [vmem:[#allocation2 + $0x98] sm:$0xff] %vm333, %v369
        %402 = vst.msk [vmem:[#allocation2 + $0xa0] sm:$0xff] %vm333, %v370
        %403 = vst.msk [vmem:[#allocation2 + $0xa8] sm:$0xff] %vm333, %v371
        %404 = vst.msk [vmem:[#allocation2 + $0xb0] sm:$0xff] %vm333, %v372
        %405 = vst.msk [vmem:[#allocation2 + $0xb8] sm:$0xff] %vm333, %v373
        %406 = vst.msk [vmem:[#allocation2 + $0xc0] sm:$0xff] %vm333, %v374
        %407 = vst.msk [vmem:[#allocation2 + $0xc8] sm:$0xff] %vm333, %v375
        %408 = vst.msk [vmem:[#allocation2 + $0xd0] sm:$0xff] %vm333, %v376
        %409 = vst.msk [vmem:[#allocation2 + $0xd8] sm:$0xff] %vm333, %v377
        %410 = vst.msk [vmem:[#allocation2 + $0xe0] sm:$0xff] %vm333, %v378
        %411 = vst.msk [vmem:[#allocation2 + $0xe8] sm:$0xff] %vm333, %v379
        %412 = vst.msk [vmem:[#allocation2 + $0xf0] sm:$0xff] %vm333, %v380
        %413 = vst.msk [vmem:[#allocation2 + $0xf8] sm:$0xff] %vm333, %v381
        %414 = vst.msk [vmem:[#allocation2 + $0x100] sm:$0xff] %vm333, %v382
        %415 = vst.msk [vmem:[#allocation2 + $0x108] sm:$0xff] %vm333, %v383
        %416 = vst.msk [vmem:[#allocation2 + $0x110] sm:$0xff] %vm333, %v384
        %v417 = vlaneseq
        %v418 = vshrl.u32 %v417, 7
        %v419 = vadd.s32 %v418, 8
        %v420 = vadd.s32 %v418, 16
        %v421 = vadd.s32 %v418, 24
        %v422 = vadd.s32 %v418, 32
        %v423 = vadd.s32 %v418, 40
        %v424 = vadd.s32 %v418, 48
        %v425 = vadd.s32 %v418, 56
        %v426 = vadd.s32 %v418, 64
        %v427 = vadd.s32 %v418, 72
        %v428 = vadd.s32 %v418, 80
        %v429 = vadd.s32 %v418, 88
        %v430 = vadd.s32 %v418, 96
        %v431 = vadd.s32 %v418, 104
        %v432 = vadd.s32 %v418, 112
        %v433 = vadd.s32 %v418, 120
        %v434 = vadd.s32 %v418, 128
        %v435 = vadd.s32 %v418, 136
        %v436 = vadd.s32 %v418, 144
        %v437 = vadd.s32 %v418, 152
        %v438 = vadd.s32 %v418, 160
        %v439 = vadd.s32 %v418, 168
        %v440 = vadd.s32 %v418, 176
        %v441 = vadd.s32 %v418, 184
        %v442 = vadd.s32 %v418, 192
        %v443 = vadd.s32 %v418, 200
        %v444 = vadd.s32 %v418, 208
        %v445 = vadd.s32 %v418, 216
        %v446 = vadd.s32 %v418, 224
        %v447 = vadd.s32 %v418, 232
        %v448 = vadd.s32 %v418, 240
        %v449 = vadd.s32 %v418, 248
        %vm450 = vcmp.lt.s32.totalorder %v418, 0
        %v451 = vsub.s32 0, %v418
        %v452 = vsel %vm450, %v451, %v418
        %v453 = vshrl.u32 %v452, 4
        %v454 = vand.u32 %v452, 15
        %v455 = vsub.s32 0, %v454
        %v456 = vsel %vm450, %v455, %v454
        %vm457 = vcmp.lt.s32.totalorder %v419, 0
        %v458 = vsub.s32 0, %v419
        %v459 = vsel %vm457, %v458, %v419
        %v460 = vshrl.u32 %v459, 4
        %v461 = vand.u32 %v459, 15
        %v462 = vsub.s32 0, %v461
        %v463 = vsel %vm457, %v462, %v461
        %vm464 = vcmp.lt.s32.totalorder %v420, 0
        %v465 = vsub.s32 0, %v420
        %v466 = vsel %vm464, %v465, %v420
        %v467 = vshrl.u32 %v466, 4
        %v468 = vand.u32 %v466, 15
        %v469 = vsub.s32 0, %v468
        %v470 = vsel %vm464, %v469, %v468
        %vm471 = vcmp.lt.s32.totalorder %v421, 0
        %v472 = vsub.s32 0, %v421
        %v473 = vsel %vm471, %v472, %v421
        %v474 = vshrl.u32 %v473, 4
        %v475 = vand.u32 %v473, 15
        %v476 = vsub.s32 0, %v475
        %v477 = vsel %vm471, %v476, %v475
        %vm478 = vcmp.lt.s32.totalorder %v422, 0
        %v479 = vsub.s32 0, %v422
        %v480 = vsel %vm478, %v479, %v422
        %v481 = vshrl.u32 %v480, 4
        %v482 = vand.u32 %v480, 15
        %v483 = vsub.s32 0, %v482
        %v484 = vsel %vm478, %v483, %v482
        %vm485 = vcmp.lt.s32.totalorder %v423, 0
        %v486 = vsub.s32 0, %v423
        %v487 = vsel %vm485, %v486, %v423
        %v488 = vshrl.u32 %v487, 4
        %v489 = vand.u32 %v487, 15
        %v490 = vsub.s32 0, %v489
        %v491 = vsel %vm485, %v490, %v489
        %vm492 = vcmp.lt.s32.totalorder %v424, 0
        %v493 = vsub.s32 0, %v424
        %v494 = vsel %vm492, %v493, %v424
        %v495 = vshrl.u32 %v494, 4
        %v496 = vand.u32 %v494, 15
        %v497 = vsub.s32 0, %v496
        %v498 = vsel %vm492, %v497, %v496
        %vm499 = vcmp.lt.s32.totalorder %v425, 0
        %v500 = vsub.s32 0, %v425
        %v501 = vsel %vm499, %v500, %v425
        %v502 = vshrl.u32 %v501, 4
        %v503 = vand.u32 %v501, 15
        %v504 = vsub.s32 0, %v503
        %v505 = vsel %vm499, %v504, %v503
        %vm506 = vcmp.lt.s32.totalorder %v426, 0
        %v507 = vsub.s32 0, %v426
        %v508 = vsel %vm506, %v507, %v426
        %v509 = vshrl.u32 %v508, 4
        %v510 = vand.u32 %v508, 15
        %v511 = vsub.s32 0, %v510
        %v512 = vsel %vm506, %v511, %v510
        %vm513 = vcmp.lt.s32.totalorder %v427, 0
        %v514 = vsub.s32 0, %v427
        %v515 = vsel %vm513, %v514, %v427
        %v516 = vshrl.u32 %v515, 4
        %v517 = vand.u32 %v515, 15
        %v518 = vsub.s32 0, %v517
        %v519 = vsel %vm513, %v518, %v517
        %vm520 = vcmp.lt.s32.totalorder %v428, 0
        %v521 = vsub.s32 0, %v428
        %v522 = vsel %vm520, %v521, %v428
        %v523 = vshrl.u32 %v522, 4
        %v524 = vand.u32 %v522, 15
        %v525 = vsub.s32 0, %v524
        %v526 = vsel %vm520, %v525, %v524
        %vm527 = vcmp.lt.s32.totalorder %v429, 0
        %v528 = vsub.s32 0, %v429
        %v529 = vsel %vm527, %v528, %v429
        %v530 = vshrl.u32 %v529, 4
        %v531 = vand.u32 %v529, 15
        %v532 = vsub.s32 0, %v531
        %v533 = vsel %vm527, %v532, %v531
        %vm534 = vcmp.lt.s32.totalorder %v430, 0
        %v535 = vsub.s32 0, %v430
        %v536 = vsel %vm534, %v535, %v430
        %v537 = vshrl.u32 %v536, 4
        %v538 = vand.u32 %v536, 15
        %v539 = vsub.s32 0, %v538
        %v540 = vsel %vm534, %v539, %v538
        %vm541 = vcmp.lt.s32.totalorder %v431, 0
        %v542 = vsub.s32 0, %v431
        %v543 = vsel %vm541, %v542, %v431
        %v544 = vshrl.u32 %v543, 4
        %v545 = vand.u32 %v543, 15
        %v546 = vsub.s32 0, %v545
        %v547 = vsel %vm541, %v546, %v545
        %vm548 = vcmp.lt.s32.totalorder %v432, 0
        %v549 = vsub.s32 0, %v432
        %v550 = vsel %vm548, %v549, %v432
        %v551 = vshrl.u32 %v550, 4
        %v552 = vand.u32 %v550, 15
        %v553 = vsub.s32 0, %v552
        %v554 = vsel %vm548, %v553, %v552
        %vm555 = vcmp.lt.s32.totalorder %v433, 0
        %v556 = vsub.s32 0, %v433
        %v557 = vsel %vm555, %v556, %v433
        %v558 = vshrl.u32 %v557, 4
        %v559 = vand.u32 %v557, 15
        %v560 = vsub.s32 0, %v559
        %v561 = vsel %vm555, %v560, %v559
        %vm562 = vcmp.lt.s32.totalorder %v434, 0
        %v563 = vsub.s32 0, %v434
        %v564 = vsel %vm562, %v563, %v434
        %v565 = vshrl.u32 %v564, 4
        %v566 = vand.u32 %v564, 15
        %v567 = vsub.s32 0, %v566
        %v568 = vsel %vm562, %v567, %v566
        %vm569 = vcmp.lt.s32.totalorder %v435, 0
        %v570 = vsub.s32 0, %v435
        %v571 = vsel %vm569, %v570, %v435
        %v572 = vshrl.u32 %v571, 4
        %v573 = vand.u32 %v571, 15
        %v574 = vsub.s32 0, %v573
        %v575 = vsel %vm569, %v574, %v573
        %vm576 = vcmp.lt.s32.totalorder %v436, 0
        %v577 = vsub.s32 0, %v436
        %v578 = vsel %vm576, %v577, %v436
        %v579 = vshrl.u32 %v578, 4
        %v580 = vand.u32 %v578, 15
        %v581 = vsub.s32 0, %v580
        %v582 = vsel %vm576, %v581, %v580
        %vm583 = vcmp.lt.s32.totalorder %v437, 0
        %v584 = vsub.s32 0, %v437
        %v585 = vsel %vm583, %v584, %v437
        %v586 = vshrl.u32 %v585, 4
        %v587 = vand.u32 %v585, 15
        %v588 = vsub.s32 0, %v587
        %v589 = vsel %vm583, %v588, %v587
        %vm590 = vcmp.lt.s32.totalorder %v438, 0
        %v591 = vsub.s32 0, %v438
        %v592 = vsel %vm590, %v591, %v438
        %v593 = vshrl.u32 %v592, 4
        %v594 = vand.u32 %v592, 15
        %v595 = vsub.s32 0, %v594
        %v596 = vsel %vm590, %v595, %v594
        %vm597 = vcmp.lt.s32.totalorder %v439, 0
        %v598 = vsub.s32 0, %v439
        %v599 = vsel %vm597, %v598, %v439
        %v600 = vshrl.u32 %v599, 4
        %v601 = vand.u32 %v599, 15
        %v602 = vsub.s32 0, %v601
        %v603 = vsel %vm597, %v602, %v601
        %vm604 = vcmp.lt.s32.totalorder %v440, 0
        %v605 = vsub.s32 0, %v440
        %v606 = vsel %vm604, %v605, %v440
        %v607 = vshrl.u32 %v606, 4
        %v608 = vand.u32 %v606, 15
        %v609 = vsub.s32 0, %v608
        %v610 = vsel %vm604, %v609, %v608
        %vm611 = vcmp.lt.s32.totalorder %v441, 0
        %v612 = vsub.s32 0, %v441
        %v613 = vsel %vm611, %v612, %v441
        %v614 = vshrl.u32 %v613, 4
        %v615 = vand.u32 %v613, 15
        %v616 = vsub.s32 0, %v615
        %v617 = vsel %vm611, %v616, %v615
        %vm618 = vcmp.lt.s32.totalorder %v442, 0
        %v619 = vsub.s32 0, %v442
        %v620 = vsel %vm618, %v619, %v442
        %v621 = vshrl.u32 %v620, 4
        %v622 = vand.u32 %v620, 15
        %v623 = vsub.s32 0, %v622
        %v624 = vsel %vm618, %v623, %v622
        %vm625 = vcmp.lt.s32.totalorder %v443, 0
        %v626 = vsub.s32 0, %v443
        %v627 = vsel %vm625, %v626, %v443
        %v628 = vshrl.u32 %v627, 4
        %v629 = vand.u32 %v627, 15
        %v630 = vsub.s32 0, %v629
        %v631 = vsel %vm625, %v630, %v629
        %vm632 = vcmp.lt.s32.totalorder %v444, 0
        %v633 = vsub.s32 0, %v444
        %v634 = vsel %vm632, %v633, %v444
        %v635 = vshrl.u32 %v634, 4
        %v636 = vand.u32 %v634, 15
        %v637 = vsub.s32 0, %v636
        %v638 = vsel %vm632, %v637, %v636
        %vm639 = vcmp.lt.s32.totalorder %v445, 0
        %v640 = vsub.s32 0, %v445
        %v641 = vsel %vm639, %v640, %v445
        %v642 = vshrl.u32 %v641, 4
        %v643 = vand.u32 %v641, 15
        %v644 = vsub.s32 0, %v643
        %v645 = vsel %vm639, %v644, %v643
        %vm646 = vcmp.lt.s32.totalorder %v446, 0
        %v647 = vsub.s32 0, %v446
        %v648 = vsel %vm646, %v647, %v446
        %v649 = vshrl.u32 %v648, 4
        %v650 = vand.u32 %v648, 15
        %v651 = vsub.s32 0, %v650
        %v652 = vsel %vm646, %v651, %v650
        %vm653 = vcmp.lt.s32.totalorder %v447, 0
        %v654 = vsub.s32 0, %v447
        %v655 = vsel %vm653, %v654, %v447
        %v656 = vshrl.u32 %v655, 4
        %v657 = vand.u32 %v655, 15
        %v658 = vsub.s32 0, %v657
        %v659 = vsel %vm653, %v658, %v657
        %vm660 = vcmp.lt.s32.totalorder %v448, 0
        %v661 = vsub.s32 0, %v448
        %v662 = vsel %vm660, %v661, %v448
        %v663 = vshrl.u32 %v662, 4
        %v664 = vand.u32 %v662, 15
        %v665 = vsub.s32 0, %v664
        %v666 = vsel %vm660, %v665, %v664
        %vm667 = vcmp.lt.s32.totalorder %v449, 0
        %v668 = vsub.s32 0, %v449
        %v669 = vsel %vm667, %v668, %v449
        %v670 = vshrl.u32 %v669, 4
        %v671 = vand.u32 %v669, 15
        %v672 = vsub.s32 0, %v671
        %v673 = vsel %vm667, %v672, %v671
        %vm674 = vcmp.ne.s32.totalorder %v456, 0
        %vm675 = vcmp.ne.s32.totalorder %v463, 0
        %vm676 = vcmp.ne.s32.totalorder %v470, 0
        %vm677 = vcmp.ne.s32.totalorder %v477, 0
        %vm678 = vcmp.ne.s32.totalorder %v484, 0
        %vm679 = vcmp.ne.s32.totalorder %v491, 0
        %vm680 = vcmp.ne.s32.totalorder %v498, 0
        %vm681 = vcmp.ne.s32.totalorder %v505, 0
        %vm682 = vcmp.ne.s32.totalorder %v512, 0
        %vm683 = vcmp.ne.s32.totalorder %v519, 0
        %vm684 = vcmp.ne.s32.totalorder %v526, 0
        %vm685 = vcmp.ne.s32.totalorder %v533, 0
        %vm686 = vcmp.ne.s32.totalorder %v540, 0
        %vm687 = vcmp.ne.s32.totalorder %v547, 0
        %vm688 = vcmp.ne.s32.totalorder %v554, 0
        %vm689 = vcmp.ne.s32.totalorder %v561, 0
        %vm690 = vcmp.ne.s32.totalorder %v568, 0
        %vm691 = vcmp.ne.s32.totalorder %v575, 0
        %vm692 = vcmp.ne.s32.totalorder %v582, 0
        %vm693 = vcmp.ne.s32.totalorder %v589, 0
        %vm694 = vcmp.ne.s32.totalorder %v596, 0
        %vm695 = vcmp.ne.s32.totalorder %v603, 0
        %vm696 = vcmp.ne.s32.totalorder %v610, 0
        %vm697 = vcmp.ne.s32.totalorder %v617, 0
        %vm698 = vcmp.ne.s32.totalorder %v624, 0
        %vm699 = vcmp.ne.s32.totalorder %v631, 0
        %vm700 = vcmp.ne.s32.totalorder %v638, 0
        %vm701 = vcmp.ne.s32.totalorder %v645, 0
        %vm702 = vcmp.ne.s32.totalorder %v652, 0
        %vm703 = vcmp.ne.s32.totalorder %v659, 0
        %vm704 = vcmp.ne.s32.totalorder %v666, 0
        %vm705 = vcmp.ne.s32.totalorder %v673, 0
        %vm706 = vcmp.lt.s32.totalorder %v456, 0
        %vm707 = vcmp.lt.s32.totalorder %v463, 0
        %vm708 = vcmp.lt.s32.totalorder %v470, 0
        %vm709 = vcmp.lt.s32.totalorder %v477, 0
        %vm710 = vcmp.lt.s32.totalorder %v484, 0
        %vm711 = vcmp.lt.s32.totalorder %v491, 0
        %vm712 = vcmp.lt.s32.totalorder %v498, 0
        %vm713 = vcmp.lt.s32.totalorder %v505, 0
        %vm714 = vcmp.lt.s32.totalorder %v512, 0
        %vm715 = vcmp.lt.s32.totalorder %v519, 0
        %vm716 = vcmp.lt.s32.totalorder %v526, 0
        %vm717 = vcmp.lt.s32.totalorder %v533, 0
        %vm718 = vcmp.lt.s32.totalorder %v540, 0
        %vm719 = vcmp.lt.s32.totalorder %v547, 0
        %vm720 = vcmp.lt.s32.totalorder %v554, 0
        %vm721 = vcmp.lt.s32.totalorder %v561, 0
        %vm722 = vcmp.lt.s32.totalorder %v568, 0
        %vm723 = vcmp.lt.s32.totalorder %v575, 0
        %vm724 = vcmp.lt.s32.totalorder %v582, 0
        %vm725 = vcmp.lt.s32.totalorder %v589, 0
        %vm726 = vcmp.lt.s32.totalorder %v596, 0
        %vm727 = vcmp.lt.s32.totalorder %v603, 0
        %vm728 = vcmp.lt.s32.totalorder %v610, 0
        %vm729 = vcmp.lt.s32.totalorder %v617, 0
        %vm730 = vcmp.lt.s32.totalorder %v624, 0
        %vm731 = vcmp.lt.s32.totalorder %v631, 0
        %vm732 = vcmp.lt.s32.totalorder %v638, 0
        %vm733 = vcmp.lt.s32.totalorder %v645, 0
        %vm734 = vcmp.lt.s32.totalorder %v652, 0
        %vm735 = vcmp.lt.s32.totalorder %v659, 0
        %vm736 = vcmp.lt.s32.totalorder %v666, 0
        %vm737 = vcmp.lt.s32.totalorder %v673, 0
        %vm738 = vmand %vm706, %vm674
        %vm739 = vmand %vm707, %vm675
        %vm740 = vmand %vm708, %vm676
        %vm741 = vmand %vm709, %vm677
        %vm742 = vmand %vm710, %vm678
        %vm743 = vmand %vm711, %vm679
        %vm744 = vmand %vm712, %vm680
        %vm745 = vmand %vm713, %vm681
        %vm746 = vmand %vm714, %vm682
        %vm747 = vmand %vm715, %vm683
        %vm748 = vmand %vm716, %vm684
        %vm749 = vmand %vm717, %vm685
        %vm750 = vmand %vm718, %vm686
        %vm751 = vmand %vm719, %vm687
        %vm752 = vmand %vm720, %vm688
        %vm753 = vmand %vm721, %vm689
        %vm754 = vmand %vm722, %vm690
        %vm755 = vmand %vm723, %vm691
        %vm756 = vmand %vm724, %vm692
        %vm757 = vmand %vm725, %vm693
        %vm758 = vmand %vm726, %vm694
        %vm759 = vmand %vm727, %vm695
        %vm760 = vmand %vm728, %vm696
        %vm761 = vmand %vm729, %vm697
        %vm762 = vmand %vm730, %vm698
        %vm763 = vmand %vm731, %vm699
        %vm764 = vmand %vm732, %vm700
        %vm765 = vmand %vm733, %vm701
        %vm766 = vmand %vm734, %vm702
        %vm767 = vmand %vm735, %vm703
        %vm768 = vmand %vm736, %vm704
        %vm769 = vmand %vm737, %vm705
        %v770 = vadd.s32 %v456, 16
        %v771 = vadd.s32 %v463, 16
        %v772 = vadd.s32 %v470, 16
        %v773 = vadd.s32 %v477, 16
        %v774 = vadd.s32 %v484, 16
        %v775 = vadd.s32 %v491, 16
        %v776 = vadd.s32 %v498, 16
        %v777 = vadd.s32 %v505, 16
        %v778 = vadd.s32 %v512, 16
        %v779 = vadd.s32 %v519, 16
        %v780 = vadd.s32 %v526, 16
        %v781 = vadd.s32 %v533, 16
        %v782 = vadd.s32 %v540, 16
        %v783 = vadd.s32 %v547, 16
        %v784 = vadd.s32 %v554, 16
        %v785 = vadd.s32 %v561, 16
        %v786 = vadd.s32 %v568, 16
        %v787 = vadd.s32 %v575, 16
        %v788 = vadd.s32 %v582, 16
        %v789 = vadd.s32 %v589, 16
        %v790 = vadd.s32 %v596, 16
        %v791 = vadd.s32 %v603, 16
        %v792 = vadd.s32 %v610, 16
        %v793 = vadd.s32 %v617, 16
        %v794 = vadd.s32 %v624, 16
        %v795 = vadd.s32 %v631, 16
        %v796 = vadd.s32 %v638, 16
        %v797 = vadd.s32 %v645, 16
        %v798 = vadd.s32 %v652, 16
        %v799 = vadd.s32 %v659, 16
        %v800 = vadd.s32 %v666, 16
        %v801 = vadd.s32 %v673, 16
        %v802 = vsel %vm738, %v770, %v456
        %v803 = vsel %vm739, %v771, %v463
        %v804 = vsel %vm740, %v772, %v470
        %v805 = vsel %vm741, %v773, %v477
        %v806 = vsel %vm742, %v774, %v484
        %v807 = vsel %vm743, %v775, %v491
        %v808 = vsel %vm744, %v776, %v498
        %v809 = vsel %vm745, %v777, %v505
        %v810 = vsel %vm746, %v778, %v512
        %v811 = vsel %vm747, %v779, %v519
        %v812 = vsel %vm748, %v780, %v526
        %v813 = vsel %vm749, %v781, %v533
        %v814 = vsel %vm750, %v782, %v540
        %v815 = vsel %vm751, %v783, %v547
        %v816 = vsel %vm752, %v784, %v554
        %v817 = vsel %vm753, %v785, %v561
        %v818 = vsel %vm754, %v786, %v568
        %v819 = vsel %vm755, %v787, %v575
        %v820 = vsel %vm756, %v788, %v582
        %v821 = vsel %vm757, %v789, %v589
        %v822 = vsel %vm758, %v790, %v596
        %v823 = vsel %vm759, %v791, %v603
        %v824 = vsel %vm760, %v792, %v610
        %v825 = vsel %vm761, %v793, %v617
        %v826 = vsel %vm762, %v794, %v624
        %v827 = vsel %vm763, %v795, %v631
        %v828 = vsel %vm764, %v796, %v638
        %v829 = vsel %vm765, %v797, %v645
        %v830 = vsel %vm766, %v798, %v652
        %v831 = vsel %vm767, %v799, %v659
        %v832 = vsel %vm768, %v800, %v666
        %v833 = vsel %vm769, %v801, %v673
        %vm834 = vcmp.ge.s32.totalorder %v802, 1
        %vm835 = vcmp.ge.s32.totalorder %v803, 1
        %vm836 = vcmp.ge.s32.totalorder %v804, 1
        %vm837 = vcmp.ge.s32.totalorder %v805, 1
        %vm838 = vcmp.ge.s32.totalorder %v806, 1
        %vm839 = vcmp.ge.s32.totalorder %v807, 1
        %vm840 = vcmp.ge.s32.totalorder %v808, 1
        %vm841 = vcmp.ge.s32.totalorder %v809, 1
        %vm842 = vcmp.ge.s32.totalorder %v810, 1
        %vm843 = vcmp.ge.s32.totalorder %v811, 1
        %vm844 = vcmp.ge.s32.totalorder %v812, 1
        %vm845 = vcmp.ge.s32.totalorder %v813, 1
        %vm846 = vcmp.ge.s32.totalorder %v814, 1
        %vm847 = vcmp.ge.s32.totalorder %v815, 1
        %vm848 = vcmp.ge.s32.totalorder %v816, 1
        %vm849 = vcmp.ge.s32.totalorder %v817, 1
        %vm850 = vcmp.ge.s32.totalorder %v818, 1
        %vm851 = vcmp.ge.s32.totalorder %v819, 1
        %vm852 = vcmp.ge.s32.totalorder %v820, 1
        %vm853 = vcmp.ge.s32.totalorder %v821, 1
        %vm854 = vcmp.ge.s32.totalorder %v822, 1
        %vm855 = vcmp.ge.s32.totalorder %v823, 1
        %vm856 = vcmp.ge.s32.totalorder %v824, 1
        %vm857 = vcmp.ge.s32.totalorder %v825, 1
        %vm858 = vcmp.ge.s32.totalorder %v826, 1
        %vm859 = vcmp.ge.s32.totalorder %v827, 1
        %vm860 = vcmp.ge.s32.totalorder %v828, 1
        %vm861 = vcmp.ge.s32.totalorder %v829, 1
        %vm862 = vcmp.ge.s32.totalorder %v830, 1
        %vm863 = vcmp.ge.s32.totalorder %v831, 1
        %vm864 = vcmp.ge.s32.totalorder %v832, 1
        %vm865 = vcmp.ge.s32.totalorder %v833, 1
        %vm866 = vcmp.le.s32.totalorder %v802, 14
        %vm867 = vcmp.le.s32.totalorder %v803, 14
        %vm868 = vcmp.le.s32.totalorder %v804, 14
        %vm869 = vcmp.le.s32.totalorder %v805, 14
        %vm870 = vcmp.le.s32.totalorder %v806, 14
        %vm871 = vcmp.le.s32.totalorder %v807, 14
        %vm872 = vcmp.le.s32.totalorder %v808, 14
        %vm873 = vcmp.le.s32.totalorder %v809, 14
        %vm874 = vcmp.le.s32.totalorder %v810, 14
        %vm875 = vcmp.le.s32.totalorder %v811, 14
        %vm876 = vcmp.le.s32.totalorder %v812, 14
        %vm877 = vcmp.le.s32.totalorder %v813, 14
        %vm878 = vcmp.le.s32.totalorder %v814, 14
        %vm879 = vcmp.le.s32.totalorder %v815, 14
        %vm880 = vcmp.le.s32.totalorder %v816, 14
        %vm881 = vcmp.le.s32.totalorder %v817, 14
        %vm882 = vcmp.le.s32.totalorder %v818, 14
        %vm883 = vcmp.le.s32.totalorder %v819, 14
        %vm884 = vcmp.le.s32.totalorder %v820, 14
        %vm885 = vcmp.le.s32.totalorder %v821, 14
        %vm886 = vcmp.le.s32.totalorder %v822, 14
        %vm887 = vcmp.le.s32.totalorder %v823, 14
        %vm888 = vcmp.le.s32.totalorder %v824, 14
        %vm889 = vcmp.le.s32.totalorder %v825, 14
        %vm890 = vcmp.le.s32.totalorder %v826, 14
        %vm891 = vcmp.le.s32.totalorder %v827, 14
        %vm892 = vcmp.le.s32.totalorder %v828, 14
        %vm893 = vcmp.le.s32.totalorder %v829, 14
        %vm894 = vcmp.le.s32.totalorder %v830, 14
        %vm895 = vcmp.le.s32.totalorder %v831, 14
        %vm896 = vcmp.le.s32.totalorder %v832, 14
        %vm897 = vcmp.le.s32.totalorder %v833, 14
        %v898 = vld [vmem:[#allocation2 + $0x7] sm:$0xff]
        %v899 = vld [vmem:[#allocation2 + $0xf] sm:$0xff]
        %v900 = vld [vmem:[#allocation2 + $0x17] sm:$0xff]
        %v901 = vld [vmem:[#allocation2 + $0x1f] sm:$0xff]
        %v902 = vld [vmem:[#allocation2 + $0x27] sm:$0xff]
        %v903 = vld [vmem:[#allocation2 + $0x2f] sm:$0xff]
        %v904 = vld [vmem:[#allocation2 + $0x37] sm:$0xff]
        %v905 = vld [vmem:[#allocation2 + $0x3f] sm:$0xff]
        %v906 = vld [vmem:[#allocation2 + $0x47] sm:$0xff]
        %v907 = vld [vmem:[#allocation2 + $0x4f] sm:$0xff]
        %v908 = vld [vmem:[#allocation2 + $0x57] sm:$0xff]
        %v909 = vld [vmem:[#allocation2 + $0x5f] sm:$0xff]
        %v910 = vld [vmem:[#allocation2 + $0x67] sm:$0xff]
        %v911 = vld [vmem:[#allocation2 + $0x6f] sm:$0xff]
        %v912 = vld [vmem:[#allocation2 + $0x77] sm:$0xff]
        %v913 = vld [vmem:[#allocation2 + $0x7f] sm:$0xff]
        %v914 = vld [vmem:[#allocation2 + $0x87] sm:$0xff]
        %v915 = vld [vmem:[#allocation2 + $0x8f] sm:$0xff]
        %v916 = vld [vmem:[#allocation2 + $0x97] sm:$0xff]
        %v917 = vld [vmem:[#allocation2 + $0x9f] sm:$0xff]
        %v918 = vld [vmem:[#allocation2 + $0xa7] sm:$0xff]
        %v919 = vld [vmem:[#allocation2 + $0xaf] sm:$0xff]
        %v920 = vld [vmem:[#allocation2 + $0xb7] sm:$0xff]
        %v921 = vld [vmem:[#allocation2 + $0xbf] sm:$0xff]
        %v922 = vld [vmem:[#allocation2 + $0xc7] sm:$0xff]
        %v923 = vld [vmem:[#allocation2 + $0xcf] sm:$0xff]
        %v924 = vld [vmem:[#allocation2 + $0xd7] sm:$0xff]
        %v925 = vld [vmem:[#allocation2 + $0xdf] sm:$0xff]
        %v926 = vld [vmem:[#allocation2 + $0xe7] sm:$0xff]
        %v927 = vld [vmem:[#allocation2 + $0xef] sm:$0xff]
        %v928 = vld [vmem:[#allocation2 + $0xf7] sm:$0xff]
        %v929 = vld [vmem:[#allocation2 + $0xff] sm:$0xff]
        %v930 = vsel %vm834, 1, 0
        %v931 = vsel %vm835, 1, 0
        %v932 = vsel %vm836, 1, 0
        %v933 = vsel %vm837, 1, 0
        %v934 = vsel %vm838, 1, 0
        %v935 = vsel %vm839, 1, 0
        %v936 = vsel %vm840, 1, 0
        %v937 = vsel %vm841, 1, 0
        %v938 = vsel %vm842, 1, 0
        %v939 = vsel %vm843, 1, 0
        %v940 = vsel %vm844, 1, 0
        %v941 = vsel %vm845, 1, 0
        %v942 = vsel %vm846, 1, 0
        %v943 = vsel %vm847, 1, 0
        %v944 = vsel %vm848, 1, 0
        %v945 = vsel %vm849, 1, 0
        %v946 = vsel %vm850, 1, 0
        %v947 = vsel %vm851, 1, 0
        %v948 = vsel %vm852, 1, 0
        %v949 = vsel %vm853, 1, 0
        %v950 = vsel %vm854, 1, 0
        %v951 = vsel %vm855, 1, 0
        %v952 = vsel %vm856, 1, 0
        %v953 = vsel %vm857, 1, 0
        %v954 = vsel %vm858, 1, 0
        %v955 = vsel %vm859, 1, 0
        %v956 = vsel %vm860, 1, 0
        %v957 = vsel %vm861, 1, 0
        %v958 = vsel %vm862, 1, 0
        %v959 = vsel %vm863, 1, 0
        %v960 = vsel %vm864, 1, 0
        %v961 = vsel %vm865, 1, 0
        %vm962 = vcmp.eq.s32.totalorder %v930, 1
        %vm963 = vcmp.eq.s32.totalorder %v931, 1
        %vm964 = vcmp.eq.s32.totalorder %v932, 1
        %vm965 = vcmp.eq.s32.totalorder %v933, 1
        %vm966 = vcmp.eq.s32.totalorder %v934, 1
        %vm967 = vcmp.eq.s32.totalorder %v935, 1
        %vm968 = vcmp.eq.s32.totalorder %v936, 1
        %vm969 = vcmp.eq.s32.totalorder %v937, 1
        %vm970 = vcmp.eq.s32.totalorder %v938, 1
        %vm971 = vcmp.eq.s32.totalorder %v939, 1
        %vm972 = vcmp.eq.s32.totalorder %v940, 1
        %vm973 = vcmp.eq.s32.totalorder %v941, 1
        %vm974 = vcmp.eq.s32.totalorder %v942, 1
        %vm975 = vcmp.eq.s32.totalorder %v943, 1
        %vm976 = vcmp.eq.s32.totalorder %v944, 1
        %vm977 = vcmp.eq.s32.totalorder %v945, 1
        %vm978 = vcmp.eq.s32.totalorder %v946, 1
        %vm979 = vcmp.eq.s32.totalorder %v947, 1
        %vm980 = vcmp.eq.s32.totalorder %v948, 1
        %vm981 = vcmp.eq.s32.totalorder %v949, 1
        %vm982 = vcmp.eq.s32.totalorder %v950, 1
        %vm983 = vcmp.eq.s32.totalorder %v951, 1
        %vm984 = vcmp.eq.s32.totalorder %v952, 1
        %vm985 = vcmp.eq.s32.totalorder %v953, 1
        %vm986 = vcmp.eq.s32.totalorder %v954, 1
        %vm987 = vcmp.eq.s32.totalorder %v955, 1
        %vm988 = vcmp.eq.s32.totalorder %v956, 1
        %vm989 = vcmp.eq.s32.totalorder %v957, 1
        %vm990 = vcmp.eq.s32.totalorder %v958, 1
        %vm991 = vcmp.eq.s32.totalorder %v959, 1
        %vm992 = vcmp.eq.s32.totalorder %v960, 1
        %vm993 = vcmp.eq.s32.totalorder %v961, 1
        %v994 = vsel %vm962, %v898, 0.0
        %v995 = vsel %vm963, %v899, 0.0
        %v996 = vsel %vm964, %v900, 0.0
        %v997 = vsel %vm965, %v901, 0.0
        %v998 = vsel %vm966, %v902, 0.0
        %v999 = vsel %vm967, %v903, 0.0
        %v1000 = vsel %vm968, %v904, 0.0
        %v1001 = vsel %vm969, %v905, 0.0
        %v1002 = vsel %vm970, %v906, 0.0
        %v1003 = vsel %vm971, %v907, 0.0
        %v1004 = vsel %vm972, %v908, 0.0
        %v1005 = vsel %vm973, %v909, 0.0
        %v1006 = vsel %vm974, %v910, 0.0
        %v1007 = vsel %vm975, %v911, 0.0
        %v1008 = vsel %vm976, %v912, 0.0
        %v1009 = vsel %vm977, %v913, 0.0
        %v1010 = vsel %vm978, %v914, 0.0
        %v1011 = vsel %vm979, %v915, 0.0
        %v1012 = vsel %vm980, %v916, 0.0
        %v1013 = vsel %vm981, %v917, 0.0
        %v1014 = vsel %vm982, %v918, 0.0
        %v1015 = vsel %vm983, %v919, 0.0
        %v1016 = vsel %vm984, %v920, 0.0
        %v1017 = vsel %vm985, %v921, 0.0
        %v1018 = vsel %vm986, %v922, 0.0
        %v1019 = vsel %vm987, %v923, 0.0
        %v1020 = vsel %vm988, %v924, 0.0
        %v1021 = vsel %vm989, %v925, 0.0
        %v1022 = vsel %vm990, %v926, 0.0
        %v1023 = vsel %vm991, %v927, 0.0
        %v1024 = vsel %vm992, %v928, 0.0
        %v1025 = vsel %vm993, %v929, 0.0
        %v1026 = vld [vmem:[#allocation2 + $0x8] sm:$0xff]
        %v1027 = vld [vmem:[#allocation2 + $0x10] sm:$0xff]
        %v1028 = vld [vmem:[#allocation2 + $0x18] sm:$0xff]
        %v1029 = vld [vmem:[#allocation2 + $0x20] sm:$0xff]
        %v1030 = vld [vmem:[#allocation2 + $0x28] sm:$0xff]
        %v1031 = vld [vmem:[#allocation2 + $0x30] sm:$0xff]
        %v1032 = vld [vmem:[#allocation2 + $0x38] sm:$0xff]
        %v1033 = vld [vmem:[#allocation2 + $0x40] sm:$0xff]
        %v1034 = vld [vmem:[#allocation2 + $0x48] sm:$0xff]
        %v1035 = vld [vmem:[#allocation2 + $0x50] sm:$0xff]
        %v1036 = vld [vmem:[#allocation2 + $0x58] sm:$0xff]
        %v1037 = vld [vmem:[#allocation2 + $0x60] sm:$0xff]
        %v1038 = vld [vmem:[#allocation2 + $0x68] sm:$0xff]
        %v1039 = vld [vmem:[#allocation2 + $0x70] sm:$0xff]
        %v1040 = vld [vmem:[#allocation2 + $0x78] sm:$0xff]
        %v1041 = vld [vmem:[#allocation2 + $0x80] sm:$0xff]
        %v1042 = vld [vmem:[#allocation2 + $0x88] sm:$0xff]
        %v1043 = vld [vmem:[#allocation2 + $0x90] sm:$0xff]
        %v1044 = vld [vmem:[#allocation2 + $0x98] sm:$0xff]
        %v1045 = vld [vmem:[#allocation2 + $0xa0] sm:$0xff]
        %v1046 = vld [vmem:[#allocation2 + $0xa8] sm:$0xff]
        %v1047 = vld [vmem:[#allocation2 + $0xb0] sm:$0xff]
        %v1048 = vld [vmem:[#allocation2 + $0xb8] sm:$0xff]
        %v1049 = vld [vmem:[#allocation2 + $0xc0] sm:$0xff]
        %v1050 = vld [vmem:[#allocation2 + $0xc8] sm:$0xff]
        %v1051 = vld [vmem:[#allocation2 + $0xd0] sm:$0xff]
        %v1052 = vld [vmem:[#allocation2 + $0xd8] sm:$0xff]
        %v1053 = vld [vmem:[#allocation2 + $0xe0] sm:$0xff]
        %v1054 = vld [vmem:[#allocation2 + $0xe8] sm:$0xff]
        %v1055 = vld [vmem:[#allocation2 + $0xf0] sm:$0xff]
        %v1056 = vld [vmem:[#allocation2 + $0xf8] sm:$0xff]
        %v1057 = vld [vmem:[#allocation2 + $0x100] sm:$0xff]
        %v1058 = vld [vmem:[#allocation2 + $0x9] sm:$0xff]
        %v1059 = vld [vmem:[#allocation2 + $0x11] sm:$0xff]
        %v1060 = vld [vmem:[#allocation2 + $0x19] sm:$0xff]
        %v1061 = vld [vmem:[#allocation2 + $0x21] sm:$0xff]
        %v1062 = vld [vmem:[#allocation2 + $0x29] sm:$0xff]
        %v1063 = vld [vmem:[#allocation2 + $0x31] sm:$0xff]
        %v1064 = vld [vmem:[#allocation2 + $0x39] sm:$0xff]
        %v1065 = vld [vmem:[#allocation2 + $0x41] sm:$0xff]
        %v1066 = vld [vmem:[#allocation2 + $0x49] sm:$0xff]
        %v1067 = vld [vmem:[#allocation2 + $0x51] sm:$0xff]
        %v1068 = vld [vmem:[#allocation2 + $0x59] sm:$0xff]
        %v1069 = vld [vmem:[#allocation2 + $0x61] sm:$0xff]
        %v1070 = vld [vmem:[#allocation2 + $0x69] sm:$0xff]
        %v1071 = vld [vmem:[#allocation2 + $0x71] sm:$0xff]
        %v1072 = vld [vmem:[#allocation2 + $0x79] sm:$0xff]
        %v1073 = vld [vmem:[#allocation2 + $0x81] sm:$0xff]
        %v1074 = vld [vmem:[#allocation2 + $0x89] sm:$0xff]
        %v1075 = vld [vmem:[#allocation2 + $0x91] sm:$0xff]
        %v1076 = vld [vmem:[#allocation2 + $0x99] sm:$0xff]
        %v1077 = vld [vmem:[#allocation2 + $0xa1] sm:$0xff]
        %v1078 = vld [vmem:[#allocation2 + $0xa9] sm:$0xff]
        %v1079 = vld [vmem:[#allocation2 + $0xb1] sm:$0xff]
        %v1080 = vld [vmem:[#allocation2 + $0xb9] sm:$0xff]
        %v1081 = vld [vmem:[#allocation2 + $0xc1] sm:$0xff]
        %v1082 = vld [vmem:[#allocation2 + $0xc9] sm:$0xff]
        %v1083 = vld [vmem:[#allocation2 + $0xd1] sm:$0xff]
        %v1084 = vld [vmem:[#allocation2 + $0xd9] sm:$0xff]
        %v1085 = vld [vmem:[#allocation2 + $0xe1] sm:$0xff]
        %v1086 = vld [vmem:[#allocation2 + $0xe9] sm:$0xff]
        %v1087 = vld [vmem:[#allocation2 + $0xf1] sm:$0xff]
        %v1088 = vld [vmem:[#allocation2 + $0xf9] sm:$0xff]
        %v1089 = vld [vmem:[#allocation2 + $0x101] sm:$0xff]
        %v1090 = vsel %vm866, 1, 0
        %v1091 = vsel %vm867, 1, 0
        %v1092 = vsel %vm868, 1, 0
        %v1093 = vsel %vm869, 1, 0
        %v1094 = vsel %vm870, 1, 0
        %v1095 = vsel %vm871, 1, 0
        %v1096 = vsel %vm872, 1, 0
        %v1097 = vsel %vm873, 1, 0
        %v1098 = vsel %vm874, 1, 0
        %v1099 = vsel %vm875, 1, 0
        %v1100 = vsel %vm876, 1, 0
        %v1101 = vsel %vm877, 1, 0
        %v1102 = vsel %vm878, 1, 0
        %v1103 = vsel %vm879, 1, 0
        %v1104 = vsel %vm880, 1, 0
        %v1105 = vsel %vm881, 1, 0
        %v1106 = vsel %vm882, 1, 0
        %v1107 = vsel %vm883, 1, 0
        %v1108 = vsel %vm884, 1, 0
        %v1109 = vsel %vm885, 1, 0
        %v1110 = vsel %vm886, 1, 0
        %v1111 = vsel %vm887, 1, 0
        %v1112 = vsel %vm888, 1, 0
        %v1113 = vsel %vm889, 1, 0
        %v1114 = vsel %vm890, 1, 0
        %v1115 = vsel %vm891, 1, 0
        %v1116 = vsel %vm892, 1, 0
        %v1117 = vsel %vm893, 1, 0
        %v1118 = vsel %vm894, 1, 0
        %v1119 = vsel %vm895, 1, 0
        %v1120 = vsel %vm896, 1, 0
        %v1121 = vsel %vm897, 1, 0
        %vm1122 = vcmp.eq.s32.totalorder %v1090, 1
        %vm1123 = vcmp.eq.s32.totalorder %v1091, 1
        %vm1124 = vcmp.eq.s32.totalorder %v1092, 1
        %vm1125 = vcmp.eq.s32.totalorder %v1093, 1
        %vm1126 = vcmp.eq.s32.totalorder %v1094, 1
        %vm1127 = vcmp.eq.s32.totalorder %v1095, 1
        %vm1128 = vcmp.eq.s32.totalorder %v1096, 1
        %vm1129 = vcmp.eq.s32.totalorder %v1097, 1
        %vm1130 = vcmp.eq.s32.totalorder %v1098, 1
        %vm1131 = vcmp.eq.s32.totalorder %v1099, 1
        %vm1132 = vcmp.eq.s32.totalorder %v1100, 1
        %vm1133 = vcmp.eq.s32.totalorder %v1101, 1
        %vm1134 = vcmp.eq.s32.totalorder %v1102, 1
        %vm1135 = vcmp.eq.s32.totalorder %v1103, 1
        %vm1136 = vcmp.eq.s32.totalorder %v1104, 1
        %vm1137 = vcmp.eq.s32.totalorder %v1105, 1
        %vm1138 = vcmp.eq.s32.totalorder %v1106, 1
        %vm1139 = vcmp.eq.s32.totalorder %v1107, 1
        %vm1140 = vcmp.eq.s32.totalorder %v1108, 1
        %vm1141 = vcmp.eq.s32.totalorder %v1109, 1
        %vm1142 = vcmp.eq.s32.totalorder %v1110, 1
        %vm1143 = vcmp.eq.s32.totalorder %v1111, 1
        %vm1144 = vcmp.eq.s32.totalorder %v1112, 1
        %vm1145 = vcmp.eq.s32.totalorder %v1113, 1
        %vm1146 = vcmp.eq.s32.totalorder %v1114, 1
        %vm1147 = vcmp.eq.s32.totalorder %v1115, 1
        %vm1148 = vcmp.eq.s32.totalorder %v1116, 1
        %vm1149 = vcmp.eq.s32.totalorder %v1117, 1
        %vm1150 = vcmp.eq.s32.totalorder %v1118, 1
        %vm1151 = vcmp.eq.s32.totalorder %v1119, 1
        %vm1152 = vcmp.eq.s32.totalorder %v1120, 1
        %vm1153 = vcmp.eq.s32.totalorder %v1121, 1
        %v1154 = vsel %vm1122, %v1058, 0.0
        %v1155 = vsel %vm1123, %v1059, 0.0
        %v1156 = vsel %vm1124, %v1060, 0.0
        %v1157 = vsel %vm1125, %v1061, 0.0
        %v1158 = vsel %vm1126, %v1062, 0.0
        %v1159 = vsel %vm1127, %v1063, 0.0
        %v1160 = vsel %vm1128, %v1064, 0.0
        %v1161 = vsel %vm1129, %v1065, 0.0
        %v1162 = vsel %vm1130, %v1066, 0.0
        %v1163 = vsel %vm1131, %v1067, 0.0
        %v1164 = vsel %vm1132, %v1068, 0.0
        %v1165 = vsel %vm1133, %v1069, 0.0
        %v1166 = vsel %vm1134, %v1070, 0.0
        %v1167 = vsel %vm1135, %v1071, 0.0
        %v1168 = vsel %vm1136, %v1072, 0.0
        %v1169 = vsel %vm1137, %v1073, 0.0
        %v1170 = vsel %vm1138, %v1074, 0.0
        %v1171 = vsel %vm1139, %v1075, 0.0
        %v1172 = vsel %vm1140, %v1076, 0.0
        %v1173 = vsel %vm1141, %v1077, 0.0
        %v1174 = vsel %vm1142, %v1078, 0.0
        %v1175 = vsel %vm1143, %v1079, 0.0
        %v1176 = vsel %vm1144, %v1080, 0.0
        %v1177 = vsel %vm1145, %v1081, 0.0
        %v1178 = vsel %vm1146, %v1082, 0.0
        %v1179 = vsel %vm1147, %v1083, 0.0
        %v1180 = vsel %vm1148, %v1084, 0.0
        %v1181 = vsel %vm1149, %v1085, 0.0
        %v1182 = vsel %vm1150, %v1086, 0.0
        %v1183 = vsel %vm1151, %v1087, 0.0
        %v1184 = vsel %vm1152, %v1088, 0.0
        %v1185 = vsel %vm1153, %v1089, 0.0
        %v1186 = vld [vmem:[#allocation2 + $0x107] sm:$0xff]
        %v1187 = vld [vmem:[#allocation2 + $0x10f] sm:$0xff]
        %v1188 = vsel %vm962, %v900, 0.0
        %v1189 = vsel %vm963, %v901, 0.0
        %v1190 = vsel %vm964, %v902, 0.0
        %v1191 = vsel %vm965, %v903, 0.0
        %v1192 = vsel %vm966, %v904, 0.0
        %v1193 = vsel %vm967, %v905, 0.0
        %v1194 = vsel %vm968, %v906, 0.0
        %v1195 = vsel %vm969, %v907, 0.0
        %v1196 = vsel %vm970, %v908, 0.0
        %v1197 = vsel %vm971, %v909, 0.0
        %v1198 = vsel %vm972, %v910, 0.0
        %v1199 = vsel %vm973, %v911, 0.0
        %v1200 = vsel %vm974, %v912, 0.0
        %v1201 = vsel %vm975, %v913, 0.0
        %v1202 = vsel %vm976, %v914, 0.0
        %v1203 = vsel %vm977, %v915, 0.0
        %v1204 = vsel %vm978, %v916, 0.0
        %v1205 = vsel %vm979, %v917, 0.0
        %v1206 = vsel %vm980, %v918, 0.0
        %v1207 = vsel %vm981, %v919, 0.0
        %v1208 = vsel %vm982, %v920, 0.0
        %v1209 = vsel %vm983, %v921, 0.0
        %v1210 = vsel %vm984, %v922, 0.0
        %v1211 = vsel %vm985, %v923, 0.0
        %v1212 = vsel %vm986, %v924, 0.0
        %v1213 = vsel %vm987, %v925, 0.0
        %v1214 = vsel %vm988, %v926, 0.0
        %v1215 = vsel %vm989, %v927, 0.0
        %v1216 = vsel %vm990, %v928, 0.0
        %v1217 = vsel %vm991, %v929, 0.0
        %v1218 = vsel %vm992, %v1186, 0.0
        %v1219 = vsel %vm993, %v1187, 0.0
        %v1220 = vld [vmem:[#allocation2 + $0x108] sm:$0xff]
        %v1221 = vld [vmem:[#allocation2 + $0x110] sm:$0xff]
        %v1222 = vld [vmem:[#allocation2 + $0x109] sm:$0xff]
        %v1223 = vld [vmem:[#allocation2 + $0x111] sm:$0xff]
        %v1224 = vsel %vm1122, %v1060, 0.0
        %v1225 = vsel %vm1123, %v1061, 0.0
        %v1226 = vsel %vm1124, %v1062, 0.0
        %v1227 = vsel %vm1125, %v1063, 0.0
        %v1228 = vsel %vm1126, %v1064, 0.0
        %v1229 = vsel %vm1127, %v1065, 0.0
        %v1230 = vsel %vm1128, %v1066, 0.0
        %v1231 = vsel %vm1129, %v1067, 0.0
        %v1232 = vsel %vm1130, %v1068, 0.0
        %v1233 = vsel %vm1131, %v1069, 0.0
        %v1234 = vsel %vm1132, %v1070, 0.0
        %v1235 = vsel %vm1133, %v1071, 0.0
        %v1236 = vsel %vm1134, %v1072, 0.0
        %v1237 = vsel %vm1135, %v1073, 0.0
        %v1238 = vsel %vm1136, %v1074, 0.0
        %v1239 = vsel %vm1137, %v1075, 0.0
        %v1240 = vsel %vm1138, %v1076, 0.0
        %v1241 = vsel %vm1139, %v1077, 0.0
        %v1242 = vsel %vm1140, %v1078, 0.0
        %v1243 = vsel %vm1141, %v1079, 0.0
        %v1244 = vsel %vm1142, %v1080, 0.0
        %v1245 = vsel %vm1143, %v1081, 0.0
        %v1246 = vsel %vm1144, %v1082, 0.0
        %v1247 = vsel %vm1145, %v1083, 0.0
        %v1248 = vsel %vm1146, %v1084, 0.0
        %v1249 = vsel %vm1147, %v1085, 0.0
        %v1250 = vsel %vm1148, %v1086, 0.0
        %v1251 = vsel %vm1149, %v1087, 0.0
        %v1252 = vsel %vm1150, %v1088, 0.0
        %v1253 = vsel %vm1151, %v1089, 0.0
        %v1254 = vsel %vm1152, %v1222, 0.0
        %v1255 = vsel %vm1153, %v1223, 0.0
        %v1256 = vld [vmem:[#allocation2 + $0x117] sm:$0xff]
        %v1257 = vld [vmem:[#allocation2 + $0x11f] sm:$0xff]
        %v1258 = vsel %vm962, %v902, 0.0
        %v1259 = vsel %vm963, %v903, 0.0
        %v1260 = vsel %vm964, %v904, 0.0
        %v1261 = vsel %vm965, %v905, 0.0
        %v1262 = vsel %vm966, %v906, 0.0
        %v1263 = vsel %vm967, %v907, 0.0
        %v1264 = vsel %vm968, %v908, 0.0
        %v1265 = vsel %vm969, %v909, 0.0
        %v1266 = vsel %vm970, %v910, 0.0
        %v1267 = vsel %vm971, %v911, 0.0
        %v1268 = vsel %vm972, %v912, 0.0
        %v1269 = vsel %vm973, %v913, 0.0
        %v1270 = vsel %vm974, %v914, 0.0
        %v1271 = vsel %vm975, %v915, 0.0
        %v1272 = vsel %vm976, %v916, 0.0
        %v1273 = vsel %vm977, %v917, 0.0
        %v1274 = vsel %vm978, %v918, 0.0
        %v1275 = vsel %vm979, %v919, 0.0
        %v1276 = vsel %vm980, %v920, 0.0
        %v1277 = vsel %vm981, %v921, 0.0
        %v1278 = vsel %vm982, %v922, 0.0
        %v1279 = vsel %vm983, %v923, 0.0
        %v1280 = vsel %vm984, %v924, 0.0
        %v1281 = vsel %vm985, %v925, 0.0
        %v1282 = vsel %vm986, %v926, 0.0
        %v1283 = vsel %vm987, %v927, 0.0
        %v1284 = vsel %vm988, %v928, 0.0
        %v1285 = vsel %vm989, %v929, 0.0
        %v1286 = vsel %vm990, %v1186, 0.0
        %v1287 = vsel %vm991, %v1187, 0.0
        %v1288 = vsel %vm992, %v1256, 0.0
        %v1289 = vsel %vm993, %v1257, 0.0
        %v1290 = vld [vmem:[#allocation2 + $0x118] sm:$0xff]
        %v1291 = vld [vmem:[#allocation2 + $0x120] sm:$0xff]
        %v1292 = vld [vmem:[#allocation2 + $0x119] sm:$0xff]
        %v1293 = vld [vmem:[#allocation2 + $0x121] sm:$0xff]
        %v1294 = vsel %vm1122, %v1062, 0.0
        %v1295 = vsel %vm1123, %v1063, 0.0
        %v1296 = vsel %vm1124, %v1064, 0.0
        %v1297 = vsel %vm1125, %v1065, 0.0
        %v1298 = vsel %vm1126, %v1066, 0.0
        %v1299 = vsel %vm1127, %v1067, 0.0
        %v1300 = vsel %vm1128, %v1068, 0.0
        %v1301 = vsel %vm1129, %v1069, 0.0
        %v1302 = vsel %vm1130, %v1070, 0.0
        %v1303 = vsel %vm1131, %v1071, 0.0
        %v1304 = vsel %vm1132, %v1072, 0.0
        %v1305 = vsel %vm1133, %v1073, 0.0
        %v1306 = vsel %vm1134, %v1074, 0.0
        %v1307 = vsel %vm1135, %v1075, 0.0
        %v1308 = vsel %vm1136, %v1076, 0.0
        %v1309 = vsel %vm1137, %v1077, 0.0
        %v1310 = vsel %vm1138, %v1078, 0.0
        %v1311 = vsel %vm1139, %v1079, 0.0
        %v1312 = vsel %vm1140, %v1080, 0.0
        %v1313 = vsel %vm1141, %v1081, 0.0
        %v1314 = vsel %vm1142, %v1082, 0.0
        %v1315 = vsel %vm1143, %v1083, 0.0
        %v1316 = vsel %vm1144, %v1084, 0.0
        %v1317 = vsel %vm1145, %v1085, 0.0
        %v1318 = vsel %vm1146, %v1086, 0.0
        %v1319 = vsel %vm1147, %v1087, 0.0
        %v1320 = vsel %vm1148, %v1088, 0.0
        %v1321 = vsel %vm1149, %v1089, 0.0
        %v1322 = vsel %vm1150, %v1222, 0.0
        %v1323 = vsel %vm1151, %v1223, 0.0
        %v1324 = vsel %vm1152, %v1292, 0.0
        %v1325 = vsel %vm1153, %v1293, 0.0
        %1358 = vrot.lane.b32.xlu0 %v1026, 4
        %v1359 = vpop.permute.xlu0 %1358
        %1360 = vrot.lane.b32.xlu0 %v1027, 4
        %v1361 = vpop.permute.xlu0 %1360
        %1362 = vrot.lane.b32.xlu0 %v1028, 4
        %v1363 = vpop.permute.xlu0 %1362
        %1364 = vrot.lane.b32.xlu0 %v1029, 4
        %v1365 = vpop.permute.xlu0 %1364
        %1366 = vrot.lane.b32.xlu0 %v1030, 4
        %v1367 = vpop.permute.xlu0 %1366
        %1368 = vrot.lane.b32.xlu0 %v1031, 4
        %v1369 = vpop.permute.xlu0 %1368
        %1370 = vrot.lane.b32.xlu0 %v1032, 4
        %v1371 = vpop.permute.xlu0 %1370
        %1372 = vrot.lane.b32.xlu0 %v1033, 4
        %v1373 = vpop.permute.xlu0 %1372
        %1374 = vrot.lane.b32.xlu0 %v1034, 4
        %v1375 = vpop.permute.xlu0 %1374
        %1376 = vrot.lane.b32.xlu0 %v1035, 4
        %v1377 = vpop.permute.xlu0 %1376
        %1378 = vrot.lane.b32.xlu0 %v1036, 4
        %v1379 = vpop.permute.xlu0 %1378
        %1380 = vrot.lane.b32.xlu0 %v1037, 4
        %v1381 = vpop.permute.xlu0 %1380
        %1382 = vrot.lane.b32.xlu0 %v1038, 4
        %v1383 = vpop.permute.xlu0 %1382
        %1384 = vrot.lane.b32.xlu0 %v1039, 4
        %v1385 = vpop.permute.xlu0 %1384
        %1386 = vrot.lane.b32.xlu0 %v1040, 4
        %v1387 = vpop.permute.xlu0 %1386
        %1388 = vrot.lane.b32.xlu0 %v1041, 4
        %v1389 = vpop.permute.xlu0 %1388
        %1390 = vrot.lane.b32.xlu0 %v1042, 4
        %v1391 = vpop.permute.xlu0 %1390
        %1392 = vrot.lane.b32.xlu0 %v1043, 4
        %v1393 = vpop.permute.xlu0 %1392
        %1394 = vrot.lane.b32.xlu0 %v1044, 4
        %v1395 = vpop.permute.xlu0 %1394
        %1396 = vrot.lane.b32.xlu0 %v1045, 4
        %v1397 = vpop.permute.xlu0 %1396
        %1398 = vrot.lane.b32.xlu0 %v1046, 4
        %v1399 = vpop.permute.xlu0 %1398
        %1400 = vrot.lane.b32.xlu0 %v1047, 4
        %v1401 = vpop.permute.xlu0 %1400
        %1402 = vrot.lane.b32.xlu0 %v1048, 4
        %v1403 = vpop.permute.xlu0 %1402
        %1404 = vrot.lane.b32.xlu0 %v1049, 4
        %v1405 = vpop.permute.xlu0 %1404
        %1406 = vrot.lane.b32.xlu0 %v1050, 4
        %v1407 = vpop.permute.xlu0 %1406
        %1408 = vrot.lane.b32.xlu0 %v1051, 4
        %v1409 = vpop.permute.xlu0 %1408
        %1410 = vrot.lane.b32.xlu0 %v1052, 4
        %v1411 = vpop.permute.xlu0 %1410
        %1412 = vrot.lane.b32.xlu0 %v1053, 4
        %v1413 = vpop.permute.xlu0 %1412
        %1414 = vrot.lane.b32.xlu0 %v1054, 4
        %v1415 = vpop.permute.xlu0 %1414
        %1416 = vrot.lane.b32.xlu0 %v1055, 4
        %v1417 = vpop.permute.xlu0 %1416
        %1418 = vrot.lane.b32.xlu0 %v1056, 4
        %v1419 = vpop.permute.xlu0 %1418
        %1420 = vrot.lane.b32.xlu0 %v1057, 4
        %v1421 = vpop.permute.xlu0 %1420
        %1486 = vrot.lane.b32.xlu0 %v1154, 8
        %v1487 = vpop.permute.xlu0 %1486
        %1488 = vrot.lane.b32.xlu0 %v1155, 8
        %v1489 = vpop.permute.xlu0 %1488
        %1490 = vrot.lane.b32.xlu0 %v1156, 8
        %v1491 = vpop.permute.xlu0 %1490
        %1492 = vrot.lane.b32.xlu0 %v1157, 8
        %v1493 = vpop.permute.xlu0 %1492
        %1494 = vrot.lane.b32.xlu0 %v1158, 8
        %v1495 = vpop.permute.xlu0 %1494
        %1496 = vrot.lane.b32.xlu0 %v1159, 8
        %v1497 = vpop.permute.xlu0 %1496
        %1498 = vrot.lane.b32.xlu0 %v1160, 8
        %v1499 = vpop.permute.xlu0 %1498
        %1500 = vrot.lane.b32.xlu0 %v1161, 8
        %v1501 = vpop.permute.xlu0 %1500
        %1502 = vrot.lane.b32.xlu0 %v1162, 8
        %v1503 = vpop.permute.xlu0 %1502
        %1504 = vrot.lane.b32.xlu0 %v1163, 8
        %v1505 = vpop.permute.xlu0 %1504
        %1506 = vrot.lane.b32.xlu0 %v1164, 8
        %v1507 = vpop.permute.xlu0 %1506
        %1508 = vrot.lane.b32.xlu0 %v1165, 8
        %v1509 = vpop.permute.xlu0 %1508
        %1510 = vrot.lane.b32.xlu0 %v1166, 8
        %v1511 = vpop.permute.xlu0 %1510
        %1512 = vrot.lane.b32.xlu0 %v1167, 8
        %v1513 = vpop.permute.xlu0 %1512
        %1514 = vrot.lane.b32.xlu0 %v1168, 8
        %v1515 = vpop.permute.xlu0 %1514
        %1516 = vrot.lane.b32.xlu0 %v1169, 8
        %v1517 = vpop.permute.xlu0 %1516
        %1518 = vrot.lane.b32.xlu0 %v1170, 8
        %v1519 = vpop.permute.xlu0 %1518
        %1520 = vrot.lane.b32.xlu0 %v1171, 8
        %v1521 = vpop.permute.xlu0 %1520
        %1522 = vrot.lane.b32.xlu0 %v1172, 8
        %v1523 = vpop.permute.xlu0 %1522
        %1524 = vrot.lane.b32.xlu0 %v1173, 8
        %v1525 = vpop.permute.xlu0 %1524
        %1526 = vrot.lane.b32.xlu0 %v1174, 8
        %v1527 = vpop.permute.xlu0 %1526
        %1528 = vrot.lane.b32.xlu0 %v1175, 8
        %v1529 = vpop.permute.xlu0 %1528
        %1530 = vrot.lane.b32.xlu0 %v1176, 8
        %v1531 = vpop.permute.xlu0 %1530
        %1532 = vrot.lane.b32.xlu0 %v1177, 8
        %v1533 = vpop.permute.xlu0 %1532
        %1534 = vrot.lane.b32.xlu0 %v1178, 8
        %v1535 = vpop.permute.xlu0 %1534
        %1536 = vrot.lane.b32.xlu0 %v1179, 8
        %v1537 = vpop.permute.xlu0 %1536
        %1538 = vrot.lane.b32.xlu0 %v1180, 8
        %v1539 = vpop.permute.xlu0 %1538
        %1540 = vrot.lane.b32.xlu0 %v1181, 8
        %v1541 = vpop.permute.xlu0 %1540
        %1542 = vrot.lane.b32.xlu0 %v1182, 8
        %v1543 = vpop.permute.xlu0 %1542
        %1544 = vrot.lane.b32.xlu0 %v1183, 8
        %v1545 = vpop.permute.xlu0 %1544
        %1546 = vrot.lane.b32.xlu0 %v1184, 8
        %v1547 = vpop.permute.xlu0 %1546
        %1548 = vrot.lane.b32.xlu0 %v1185, 8
        %v1549 = vpop.permute.xlu0 %1548
        %1614 = vrot.lane.b32.xlu0 %v1188, 12
        %v1615 = vpop.permute.xlu0 %1614
        %1616 = vrot.lane.b32.xlu0 %v1189, 12
        %v1617 = vpop.permute.xlu0 %1616
        %1618 = vrot.lane.b32.xlu0 %v1190, 12
        %v1619 = vpop.permute.xlu0 %1618
        %1620 = vrot.lane.b32.xlu0 %v1191, 12
        %v1621 = vpop.permute.xlu0 %1620
        %1622 = vrot.lane.b32.xlu0 %v1192, 12
        %v1623 = vpop.permute.xlu0 %1622
        %1624 = vrot.lane.b32.xlu0 %v1193, 12
        %v1625 = vpop.permute.xlu0 %1624
        %1626 = vrot.lane.b32.xlu0 %v1194, 12
        %v1627 = vpop.permute.xlu0 %1626
        %1628 = vrot.lane.b32.xlu0 %v1195, 12
        %v1629 = vpop.permute.xlu0 %1628
        %1630 = vrot.lane.b32.xlu0 %v1196, 12
        %v1631 = vpop.permute.xlu0 %1630
        %1632 = vrot.lane.b32.xlu0 %v1197, 12
        %v1633 = vpop.permute.xlu0 %1632
        %1634 = vrot.lane.b32.xlu0 %v1198, 12
        %v1635 = vpop.permute.xlu0 %1634
        %1636 = vrot.lane.b32.xlu0 %v1199, 12
        %v1637 = vpop.permute.xlu0 %1636
        %1638 = vrot.lane.b32.xlu0 %v1200, 12
        %v1639 = vpop.permute.xlu0 %1638
        %1640 = vrot.lane.b32.xlu0 %v1201, 12
        %v1641 = vpop.permute.xlu0 %1640
        %1642 = vrot.lane.b32.xlu0 %v1202, 12
        %v1643 = vpop.permute.xlu0 %1642
        %1644 = vrot.lane.b32.xlu0 %v1203, 12
        %v1645 = vpop.permute.xlu0 %1644
        %1646 = vrot.lane.b32.xlu0 %v1204, 12
        %v1647 = vpop.permute.xlu0 %1646
        %1648 = vrot.lane.b32.xlu0 %v1205, 12
        %v1649 = vpop.permute.xlu0 %1648
        %1650 = vrot.lane.b32.xlu0 %v1206, 12
        %v1651 = vpop.permute.xlu0 %1650
        %1652 = vrot.lane.b32.xlu0 %v1207, 12
        %v1653 = vpop.permute.xlu0 %1652
        %1654 = vrot.lane.b32.xlu0 %v1208, 12
        %v1655 = vpop.permute.xlu0 %1654
        %1656 = vrot.lane.b32.xlu0 %v1209, 12
        %v1657 = vpop.permute.xlu0 %1656
        %1658 = vrot.lane.b32.xlu0 %v1210, 12
        %v1659 = vpop.permute.xlu0 %1658
        %1660 = vrot.lane.b32.xlu0 %v1211, 12
        %v1661 = vpop.permute.xlu0 %1660
        %1662 = vrot.lane.b32.xlu0 %v1212, 12
        %v1663 = vpop.permute.xlu0 %1662
        %1664 = vrot.lane.b32.xlu0 %v1213, 12
        %v1665 = vpop.permute.xlu0 %1664
        %1666 = vrot.lane.b32.xlu0 %v1214, 12
        %v1667 = vpop.permute.xlu0 %1666
        %1668 = vrot.lane.b32.xlu0 %v1215, 12
        %v1669 = vpop.permute.xlu0 %1668
        %1670 = vrot.lane.b32.xlu0 %v1216, 12
        %v1671 = vpop.permute.xlu0 %1670
        %1672 = vrot.lane.b32.xlu0 %v1217, 12
        %v1673 = vpop.permute.xlu0 %1672
        %1674 = vrot.lane.b32.xlu0 %v1218, 12
        %v1675 = vpop.permute.xlu0 %1674
        %1676 = vrot.lane.b32.xlu0 %v1219, 12
        %v1677 = vpop.permute.xlu0 %1676
        %1712 = vrot.lane.b32.xlu0 %v1028, 16
        %v1713 = vpop.permute.xlu0 %1712
        %1714 = vrot.lane.b32.xlu0 %v1029, 16
        %v1715 = vpop.permute.xlu0 %1714
        %1716 = vrot.lane.b32.xlu0 %v1030, 16
        %v1717 = vpop.permute.xlu0 %1716
        %1718 = vrot.lane.b32.xlu0 %v1031, 16
        %v1719 = vpop.permute.xlu0 %1718
        %1720 = vrot.lane.b32.xlu0 %v1032, 16
        %v1721 = vpop.permute.xlu0 %1720
        %1722 = vrot.lane.b32.xlu0 %v1033, 16
        %v1723 = vpop.permute.xlu0 %1722
        %1724 = vrot.lane.b32.xlu0 %v1034, 16
        %v1725 = vpop.permute.xlu0 %1724
        %1726 = vrot.lane.b32.xlu0 %v1035, 16
        %v1727 = vpop.permute.xlu0 %1726
        %1728 = vrot.lane.b32.xlu0 %v1036, 16
        %v1729 = vpop.permute.xlu0 %1728
        %1730 = vrot.lane.b32.xlu0 %v1037, 16
        %v1731 = vpop.permute.xlu0 %1730
        %1732 = vrot.lane.b32.xlu0 %v1038, 16
        %v1733 = vpop.permute.xlu0 %1732
        %1734 = vrot.lane.b32.xlu0 %v1039, 16
        %v1735 = vpop.permute.xlu0 %1734
        %1736 = vrot.lane.b32.xlu0 %v1040, 16
        %v1737 = vpop.permute.xlu0 %1736
        %1738 = vrot.lane.b32.xlu0 %v1041, 16
        %v1739 = vpop.permute.xlu0 %1738
        %1740 = vrot.lane.b32.xlu0 %v1042, 16
        %v1741 = vpop.permute.xlu0 %1740
        %1742 = vrot.lane.b32.xlu0 %v1043, 16
        %v1743 = vpop.permute.xlu0 %1742
        %1744 = vrot.lane.b32.xlu0 %v1044, 16
        %v1745 = vpop.permute.xlu0 %1744
        %1746 = vrot.lane.b32.xlu0 %v1045, 16
        %v1747 = vpop.permute.xlu0 %1746
        %1748 = vrot.lane.b32.xlu0 %v1046, 16
        %v1749 = vpop.permute.xlu0 %1748
        %1750 = vrot.lane.b32.xlu0 %v1047, 16
        %v1751 = vpop.permute.xlu0 %1750
        %1752 = vrot.lane.b32.xlu0 %v1048, 16
        %v1753 = vpop.permute.xlu0 %1752
        %1754 = vrot.lane.b32.xlu0 %v1049, 16
        %v1755 = vpop.permute.xlu0 %1754
        %1756 = vrot.lane.b32.xlu0 %v1050, 16
        %v1757 = vpop.permute.xlu0 %1756
        %1758 = vrot.lane.b32.xlu0 %v1051, 16
        %v1759 = vpop.permute.xlu0 %1758
        %1760 = vrot.lane.b32.xlu0 %v1052, 16
        %v1761 = vpop.permute.xlu0 %1760
        %1762 = vrot.lane.b32.xlu0 %v1053, 16
        %v1763 = vpop.permute.xlu0 %1762
        %1764 = vrot.lane.b32.xlu0 %v1054, 16
        %v1765 = vpop.permute.xlu0 %1764
        %1766 = vrot.lane.b32.xlu0 %v1055, 16
        %v1767 = vpop.permute.xlu0 %1766
        %1768 = vrot.lane.b32.xlu0 %v1056, 16
        %v1769 = vpop.permute.xlu0 %1768
        %1770 = vrot.lane.b32.xlu0 %v1057, 16
        %v1771 = vpop.permute.xlu0 %1770
        %1772 = vrot.lane.b32.xlu0 %v1220, 16
        %v1773 = vpop.permute.xlu0 %1772
        %1774 = vrot.lane.b32.xlu0 %v1221, 16
        %v1775 = vpop.permute.xlu0 %1774
        %1840 = vrot.lane.b32.xlu0 %v1224, 20
        %v1841 = vpop.permute.xlu0 %1840
        %1842 = vrot.lane.b32.xlu0 %v1225, 20
        %v1843 = vpop.permute.xlu0 %1842
        %1844 = vrot.lane.b32.xlu0 %v1226, 20
        %v1845 = vpop.permute.xlu0 %1844
        %1846 = vrot.lane.b32.xlu0 %v1227, 20
        %v1847 = vpop.permute.xlu0 %1846
        %1848 = vrot.lane.b32.xlu0 %v1228, 20
        %v1849 = vpop.permute.xlu0 %1848
        %1850 = vrot.lane.b32.xlu0 %v1229, 20
        %v1851 = vpop.permute.xlu0 %1850
        %1852 = vrot.lane.b32.xlu0 %v1230, 20
        %v1853 = vpop.permute.xlu0 %1852
        %1854 = vrot.lane.b32.xlu0 %v1231, 20
        %v1855 = vpop.permute.xlu0 %1854
        %1856 = vrot.lane.b32.xlu0 %v1232, 20
        %v1857 = vpop.permute.xlu0 %1856
        %1858 = vrot.lane.b32.xlu0 %v1233, 20
        %v1859 = vpop.permute.xlu0 %1858
        %1860 = vrot.lane.b32.xlu0 %v1234, 20
        %v1861 = vpop.permute.xlu0 %1860
        %1862 = vrot.lane.b32.xlu0 %v1235, 20
        %v1863 = vpop.permute.xlu0 %1862
        %1864 = vrot.lane.b32.xlu0 %v1236, 20
        %v1865 = vpop.permute.xlu0 %1864
        %1866 = vrot.lane.b32.xlu0 %v1237, 20
        %v1867 = vpop.permute.xlu0 %1866
        %1868 = vrot.lane.b32.xlu0 %v1238, 20
        %v1869 = vpop.permute.xlu0 %1868
        %1870 = vrot.lane.b32.xlu0 %v1239, 20
        %v1871 = vpop.permute.xlu0 %1870
        %1872 = vrot.lane.b32.xlu0 %v1240, 20
        %v1873 = vpop.permute.xlu0 %1872
        %1874 = vrot.lane.b32.xlu0 %v1241, 20
        %v1875 = vpop.permute.xlu0 %1874
        %1876 = vrot.lane.b32.xlu0 %v1242, 20
        %v1877 = vpop.permute.xlu0 %1876
        %1878 = vrot.lane.b32.xlu0 %v1243, 20
        %v1879 = vpop.permute.xlu0 %1878
        %1880 = vrot.lane.b32.xlu0 %v1244, 20
        %v1881 = vpop.permute.xlu0 %1880
        %1882 = vrot.lane.b32.xlu0 %v1245, 20
        %v1883 = vpop.permute.xlu0 %1882
        %1884 = vrot.lane.b32.xlu0 %v1246, 20
        %v1885 = vpop.permute.xlu0 %1884
        %1886 = vrot.lane.b32.xlu0 %v1247, 20
        %v1887 = vpop.permute.xlu0 %1886
        %1888 = vrot.lane.b32.xlu0 %v1248, 20
        %v1889 = vpop.permute.xlu0 %1888
        %1890 = vrot.lane.b32.xlu0 %v1249, 20
        %v1891 = vpop.permute.xlu0 %1890
        %1892 = vrot.lane.b32.xlu0 %v1250, 20
        %v1893 = vpop.permute.xlu0 %1892
        %1894 = vrot.lane.b32.xlu0 %v1251, 20
        %v1895 = vpop.permute.xlu0 %1894
        %1896 = vrot.lane.b32.xlu0 %v1252, 20
        %v1897 = vpop.permute.xlu0 %1896
        %1898 = vrot.lane.b32.xlu0 %v1253, 20
        %v1899 = vpop.permute.xlu0 %1898
        %1900 = vrot.lane.b32.xlu0 %v1254, 20
        %v1901 = vpop.permute.xlu0 %1900
        %1902 = vrot.lane.b32.xlu0 %v1255, 20
        %v1903 = vpop.permute.xlu0 %1902
        %1968 = vrot.lane.b32.xlu0 %v1258, 24
        %v1969 = vpop.permute.xlu0 %1968
        %1970 = vrot.lane.b32.xlu0 %v1259, 24
        %v1971 = vpop.permute.xlu0 %1970
        %1972 = vrot.lane.b32.xlu0 %v1260, 24
        %v1973 = vpop.permute.xlu0 %1972
        %1974 = vrot.lane.b32.xlu0 %v1261, 24
        %v1975 = vpop.permute.xlu0 %1974
        %1976 = vrot.lane.b32.xlu0 %v1262, 24
        %v1977 = vpop.permute.xlu0 %1976
        %1978 = vrot.lane.b32.xlu0 %v1263, 24
        %v1979 = vpop.permute.xlu0 %1978
        %1980 = vrot.lane.b32.xlu0 %v1264, 24
        %v1981 = vpop.permute.xlu0 %1980
        %1982 = vrot.lane.b32.xlu0 %v1265, 24
        %v1983 = vpop.permute.xlu0 %1982
        %1984 = vrot.lane.b32.xlu0 %v1266, 24
        %v1985 = vpop.permute.xlu0 %1984
        %1986 = vrot.lane.b32.xlu0 %v1267, 24
        %v1987 = vpop.permute.xlu0 %1986
        %1988 = vrot.lane.b32.xlu0 %v1268, 24
        %v1989 = vpop.permute.xlu0 %1988
        %1990 = vrot.lane.b32.xlu0 %v1269, 24
        %v1991 = vpop.permute.xlu0 %1990
        %1992 = vrot.lane.b32.xlu0 %v1270, 24
        %v1993 = vpop.permute.xlu0 %1992
        %1994 = vrot.lane.b32.xlu0 %v1271, 24
        %v1995 = vpop.permute.xlu0 %1994
        %1996 = vrot.lane.b32.xlu0 %v1272, 24
        %v1997 = vpop.permute.xlu0 %1996
        %1998 = vrot.lane.b32.xlu0 %v1273, 24
        %v1999 = vpop.permute.xlu0 %1998
        %2000 = vrot.lane.b32.xlu0 %v1274, 24
        %v2001 = vpop.permute.xlu0 %2000
        %2002 = vrot.lane.b32.xlu0 %v1275, 24
        %v2003 = vpop.permute.xlu0 %2002
        %2004 = vrot.lane.b32.xlu0 %v1276, 24
        %v2005 = vpop.permute.xlu0 %2004
        %2006 = vrot.lane.b32.xlu0 %v1277, 24
        %v2007 = vpop.permute.xlu0 %2006
        %2008 = vrot.lane.b32.xlu0 %v1278, 24
        %v2009 = vpop.permute.xlu0 %2008
        %2010 = vrot.lane.b32.xlu0 %v1279, 24
        %v2011 = vpop.permute.xlu0 %2010
        %2012 = vrot.lane.b32.xlu0 %v1280, 24
        %v2013 = vpop.permute.xlu0 %2012
        %2014 = vrot.lane.b32.xlu0 %v1281, 24
        %v2015 = vpop.permute.xlu0 %2014
        %2016 = vrot.lane.b32.xlu0 %v1282, 24
        %v2017 = vpop.permute.xlu0 %2016
        %2018 = vrot.lane.b32.xlu0 %v1283, 24
        %v2019 = vpop.permute.xlu0 %2018
        %2020 = vrot.lane.b32.xlu0 %v1284, 24
        %v2021 = vpop.permute.xlu0 %2020
        %2022 = vrot.lane.b32.xlu0 %v1285, 24
        %v2023 = vpop.permute.xlu0 %2022
        %2024 = vrot.lane.b32.xlu0 %v1286, 24
        %v2025 = vpop.permute.xlu0 %2024
        %2026 = vrot.lane.b32.xlu0 %v1287, 24
        %v2027 = vpop.permute.xlu0 %2026
        %2028 = vrot.lane.b32.xlu0 %v1288, 24
        %v2029 = vpop.permute.xlu0 %2028
        %2030 = vrot.lane.b32.xlu0 %v1289, 24
        %v2031 = vpop.permute.xlu0 %2030
        %2066 = vrot.lane.b32.xlu0 %v1030, 28
        %v2067 = vpop.permute.xlu0 %2066
        %2068 = vrot.lane.b32.xlu0 %v1031, 28
        %v2069 = vpop.permute.xlu0 %2068
        %2070 = vrot.lane.b32.xlu0 %v1032, 28
        %v2071 = vpop.permute.xlu0 %2070
        %2072 = vrot.lane.b32.xlu0 %v1033, 28
        %v2073 = vpop.permute.xlu0 %2072
        %2074 = vrot.lane.b32.xlu0 %v1034, 28
        %v2075 = vpop.permute.xlu0 %2074
        %2076 = vrot.lane.b32.xlu0 %v1035, 28
        %v2077 = vpop.permute.xlu0 %2076
        %2078 = vrot.lane.b32.xlu0 %v1036, 28
        %v2079 = vpop.permute.xlu0 %2078
        %2080 = vrot.lane.b32.xlu0 %v1037, 28
        %v2081 = vpop.permute.xlu0 %2080
        %2082 = vrot.lane.b32.xlu0 %v1038, 28
        %v2083 = vpop.permute.xlu0 %2082
        %2084 = vrot.lane.b32.xlu0 %v1039, 28
        %v2085 = vpop.permute.xlu0 %2084
        %2086 = vrot.lane.b32.xlu0 %v1040, 28
        %v2087 = vpop.permute.xlu0 %2086
        %2088 = vrot.lane.b32.xlu0 %v1041, 28
        %v2089 = vpop.permute.xlu0 %2088
        %2090 = vrot.lane.b32.xlu0 %v1042, 28
        %v2091 = vpop.permute.xlu0 %2090
        %2092 = vrot.lane.b32.xlu0 %v1043, 28
        %v2093 = vpop.permute.xlu0 %2092
        %2094 = vrot.lane.b32.xlu0 %v1044, 28
        %v2095 = vpop.permute.xlu0 %2094
        %2096 = vrot.lane.b32.xlu0 %v1045, 28
        %v2097 = vpop.permute.xlu0 %2096
        %2098 = vrot.lane.b32.xlu0 %v1046, 28
        %v2099 = vpop.permute.xlu0 %2098
        %2100 = vrot.lane.b32.xlu0 %v1047, 28
        %v2101 = vpop.permute.xlu0 %2100
        %2102 = vrot.lane.b32.xlu0 %v1048, 28
        %v2103 = vpop.permute.xlu0 %2102
        %2104 = vrot.lane.b32.xlu0 %v1049, 28
        %v2105 = vpop.permute.xlu0 %2104
        %2106 = vrot.lane.b32.xlu0 %v1050, 28
        %v2107 = vpop.permute.xlu0 %2106
        %2108 = vrot.lane.b32.xlu0 %v1051, 28
        %v2109 = vpop.permute.xlu0 %2108
        %2110 = vrot.lane.b32.xlu0 %v1052, 28
        %v2111 = vpop.permute.xlu0 %2110
        %2112 = vrot.lane.b32.xlu0 %v1053, 28
        %v2113 = vpop.permute.xlu0 %2112
        %2114 = vrot.lane.b32.xlu0 %v1054, 28
        %v2115 = vpop.permute.xlu0 %2114
        %2116 = vrot.lane.b32.xlu0 %v1055, 28
        %v2117 = vpop.permute.xlu0 %2116
        %2118 = vrot.lane.b32.xlu0 %v1056, 28
        %v2119 = vpop.permute.xlu0 %2118
        %2120 = vrot.lane.b32.xlu0 %v1057, 28
        %v2121 = vpop.permute.xlu0 %2120
        %2122 = vrot.lane.b32.xlu0 %v1220, 28
        %v2123 = vpop.permute.xlu0 %2122
        %2124 = vrot.lane.b32.xlu0 %v1221, 28
        %v2125 = vpop.permute.xlu0 %2124
        %2126 = vrot.lane.b32.xlu0 %v1290, 28
        %v2127 = vpop.permute.xlu0 %2126
        %2128 = vrot.lane.b32.xlu0 %v1291, 28
        %v2129 = vpop.permute.xlu0 %2128
        %2194 = vrot.lane.b32.xlu0 %v1294, 32
        %v2195 = vpop.permute.xlu0 %2194
        %2196 = vrot.lane.b32.xlu0 %v1295, 32
        %v2197 = vpop.permute.xlu0 %2196
        %2198 = vrot.lane.b32.xlu0 %v1296, 32
        %v2199 = vpop.permute.xlu0 %2198
        %2200 = vrot.lane.b32.xlu0 %v1297, 32
        %v2201 = vpop.permute.xlu0 %2200
        %2202 = vrot.lane.b32.xlu0 %v1298, 32
        %v2203 = vpop.permute.xlu0 %2202
        %2204 = vrot.lane.b32.xlu0 %v1299, 32
        %v2205 = vpop.permute.xlu0 %2204
        %2206 = vrot.lane.b32.xlu0 %v1300, 32
        %v2207 = vpop.permute.xlu0 %2206
        %2208 = vrot.lane.b32.xlu0 %v1301, 32
        %v2209 = vpop.permute.xlu0 %2208
        %2210 = vrot.lane.b32.xlu0 %v1302, 32
        %v2211 = vpop.permute.xlu0 %2210
        %2212 = vrot.lane.b32.xlu0 %v1303, 32
        %v2213 = vpop.permute.xlu0 %2212
        %2214 = vrot.lane.b32.xlu0 %v1304, 32
        %v2215 = vpop.permute.xlu0 %2214
        %2216 = vrot.lane.b32.xlu0 %v1305, 32
        %v2217 = vpop.permute.xlu0 %2216
        %2218 = vrot.lane.b32.xlu0 %v1306, 32
        %v2219 = vpop.permute.xlu0 %2218
        %2220 = vrot.lane.b32.xlu0 %v1307, 32
        %v2221 = vpop.permute.xlu0 %2220
        %2222 = vrot.lane.b32.xlu0 %v1308, 32
        %v2223 = vpop.permute.xlu0 %2222
        %2224 = vrot.lane.b32.xlu0 %v1309, 32
        %v2225 = vpop.permute.xlu0 %2224
        %2226 = vrot.lane.b32.xlu0 %v1310, 32
        %v2227 = vpop.permute.xlu0 %2226
        %2228 = vrot.lane.b32.xlu0 %v1311, 32
        %v2229 = vpop.permute.xlu0 %2228
        %2230 = vrot.lane.b32.xlu0 %v1312, 32
        %v2231 = vpop.permute.xlu0 %2230
        %2232 = vrot.lane.b32.xlu0 %v1313, 32
        %v2233 = vpop.permute.xlu0 %2232
        %2234 = vrot.lane.b32.xlu0 %v1314, 32
        %v2235 = vpop.permute.xlu0 %2234
        %2236 = vrot.lane.b32.xlu0 %v1315, 32
        %v2237 = vpop.permute.xlu0 %2236
        %2238 = vrot.lane.b32.xlu0 %v1316, 32
        %v2239 = vpop.permute.xlu0 %2238
        %2240 = vrot.lane.b32.xlu0 %v1317, 32
        %v2241 = vpop.permute.xlu0 %2240
        %2242 = vrot.lane.b32.xlu0 %v1318, 32
        %v2243 = vpop.permute.xlu0 %2242
        %2244 = vrot.lane.b32.xlu0 %v1319, 32
        %v2245 = vpop.permute.xlu0 %2244
        %2246 = vrot.lane.b32.xlu0 %v1320, 32
        %v2247 = vpop.permute.xlu0 %2246
        %2248 = vrot.lane.b32.xlu0 %v1321, 32
        %v2249 = vpop.permute.xlu0 %2248
        %2250 = vrot.lane.b32.xlu0 %v1322, 32
        %v2251 = vpop.permute.xlu0 %2250
        %2252 = vrot.lane.b32.xlu0 %v1323, 32
        %v2253 = vpop.permute.xlu0 %2252
        %2254 = vrot.lane.b32.xlu0 %v1324, 32
        %v2255 = vpop.permute.xlu0 %2254
        %2256 = vrot.lane.b32.xlu0 %v1325, 32
        %v2257 = vpop.permute.xlu0 %2256
        %v2290 = vsel %vm333, %v994, %v1359
        %v2291 = vsel %vm333, %v995, %v1361
        %v2292 = vsel %vm333, %v996, %v1363
        %v2293 = vsel %vm333, %v997, %v1365
        %v2294 = vsel %vm333, %v998, %v1367
        %v2295 = vsel %vm333, %v999, %v1369
        %v2296 = vsel %vm333, %v1000, %v1371
        %v2297 = vsel %vm333, %v1001, %v1373
        %v2298 = vsel %vm333, %v1002, %v1375
        %v2299 = vsel %vm333, %v1003, %v1377
        %v2300 = vsel %vm333, %v1004, %v1379
        %v2301 = vsel %vm333, %v1005, %v1381
        %v2302 = vsel %vm333, %v1006, %v1383
        %v2303 = vsel %vm333, %v1007, %v1385
        %v2304 = vsel %vm333, %v1008, %v1387
        %v2305 = vsel %vm333, %v1009, %v1389
        %v2306 = vsel %vm333, %v1010, %v1391
        %v2307 = vsel %vm333, %v1011, %v1393
        %v2308 = vsel %vm333, %v1012, %v1395
        %v2309 = vsel %vm333, %v1013, %v1397
        %v2310 = vsel %vm333, %v1014, %v1399
        %v2311 = vsel %vm333, %v1015, %v1401
        %v2312 = vsel %vm333, %v1016, %v1403
        %v2313 = vsel %vm333, %v1017, %v1405
        %v2314 = vsel %vm333, %v1018, %v1407
        %v2315 = vsel %vm333, %v1019, %v1409
        %v2316 = vsel %vm333, %v1020, %v1411
        %v2317 = vsel %vm333, %v1021, %v1413
        %v2318 = vsel %vm333, %v1022, %v1415
        %v2319 = vsel %vm333, %v1023, %v1417
        %v2320 = vsel %vm333, %v1024, %v1419
        %v2321 = vsel %vm333, %v1025, %v1421
        %vm2322 = vcmask 64512
        %v2323 = vsel %vm2322, %v2290, %v1487
        %v2324 = vsel %vm2322, %v2291, %v1489
        %v2325 = vsel %vm2322, %v2292, %v1491
        %v2326 = vsel %vm2322, %v2293, %v1493
        %v2327 = vsel %vm2322, %v2294, %v1495
        %v2328 = vsel %vm2322, %v2295, %v1497
        %v2329 = vsel %vm2322, %v2296, %v1499
        %v2330 = vsel %vm2322, %v2297, %v1501
        %v2331 = vsel %vm2322, %v2298, %v1503
        %v2332 = vsel %vm2322, %v2299, %v1505
        %v2333 = vsel %vm2322, %v2300, %v1507
        %v2334 = vsel %vm2322, %v2301, %v1509
        %v2335 = vsel %vm2322, %v2302, %v1511
        %v2336 = vsel %vm2322, %v2303, %v1513
        %v2337 = vsel %vm2322, %v2304, %v1515
        %v2338 = vsel %vm2322, %v2305, %v1517
        %v2339 = vsel %vm2322, %v2306, %v1519
        %v2340 = vsel %vm2322, %v2307, %v1521
        %v2341 = vsel %vm2322, %v2308, %v1523
        %v2342 = vsel %vm2322, %v2309, %v1525
        %v2343 = vsel %vm2322, %v2310, %v1527
        %v2344 = vsel %vm2322, %v2311, %v1529
        %v2345 = vsel %vm2322, %v2312, %v1531
        %v2346 = vsel %vm2322, %v2313, %v1533
        %v2347 = vsel %vm2322, %v2314, %v1535
        %v2348 = vsel %vm2322, %v2315, %v1537
        %v2349 = vsel %vm2322, %v2316, %v1539
        %v2350 = vsel %vm2322, %v2317, %v1541
        %v2351 = vsel %vm2322, %v2318, %v1543
        %v2352 = vsel %vm2322, %v2319, %v1545
        %v2353 = vsel %vm2322, %v2320, %v1547
        %v2354 = vsel %vm2322, %v2321, %v1549
        %vm2355 = vcmask 97280
        %v2356 = vsel %vm2355, %v2323, %v1615
        %v2357 = vsel %vm2355, %v2324, %v1617
        %v2358 = vsel %vm2355, %v2325, %v1619
        %v2359 = vsel %vm2355, %v2326, %v1621
        %v2360 = vsel %vm2355, %v2327, %v1623
        %v2361 = vsel %vm2355, %v2328, %v1625
        %v2362 = vsel %vm2355, %v2329, %v1627
        %v2363 = vsel %vm2355, %v2330, %v1629
        %v2364 = vsel %vm2355, %v2331, %v1631
        %v2365 = vsel %vm2355, %v2332, %v1633
        %v2366 = vsel %vm2355, %v2333, %v1635
        %v2367 = vsel %vm2355, %v2334, %v1637
        %v2368 = vsel %vm2355, %v2335, %v1639
        %v2369 = vsel %vm2355, %v2336, %v1641
        %v2370 = vsel %vm2355, %v2337, %v1643
        %v2371 = vsel %vm2355, %v2338, %v1645
        %v2372 = vsel %vm2355, %v2339, %v1647
        %v2373 = vsel %vm2355, %v2340, %v1649
        %v2374 = vsel %vm2355, %v2341, %v1651
        %v2375 = vsel %vm2355, %v2342, %v1653
        %v2376 = vsel %vm2355, %v2343, %v1655
        %v2377 = vsel %vm2355, %v2344, %v1657
        %v2378 = vsel %vm2355, %v2345, %v1659
        %v2379 = vsel %vm2355, %v2346, %v1661
        %v2380 = vsel %vm2355, %v2347, %v1663
        %v2381 = vsel %vm2355, %v2348, %v1665
        %v2382 = vsel %vm2355, %v2349, %v1667
        %v2383 = vsel %vm2355, %v2350, %v1669
        %v2384 = vsel %vm2355, %v2351, %v1671
        %v2385 = vsel %vm2355, %v2352, %v1673
        %v2386 = vsel %vm2355, %v2353, %v1675
        %v2387 = vsel %vm2355, %v2354, %v1677
        %v2388 = vsel %vm340, %v2356, %v1713
        %v2389 = vsel %vm340, %v2357, %v1715
        %v2390 = vsel %vm340, %v2358, %v1717
        %v2391 = vsel %vm340, %v2359, %v1719
        %v2392 = vsel %vm340, %v2360, %v1721
        %v2393 = vsel %vm340, %v2361, %v1723
        %v2394 = vsel %vm340, %v2362, %v1725
        %v2395 = vsel %vm340, %v2363, %v1727
        %v2396 = vsel %vm340, %v2364, %v1729
        %v2397 = vsel %vm340, %v2365, %v1731
        %v2398 = vsel %vm340, %v2366, %v1733
        %v2399 = vsel %vm340, %v2367, %v1735
        %v2400 = vsel %vm340, %v2368, %v1737
        %v2401 = vsel %vm340, %v2369, %v1739
        %v2402 = vsel %vm340, %v2370, %v1741
        %v2403 = vsel %vm340, %v2371, %v1743
        %v2404 = vsel %vm340, %v2372, %v1745
        %v2405 = vsel %vm340, %v2373, %v1747
        %v2406 = vsel %vm340, %v2374, %v1749
        %v2407 = vsel %vm340, %v2375, %v1751
        %v2408 = vsel %vm340, %v2376, %v1753
        %v2409 = vsel %vm340, %v2377, %v1755
        %v2410 = vsel %vm340, %v2378, %v1757
        %v2411 = vsel %vm340, %v2379, %v1759
        %v2412 = vsel %vm340, %v2380, %v1761
        %v2413 = vsel %vm340, %v2381, %v1763
        %v2414 = vsel %vm340, %v2382, %v1765
        %v2415 = vsel %vm340, %v2383, %v1767
        %v2416 = vsel %vm340, %v2384, %v1769
        %v2417 = vsel %vm340, %v2385, %v1771
        %v2418 = vsel %vm340, %v2386, %v1773
        %v2419 = vsel %vm340, %v2387, %v1775
        %vm2420 = vcmask 162816
        %v2421 = vsel %vm2420, %v2388, %v1841
        %v2422 = vsel %vm2420, %v2389, %v1843
        %v2423 = vsel %vm2420, %v2390, %v1845
        %v2424 = vsel %vm2420, %v2391, %v1847
        %v2425 = vsel %vm2420, %v2392, %v1849
        %v2426 = vsel %vm2420, %v2393, %v1851
        %v2427 = vsel %vm2420, %v2394, %v1853
        %v2428 = vsel %vm2420, %v2395, %v1855
        %v2429 = vsel %vm2420, %v2396, %v1857
        %v2430 = vsel %vm2420, %v2397, %v1859
        %v2431 = vsel %vm2420, %v2398, %v1861
        %v2432 = vsel %vm2420, %v2399, %v1863
        %v2433 = vsel %vm2420, %v2400, %v1865
        %v2434 = vsel %vm2420, %v2401, %v1867
        %v2435 = vsel %vm2420, %v2402, %v1869
        %v2436 = vsel %vm2420, %v2403, %v1871
        %v2437 = vsel %vm2420, %v2404, %v1873
        %v2438 = vsel %vm2420, %v2405, %v1875
        %v2439 = vsel %vm2420, %v2406, %v1877
        %v2440 = vsel %vm2420, %v2407, %v1879
        %v2441 = vsel %vm2420, %v2408, %v1881
        %v2442 = vsel %vm2420, %v2409, %v1883
        %v2443 = vsel %vm2420, %v2410, %v1885
        %v2444 = vsel %vm2420, %v2411, %v1887
        %v2445 = vsel %vm2420, %v2412, %v1889
        %v2446 = vsel %vm2420, %v2413, %v1891
        %v2447 = vsel %vm2420, %v2414, %v1893
        %v2448 = vsel %vm2420, %v2415, %v1895
        %v2449 = vsel %vm2420, %v2416, %v1897
        %v2450 = vsel %vm2420, %v2417, %v1899
        %v2451 = vsel %vm2420, %v2418, %v1901
        %v2452 = vsel %vm2420, %v2419, %v1903
        %vm2453 = vcmask 195584
        %v2454 = vsel %vm2453, %v2421, %v1969
        %v2455 = vsel %vm2453, %v2422, %v1971
        %v2456 = vsel %vm2453, %v2423, %v1973
        %v2457 = vsel %vm2453, %v2424, %v1975
        %v2458 = vsel %vm2453, %v2425, %v1977
        %v2459 = vsel %vm2453, %v2426, %v1979
        %v2460 = vsel %vm2453, %v2427, %v1981
        %v2461 = vsel %vm2453, %v2428, %v1983
        %v2462 = vsel %vm2453, %v2429, %v1985
        %v2463 = vsel %vm2453, %v2430, %v1987
        %v2464 = vsel %vm2453, %v2431, %v1989
        %v2465 = vsel %vm2453, %v2432, %v1991
        %v2466 = vsel %vm2453, %v2433, %v1993
        %v2467 = vsel %vm2453, %v2434, %v1995
        %v2468 = vsel %vm2453, %v2435, %v1997
        %v2469 = vsel %vm2453, %v2436, %v1999
        %v2470 = vsel %vm2453, %v2437, %v2001
        %v2471 = vsel %vm2453, %v2438, %v2003
        %v2472 = vsel %vm2453, %v2439, %v2005
        %v2473 = vsel %vm2453, %v2440, %v2007
        %v2474 = vsel %vm2453, %v2441, %v2009
        %v2475 = vsel %vm2453, %v2442, %v2011
        %v2476 = vsel %vm2453, %v2443, %v2013
        %v2477 = vsel %vm2453, %v2444, %v2015
        %v2478 = vsel %vm2453, %v2445, %v2017
        %v2479 = vsel %vm2453, %v2446, %v2019
        %v2480 = vsel %vm2453, %v2447, %v2021
        %v2481 = vsel %vm2453, %v2448, %v2023
        %v2482 = vsel %vm2453, %v2449, %v2025
        %v2483 = vsel %vm2453, %v2450, %v2027
        %v2484 = vsel %vm2453, %v2451, %v2029
        %v2485 = vsel %vm2453, %v2452, %v2031
        %vm2486 = vcmask 228352
        %v2487 = vsel %vm2486, %v2454, %v2067
        %v2488 = vsel %vm2486, %v2455, %v2069
        %v2489 = vsel %vm2486, %v2456, %v2071
        %v2490 = vsel %vm2486, %v2457, %v2073
        %v2491 = vsel %vm2486, %v2458, %v2075
        %v2492 = vsel %vm2486, %v2459, %v2077
        %v2493 = vsel %vm2486, %v2460, %v2079
        %v2494 = vsel %vm2486, %v2461, %v2081
        %v2495 = vsel %vm2486, %v2462, %v2083
        %v2496 = vsel %vm2486, %v2463, %v2085
        %v2497 = vsel %vm2486, %v2464, %v2087
        %v2498 = vsel %vm2486, %v2465, %v2089
        %v2499 = vsel %vm2486, %v2466, %v2091
        %v2500 = vsel %vm2486, %v2467, %v2093
        %v2501 = vsel %vm2486, %v2468, %v2095
        %v2502 = vsel %vm2486, %v2469, %v2097
        %v2503 = vsel %vm2486, %v2470, %v2099
        %v2504 = vsel %vm2486, %v2471, %v2101
        %v2505 = vsel %vm2486, %v2472, %v2103
        %v2506 = vsel %vm2486, %v2473, %v2105
        %v2507 = vsel %vm2486, %v2474, %v2107
        %v2508 = vsel %vm2486, %v2475, %v2109
        %v2509 = vsel %vm2486, %v2476, %v2111
        %v2510 = vsel %vm2486, %v2477, %v2113
        %v2511 = vsel %vm2486, %v2478, %v2115
        %v2512 = vsel %vm2486, %v2479, %v2117
        %v2513 = vsel %vm2486, %v2480, %v2119
        %v2514 = vsel %vm2486, %v2481, %v2121
        %v2515 = vsel %vm2486, %v2482, %v2123
        %v2516 = vsel %vm2486, %v2483, %v2125
        %v2517 = vsel %vm2486, %v2484, %v2127
        %v2518 = vsel %vm2486, %v2485, %v2129
        %vm2519 = vcmask 261120
        %v2520 = vsel %vm2519, %v2487, %v2195
        %v2521 = vsel %vm2519, %v2488, %v2197
        %v2522 = vsel %vm2519, %v2489, %v2199
        %v2523 = vsel %vm2519, %v2490, %v2201
        %v2524 = vsel %vm2519, %v2491, %v2203
        %v2525 = vsel %vm2519, %v2492, %v2205
        %v2526 = vsel %vm2519, %v2493, %v2207
        %v2527 = vsel %vm2519, %v2494, %v2209
        %v2528 = vsel %vm2519, %v2495, %v2211
        %v2529 = vsel %vm2519, %v2496, %v2213
        %v2530 = vsel %vm2519, %v2497, %v2215
        %v2531 = vsel %vm2519, %v2498, %v2217
        %v2532 = vsel %vm2519, %v2499, %v2219
        %v2533 = vsel %vm2519, %v2500, %v2221
        %v2534 = vsel %vm2519, %v2501, %v2223
        %v2535 = vsel %vm2519, %v2502, %v2225
        %v2536 = vsel %vm2519, %v2503, %v2227
        %v2537 = vsel %vm2519, %v2504, %v2229
        %v2538 = vsel %vm2519, %v2505, %v2231
        %v2539 = vsel %vm2519, %v2506, %v2233
        %v2540 = vsel %vm2519, %v2507, %v2235
        %v2541 = vsel %vm2519, %v2508, %v2237
        %v2542 = vsel %vm2519, %v2509, %v2239
        %v2543 = vsel %vm2519, %v2510, %v2241
        %v2544 = vsel %vm2519, %v2511, %v2243
        %v2545 = vsel %vm2519, %v2512, %v2245
        %v2546 = vsel %vm2519, %v2513, %v2247
        %v2547 = vsel %vm2519, %v2514, %v2249
        %v2548 = vsel %vm2519, %v2515, %v2251
        %v2549 = vsel %vm2519, %v2516, %v2253
        %v2550 = vsel %vm2519, %v2517, %v2255
        %v2551 = vsel %vm2519, %v2518, %v2257
        %v2552 = vpack.c.bf16 %v2521, %v2520
        %v2553 = vpack.c.bf16 %v2523, %v2522
        %v2554 = vpack.c.bf16 %v2525, %v2524
        %v2555 = vpack.c.bf16 %v2527, %v2526
        %v2556 = vpack.c.bf16 %v2529, %v2528
        %v2557 = vpack.c.bf16 %v2531, %v2530
        %v2558 = vpack.c.bf16 %v2533, %v2532
        %v2559 = vpack.c.bf16 %v2535, %v2534
        %v2560 = vpack.c.bf16 %v2537, %v2536
        %v2561 = vpack.c.bf16 %v2539, %v2538
        %v2562 = vpack.c.bf16 %v2541, %v2540
        %v2563 = vpack.c.bf16 %v2543, %v2542
        %v2564 = vpack.c.bf16 %v2545, %v2544
        %v2565 = vpack.c.bf16 %v2547, %v2546
        %v2566 = vpack.c.bf16 %v2549, %v2548
        %v2567 = vpack.c.bf16 %v2551, %v2550
        %v2568 = vld [vmem:[%s1] sm:$0xf]
        %v2569 = vld [vmem:[%s1 + $0x4] sm:$0xf]
        %v2570 = vld [vmem:[%s1 + $0x8] sm:$0xf]
        %v2571 = vld [vmem:[%s1 + $0xc] sm:$0xf]
        %v2572 = vld [vmem:[%s1 + $0x10] sm:$0x3]
        %v2573 = vld [vmem:[%s2] sm:$0x1]
        %v2575 = vperm.slane %v2573, 0
        %v2582 = vunpack.c.l.b16 %v2568
        %v2583 = vunpack.c.l.b16 %v2569
        %v2584 = vunpack.c.l.b16 %v2570
        %v2585 = vunpack.c.l.b16 %v2571
        %v2586 = vunpack.c.l.b16 %v2572
        %v2587 = vpack.c.b16 %v2583, %v2582
        %v2588 = vpack.c.b16 %v2585, %v2584
        %v2589 = vpack.c.b16 %v2586, %v2586
        %vm2592 = vcmask 293888
        %v2594 = vsel %vm2592, %v2552, 0
        %v2597 = vsel %vm2592, %v2553, 0
        %v2600 = vsel %vm2592, %v2554, 0
        %v2603 = vsel %vm2592, %v2555, 0
        %v2606 = vsel %vm2592, %v2556, 0
        %v2609 = vsel %vm2592, %v2557, 0
        %v2612 = vsel %vm2592, %v2558, 0
        %v2615 = vsel %vm2592, %v2559, 0
        %v2618 = vsel %vm2592, %v2560, 0
        %v2621 = vsel %vm2592, %v2561, 0
        %v2624 = vsel %vm2592, %v2562, 0
        %v2627 = vsel %vm2592, %v2563, 0
        %v2630 = vsel %vm2592, %v2564, 0
        %v2633 = vsel %vm2592, %v2565, 0
        %v2636 = vsel %vm2592, %v2566, 0
        %v2639 = vsel %vm2592, %v2567, 0
        %vm2641 = vcmask 1041408
        %v2643 = vsel %vm2641, %v2589, 0
        %2645 = vmatpush.bf16.msra.mxu0 0
        %2646 = vmatpush.bf16.msra.mxu0 0
        %2647 = vmatpush.bf16.msra.mxu0 0
        %2648 = vmatpush.bf16.msra.mxu0 0
        %2649 = vmatpush.bf16.msra.mxu0 0
        %2650 = vmatpush.bf16.msra.mxu0 %v2643
        %2651 = vmatpush.bf16.msra.mxu0 %v2588
        %2652 = vmatpush.bf16.msra.mxu0 %v2587
        %2653 = vmatmul.bf16.gmra.mxu0 %v2594
        %v2654 = vpop.f32.mrf.mxu0
        %v2655 = vadd.f32 %v2575, %v2654
        %v2656 = vpop.f32.mrf.mxu0
        %v2657 = vadd.f32 %v2575, %v2656
        %2658 = vmatmul.bf16.gmra.mxu0 %v2597
        %v2659 = vpop.f32.mrf.mxu0
        %v2660 = vadd.f32 %v2575, %v2659
        %v2661 = vpop.f32.mrf.mxu0
        %v2662 = vadd.f32 %v2575, %v2661
        %2663 = vmatmul.bf16.gmra.mxu0 %v2600
        %v2664 = vpop.f32.mrf.mxu0
        %v2665 = vadd.f32 %v2575, %v2664
        %v2666 = vpop.f32.mrf.mxu0
        %v2667 = vadd.f32 %v2575, %v2666
        %2668 = vmatmul.bf16.gmra.mxu0 %v2603
        %v2669 = vpop.f32.mrf.mxu0
        %v2670 = vadd.f32 %v2575, %v2669
        %v2671 = vpop.f32.mrf.mxu0
        %v2672 = vadd.f32 %v2575, %v2671
        %2673 = vmatmul.bf16.gmra.mxu0 %v2606
        %v2674 = vpop.f32.mrf.mxu0
        %v2675 = vadd.f32 %v2575, %v2674
        %v2676 = vpop.f32.mrf.mxu0
        %v2677 = vadd.f32 %v2575, %v2676
        %2678 = vmatmul.bf16.gmra.mxu0 %v2609
        %v2679 = vpop.f32.mrf.mxu0
        %v2680 = vadd.f32 %v2575, %v2679
        %v2681 = vpop.f32.mrf.mxu0
        %v2682 = vadd.f32 %v2575, %v2681
        %2683 = vmatmul.bf16.gmra.mxu0 %v2612
        %v2684 = vpop.f32.mrf.mxu0
        %v2685 = vadd.f32 %v2575, %v2684
        %v2686 = vpop.f32.mrf.mxu0
        %v2687 = vadd.f32 %v2575, %v2686
        %2688 = vmatmul.bf16.gmra.mxu0 %v2615
        %v2689 = vpop.f32.mrf.mxu0
        %v2690 = vadd.f32 %v2575, %v2689
        %v2691 = vpop.f32.mrf.mxu0
        %v2692 = vadd.f32 %v2575, %v2691
        %2693 = vmatmul.bf16.gmra.mxu0 %v2618
        %v2694 = vpop.f32.mrf.mxu0
        %v2695 = vadd.f32 %v2575, %v2694
        %v2696 = vpop.f32.mrf.mxu0
        %v2697 = vadd.f32 %v2575, %v2696
        %2698 = vmatmul.bf16.gmra.mxu0 %v2621
        %v2699 = vpop.f32.mrf.mxu0
        %v2700 = vadd.f32 %v2575, %v2699
        %v2701 = vpop.f32.mrf.mxu0
        %v2702 = vadd.f32 %v2575, %v2701
        %2703 = vmatmul.bf16.gmra.mxu0 %v2624
        %v2704 = vpop.f32.mrf.mxu0
        %v2705 = vadd.f32 %v2575, %v2704
        %v2706 = vpop.f32.mrf.mxu0
        %v2707 = vadd.f32 %v2575, %v2706
        %2708 = vmatmul.bf16.gmra.mxu0 %v2627
        %v2709 = vpop.f32.mrf.mxu0
        %v2710 = vadd.f32 %v2575, %v2709
        %v2711 = vpop.f32.mrf.mxu0
        %v2712 = vadd.f32 %v2575, %v2711
        %2713 = vmatmul.bf16.gmra.mxu0 %v2630
        %v2714 = vpop.f32.mrf.mxu0
        %v2715 = vadd.f32 %v2575, %v2714
        %v2716 = vpop.f32.mrf.mxu0
        %v2717 = vadd.f32 %v2575, %v2716
        %2718 = vmatmul.bf16.gmra.mxu0 %v2633
        %v2719 = vpop.f32.mrf.mxu0
        %v2720 = vadd.f32 %v2575, %v2719
        %v2721 = vpop.f32.mrf.mxu0
        %v2722 = vadd.f32 %v2575, %v2721
        %2723 = vmatmul.bf16.gmra.mxu0 %v2636
        %v2724 = vpop.f32.mrf.mxu0
        %v2725 = vadd.f32 %v2575, %v2724
        %v2726 = vpop.f32.mrf.mxu0
        %v2727 = vadd.f32 %v2575, %v2726
        %2728 = vmatmul.bf16.gmra.mxu0 %v2639
        %v2729 = vpop.f32.mrf.mxu0
        %v2730 = vadd.f32 %v2575, %v2729
        %v2731 = vpop.f32.mrf.mxu0
        %v2732 = vadd.f32 %v2575, %v2731
        %2733 = vdwg.mxu0
        %v2734 = vmax.f32 %v2655, 0.0
        %v2735 = vmax.f32 %v2657, 0.0
        %v2736 = vmax.f32 %v2660, 0.0
        %v2737 = vmax.f32 %v2662, 0.0
        %v2738 = vmax.f32 %v2665, 0.0
        %v2739 = vmax.f32 %v2667, 0.0
        %v2740 = vmax.f32 %v2670, 0.0
        %v2741 = vmax.f32 %v2672, 0.0
        %v2742 = vmax.f32 %v2675, 0.0
        %v2743 = vmax.f32 %v2677, 0.0
        %v2744 = vmax.f32 %v2680, 0.0
        %v2745 = vmax.f32 %v2682, 0.0
        %v2746 = vmax.f32 %v2685, 0.0
        %v2747 = vmax.f32 %v2687, 0.0
        %v2748 = vmax.f32 %v2690, 0.0
        %v2749 = vmax.f32 %v2692, 0.0
        %v2750 = vmax.f32 %v2695, 0.0
        %v2751 = vmax.f32 %v2697, 0.0
        %v2752 = vmax.f32 %v2700, 0.0
        %v2753 = vmax.f32 %v2702, 0.0
        %v2754 = vmax.f32 %v2705, 0.0
        %v2755 = vmax.f32 %v2707, 0.0
        %v2756 = vmax.f32 %v2710, 0.0
        %v2757 = vmax.f32 %v2712, 0.0
        %v2758 = vmax.f32 %v2715, 0.0
        %v2759 = vmax.f32 %v2717, 0.0
        %v2760 = vmax.f32 %v2720, 0.0
        %v2761 = vmax.f32 %v2722, 0.0
        %v2762 = vmax.f32 %v2725, 0.0
        %v2763 = vmax.f32 %v2727, 0.0
        %v2764 = vmax.f32 %v2730, 0.0
        %v2765 = vmax.f32 %v2732, 0.0
        %2766 = vst.msk [vmem:[#allocation3 + $0x18] sm:$0xff] %vm340, %v2734
        %2767 = vst.msk [vmem:[#allocation3 + $0x20] sm:$0xff] %vm340, %v2735
        %2768 = vst.msk [vmem:[#allocation3 + $0x28] sm:$0xff] %vm340, %v2736
        %2769 = vst.msk [vmem:[#allocation3 + $0x30] sm:$0xff] %vm340, %v2737
        %2770 = vst.msk [vmem:[#allocation3 + $0x38] sm:$0xff] %vm340, %v2738
        %2771 = vst.msk [vmem:[#allocation3 + $0x40] sm:$0xff] %vm340, %v2739
        %2772 = vst.msk [vmem:[#allocation3 + $0x48] sm:$0xff] %vm340, %v2740
        %2773 = vst.msk [vmem:[#allocation3 + $0x50] sm:$0xff] %vm340, %v2741
        %2774 = vst.msk [vmem:[#allocation3 + $0x58] sm:$0xff] %vm340, %v2742
        %2775 = vst.msk [vmem:[#allocation3 + $0x60] sm:$0xff] %vm340, %v2743
        %2776 = vst.msk [vmem:[#allocation3 + $0x68] sm:$0xff] %vm340, %v2744
        %2777 = vst.msk [vmem:[#allocation3 + $0x70] sm:$0xff] %vm340, %v2745
        %2778 = vst.msk [vmem:[#allocation3 + $0x78] sm:$0xff] %vm340, %v2746
        %2779 = vst.msk [vmem:[#allocation3 + $0x80] sm:$0xff] %vm340, %v2747
        %2780 = vst.msk [vmem:[#allocation3 + $0x88] sm:$0xff] %vm340, %v2748
        %2781 = vst.msk [vmem:[#allocation3 + $0x90] sm:$0xff] %vm340, %v2749
        %2782 = vst.msk [vmem:[#allocation3 + $0x98] sm:$0xff] %vm340, %v2750
        %2783 = vst.msk [vmem:[#allocation3 + $0xa0] sm:$0xff] %vm340, %v2751
        %2784 = vst.msk [vmem:[#allocation3 + $0xa8] sm:$0xff] %vm340, %v2752
        %2785 = vst.msk [vmem:[#allocation3 + $0xb0] sm:$0xff] %vm340, %v2753
        %2786 = vst.msk [vmem:[#allocation3 + $0xb8] sm:$0xff] %vm340, %v2754
        %2787 = vst.msk [vmem:[#allocation3 + $0xc0] sm:$0xff] %vm340, %v2755
        %2788 = vst.msk [vmem:[#allocation3 + $0xc8] sm:$0xff] %vm340, %v2756
        %2789 = vst.msk [vmem:[#allocation3 + $0xd0] sm:$0xff] %vm340, %v2757
        %2790 = vst.msk [vmem:[#allocation3 + $0xd8] sm:$0xff] %vm340, %v2758
        %2791 = vst.msk [vmem:[#allocation3 + $0xe0] sm:$0xff] %vm340, %v2759
        %2792 = vst.msk [vmem:[#allocation3 + $0xe8] sm:$0xff] %vm340, %v2760
        %2793 = vst.msk [vmem:[#allocation3 + $0xf0] sm:$0xff] %vm340, %v2761
        %2794 = vst.msk [vmem:[#allocation3 + $0xf8] sm:$0xff] %vm340, %v2762
        %2795 = vst.msk [vmem:[#allocation3 + $0x100] sm:$0xff] %vm340, %v2763
        %2796 = vst.msk [vmem:[#allocation3 + $0x108] sm:$0xff] %vm340, %v2764
        %2797 = vst.msk [vmem:[#allocation3 + $0x110] sm:$0xff] %vm340, %v2765
        %v2798 = vld [vmem:[#allocation3 + $0x7] sm:$0xff]
        %v2799 = vld [vmem:[#allocation3 + $0xf] sm:$0xff]
        %v2800 = vld [vmem:[#allocation3 + $0x17] sm:$0xff]
        %v2801 = vld [vmem:[#allocation3 + $0x1f] sm:$0xff]
        %v2802 = vld [vmem:[#allocation3 + $0x27] sm:$0xff]
        %v2803 = vld [vmem:[#allocation3 + $0x2f] sm:$0xff]
        %v2804 = vld [vmem:[#allocation3 + $0x37] sm:$0xff]
        %v2805 = vld [vmem:[#allocation3 + $0x3f] sm:$0xff]
        %v2806 = vld [vmem:[#allocation3 + $0x47] sm:$0xff]
        %v2807 = vld [vmem:[#allocation3 + $0x4f] sm:$0xff]
        %v2808 = vld [vmem:[#allocation3 + $0x57] sm:$0xff]
        %v2809 = vld [vmem:[#allocation3 + $0x5f] sm:$0xff]
        %v2810 = vld [vmem:[#allocation3 + $0x67] sm:$0xff]
        %v2811 = vld [vmem:[#allocation3 + $0x6f] sm:$0xff]
        %v2812 = vld [vmem:[#allocation3 + $0x77] sm:$0xff]
        %v2813 = vld [vmem:[#allocation3 + $0x7f] sm:$0xff]
        %v2814 = vld [vmem:[#allocation3 + $0x87] sm:$0xff]
        %v2815 = vld [vmem:[#allocation3 + $0x8f] sm:$0xff]
        %v2816 = vld [vmem:[#allocation3 + $0x97] sm:$0xff]
        %v2817 = vld [vmem:[#allocation3 + $0x9f] sm:$0xff]
        %v2818 = vld [vmem:[#allocation3 + $0xa7] sm:$0xff]
        %v2819 = vld [vmem:[#allocation3 + $0xaf] sm:$0xff]
        %v2820 = vld [vmem:[#allocation3 + $0xb7] sm:$0xff]
        %v2821 = vld [vmem:[#allocation3 + $0xbf] sm:$0xff]
        %v2822 = vld [vmem:[#allocation3 + $0xc7] sm:$0xff]
        %v2823 = vld [vmem:[#allocation3 + $0xcf] sm:$0xff]
        %v2824 = vld [vmem:[#allocation3 + $0xd7] sm:$0xff]
        %v2825 = vld [vmem:[#allocation3 + $0xdf] sm:$0xff]
        %v2826 = vld [vmem:[#allocation3 + $0xe7] sm:$0xff]
        %v2827 = vld [vmem:[#allocation3 + $0xef] sm:$0xff]
        %v2828 = vld [vmem:[#allocation3 + $0xf7] sm:$0xff]
        %v2829 = vld [vmem:[#allocation3 + $0xff] sm:$0xff]
        %v2830 = vsel %vm962, %v2798, 0.0
        %v2831 = vsel %vm963, %v2799, 0.0
        %v2832 = vsel %vm964, %v2800, 0.0
        %v2833 = vsel %vm965, %v2801, 0.0
        %v2834 = vsel %vm966, %v2802, 0.0
        %v2835 = vsel %vm967, %v2803, 0.0
        %v2836 = vsel %vm968, %v2804, 0.0
        %v2837 = vsel %vm969, %v2805, 0.0
        %v2838 = vsel %vm970, %v2806, 0.0
        %v2839 = vsel %vm971, %v2807, 0.0
        %v2840 = vsel %vm972, %v2808, 0.0
        %v2841 = vsel %vm973, %v2809, 0.0
        %v2842 = vsel %vm974, %v2810, 0.0
        %v2843 = vsel %vm975, %v2811, 0.0
        %v2844 = vsel %vm976, %v2812, 0.0
        %v2845 = vsel %vm977, %v2813, 0.0
        %v2846 = vsel %vm978, %v2814, 0.0
        %v2847 = vsel %vm979, %v2815, 0.0
        %v2848 = vsel %vm980, %v2816, 0.0
        %v2849 = vsel %vm981, %v2817, 0.0
        %v2850 = vsel %vm982, %v2818, 0.0
        %v2851 = vsel %vm983, %v2819, 0.0
        %v2852 = vsel %vm984, %v2820, 0.0
        %v2853 = vsel %vm985, %v2821, 0.0
        %v2854 = vsel %vm986, %v2822, 0.0
        %v2855 = vsel %vm987, %v2823, 0.0
        %v2856 = vsel %vm988, %v2824, 0.0
        %v2857 = vsel %vm989, %v2825, 0.0
        %v2858 = vsel %vm990, %v2826, 0.0
        %v2859 = vsel %vm991, %v2827, 0.0
        %v2860 = vsel %vm992, %v2828, 0.0
        %v2861 = vsel %vm993, %v2829, 0.0
        %v2862 = vld [vmem:[#allocation3 + $0x8] sm:$0xff]
        %v2863 = vld [vmem:[#allocation3 + $0x10] sm:$0xff]
        %v2864 = vld [vmem:[#allocation3 + $0x18] sm:$0xff]
        %v2865 = vld [vmem:[#allocation3 + $0x20] sm:$0xff]
        %v2866 = vld [vmem:[#allocation3 + $0x28] sm:$0xff]
        %v2867 = vld [vmem:[#allocation3 + $0x30] sm:$0xff]
        %v2868 = vld [vmem:[#allocation3 + $0x38] sm:$0xff]
        %v2869 = vld [vmem:[#allocation3 + $0x40] sm:$0xff]
        %v2870 = vld [vmem:[#allocation3 + $0x48] sm:$0xff]
        %v2871 = vld [vmem:[#allocation3 + $0x50] sm:$0xff]
        %v2872 = vld [vmem:[#allocation3 + $0x58] sm:$0xff]
        %v2873 = vld [vmem:[#allocation3 + $0x60] sm:$0xff]
        %v2874 = vld [vmem:[#allocation3 + $0x68] sm:$0xff]
        %v2875 = vld [vmem:[#allocation3 + $0x70] sm:$0xff]
        %v2876 = vld [vmem:[#allocation3 + $0x78] sm:$0xff]
        %v2877 = vld [vmem:[#allocation3 + $0x80] sm:$0xff]
        %v2878 = vld [vmem:[#allocation3 + $0x88] sm:$0xff]
        %v2879 = vld [vmem:[#allocation3 + $0x90] sm:$0xff]
        %v2880 = vld [vmem:[#allocation3 + $0x98] sm:$0xff]
        %v2881 = vld [vmem:[#allocation3 + $0xa0] sm:$0xff]
        %v2882 = vld [vmem:[#allocation3 + $0xa8] sm:$0xff]
        %v2883 = vld [vmem:[#allocation3 + $0xb0] sm:$0xff]
        %v2884 = vld [vmem:[#allocation3 + $0xb8] sm:$0xff]
        %v2885 = vld [vmem:[#allocation3 + $0xc0] sm:$0xff]
        %v2886 = vld [vmem:[#allocation3 + $0xc8] sm:$0xff]
        %v2887 = vld [vmem:[#allocation3 + $0xd0] sm:$0xff]
        %v2888 = vld [vmem:[#allocation3 + $0xd8] sm:$0xff]
        %v2889 = vld [vmem:[#allocation3 + $0xe0] sm:$0xff]
        %v2890 = vld [vmem:[#allocation3 + $0xe8] sm:$0xff]
        %v2891 = vld [vmem:[#allocation3 + $0xf0] sm:$0xff]
        %v2892 = vld [vmem:[#allocation3 + $0xf8] sm:$0xff]
        %v2893 = vld [vmem:[#allocation3 + $0x100] sm:$0xff]
        %v2894 = vld [vmem:[#allocation3 + $0x9] sm:$0xff]
        %v2895 = vld [vmem:[#allocation3 + $0x11] sm:$0xff]
        %v2896 = vld [vmem:[#allocation3 + $0x19] sm:$0xff]
        %v2897 = vld [vmem:[#allocation3 + $0x21] sm:$0xff]
        %v2898 = vld [vmem:[#allocation3 + $0x29] sm:$0xff]
        %v2899 = vld [vmem:[#allocation3 + $0x31] sm:$0xff]
        %v2900 = vld [vmem:[#allocation3 + $0x39] sm:$0xff]
        %v2901 = vld [vmem:[#allocation3 + $0x41] sm:$0xff]
        %v2902 = vld [vmem:[#allocation3 + $0x49] sm:$0xff]
        %v2903 = vld [vmem:[#allocation3 + $0x51] sm:$0xff]
        %v2904 = vld [vmem:[#allocation3 + $0x59] sm:$0xff]
        %v2905 = vld [vmem:[#allocation3 + $0x61] sm:$0xff]
        %v2906 = vld [vmem:[#allocation3 + $0x69] sm:$0xff]
        %v2907 = vld [vmem:[#allocation3 + $0x71] sm:$0xff]
        %v2908 = vld [vmem:[#allocation3 + $0x79] sm:$0xff]
        %v2909 = vld [vmem:[#allocation3 + $0x81] sm:$0xff]
        %v2910 = vld [vmem:[#allocation3 + $0x89] sm:$0xff]
        %v2911 = vld [vmem:[#allocation3 + $0x91] sm:$0xff]
        %v2912 = vld [vmem:[#allocation3 + $0x99] sm:$0xff]
        %v2913 = vld [vmem:[#allocation3 + $0xa1] sm:$0xff]
        %v2914 = vld [vmem:[#allocation3 + $0xa9] sm:$0xff]
        %v2915 = vld [vmem:[#allocation3 + $0xb1] sm:$0xff]
        %v2916 = vld [vmem:[#allocation3 + $0xb9] sm:$0xff]
        %v2917 = vld [vmem:[#allocation3 + $0xc1] sm:$0xff]
        %v2918 = vld [vmem:[#allocation3 + $0xc9] sm:$0xff]
        %v2919 = vld [vmem:[#allocation3 + $0xd1] sm:$0xff]
        %v2920 = vld [vmem:[#allocation3 + $0xd9] sm:$0xff]
        %v2921 = vld [vmem:[#allocation3 + $0xe1] sm:$0xff]
        %v2922 = vld [vmem:[#allocation3 + $0xe9] sm:$0xff]
        %v2923 = vld [vmem:[#allocation3 + $0xf1] sm:$0xff]
        %v2924 = vld [vmem:[#allocation3 + $0xf9] sm:$0xff]
        %v2925 = vld [vmem:[#allocation3 + $0x101] sm:$0xff]
        %v2926 = vsel %vm1122, %v2894, 0.0
        %v2927 = vsel %vm1123, %v2895, 0.0
        %v2928 = vsel %vm1124, %v2896, 0.0
        %v2929 = vsel %vm1125, %v2897, 0.0
        %v2930 = vsel %vm1126, %v2898, 0.0
        %v2931 = vsel %vm1127, %v2899, 0.0
        %v2932 = vsel %vm1128, %v2900, 0.0
        %v2933 = vsel %vm1129, %v2901, 0.0
        %v2934 = vsel %vm1130, %v2902, 0.0
        %v2935 = vsel %vm1131, %v2903, 0.0
        %v2936 = vsel %vm1132, %v2904, 0.0
        %v2937 = vsel %vm1133, %v2905, 0.0
        %v2938 = vsel %vm1134, %v2906, 0.0
        %v2939 = vsel %vm1135, %v2907, 0.0
        %v2940 = vsel %vm1136, %v2908, 0.0
        %v2941 = vsel %vm1137, %v2909, 0.0
        %v2942 = vsel %vm1138, %v2910, 0.0
        %v2943 = vsel %vm1139, %v2911, 0.0
        %v2944 = vsel %vm1140, %v2912, 0.0
        %v2945 = vsel %vm1141, %v2913, 0.0
        %v2946 = vsel %vm1142, %v2914, 0.0
        %v2947 = vsel %vm1143, %v2915, 0.0
        %v2948 = vsel %vm1144, %v2916, 0.0
        %v2949 = vsel %vm1145, %v2917, 0.0
        %v2950 = vsel %vm1146, %v2918, 0.0
        %v2951 = vsel %vm1147, %v2919, 0.0
        %v2952 = vsel %vm1148, %v2920, 0.0
        %v2953 = vsel %vm1149, %v2921, 0.0
        %v2954 = vsel %vm1150, %v2922, 0.0
        %v2955 = vsel %vm1151, %v2923, 0.0
        %v2956 = vsel %vm1152, %v2924, 0.0
        %v2957 = vsel %vm1153, %v2925, 0.0
        %v2958 = vld [vmem:[#allocation3 + $0x107] sm:$0xff]
        %v2959 = vld [vmem:[#allocation3 + $0x10f] sm:$0xff]
        %v2960 = vsel %vm962, %v2800, 0.0
        %v2961 = vsel %vm963, %v2801, 0.0
        %v2962 = vsel %vm964, %v2802, 0.0
        %v2963 = vsel %vm965, %v2803, 0.0
        %v2964 = vsel %vm966, %v2804, 0.0
        %v2965 = vsel %vm967, %v2805, 0.0
        %v2966 = vsel %vm968, %v2806, 0.0
        %v2967 = vsel %vm969, %v2807, 0.0
        %v2968 = vsel %vm970, %v2808, 0.0
        %v2969 = vsel %vm971, %v2809, 0.0
        %v2970 = vsel %vm972, %v2810, 0.0
        %v2971 = vsel %vm973, %v2811, 0.0
        %v2972 = vsel %vm974, %v2812, 0.0
        %v2973 = vsel %vm975, %v2813, 0.0
        %v2974 = vsel %vm976, %v2814, 0.0
        %v2975 = vsel %vm977, %v2815, 0.0
        %v2976 = vsel %vm978, %v2816, 0.0
        %v2977 = vsel %vm979, %v2817, 0.0
        %v2978 = vsel %vm980, %v2818, 0.0
        %v2979 = vsel %vm981, %v2819, 0.0
        %v2980 = vsel %vm982, %v2820, 0.0
        %v2981 = vsel %vm983, %v2821, 0.0
        %v2982 = vsel %vm984, %v2822, 0.0
        %v2983 = vsel %vm985, %v2823, 0.0
        %v2984 = vsel %vm986, %v2824, 0.0
        %v2985 = vsel %vm987, %v2825, 0.0
        %v2986 = vsel %vm988, %v2826, 0.0
        %v2987 = vsel %vm989, %v2827, 0.0
        %v2988 = vsel %vm990, %v2828, 0.0
        %v2989 = vsel %vm991, %v2829, 0.0
        %v2990 = vsel %vm992, %v2958, 0.0
        %v2991 = vsel %vm993, %v2959, 0.0
        %v2992 = vld [vmem:[#allocation3 + $0x108] sm:$0xff]
        %v2993 = vld [vmem:[#allocation3 + $0x110] sm:$0xff]
        %v2994 = vld [vmem:[#allocation3 + $0x109] sm:$0xff]
        %v2995 = vld [vmem:[#allocation3 + $0x111] sm:$0xff]
        %v2996 = vsel %vm1122, %v2896, 0.0
        %v2997 = vsel %vm1123, %v2897, 0.0
        %v2998 = vsel %vm1124, %v2898, 0.0
        %v2999 = vsel %vm1125, %v2899, 0.0
        %v3000 = vsel %vm1126, %v2900, 0.0
        %v3001 = vsel %vm1127, %v2901, 0.0
        %v3002 = vsel %vm1128, %v2902, 0.0
        %v3003 = vsel %vm1129, %v2903, 0.0
        %v3004 = vsel %vm1130, %v2904, 0.0
        %v3005 = vsel %vm1131, %v2905, 0.0
        %v3006 = vsel %vm1132, %v2906, 0.0
        %v3007 = vsel %vm1133, %v2907, 0.0
        %v3008 = vsel %vm1134, %v2908, 0.0
        %v3009 = vsel %vm1135, %v2909, 0.0
        %v3010 = vsel %vm1136, %v2910, 0.0
        %v3011 = vsel %vm1137, %v2911, 0.0
        %v3012 = vsel %vm1138, %v2912, 0.0
        %v3013 = vsel %vm1139, %v2913, 0.0
        %v3014 = vsel %vm1140, %v2914, 0.0
        %v3015 = vsel %vm1141, %v2915, 0.0
        %v3016 = vsel %vm1142, %v2916, 0.0
        %v3017 = vsel %vm1143, %v2917, 0.0
        %v3018 = vsel %vm1144, %v2918, 0.0
        %v3019 = vsel %vm1145, %v2919, 0.0
        %v3020 = vsel %vm1146, %v2920, 0.0
        %v3021 = vsel %vm1147, %v2921, 0.0
        %v3022 = vsel %vm1148, %v2922, 0.0
        %v3023 = vsel %vm1149, %v2923, 0.0
        %v3024 = vsel %vm1150, %v2924, 0.0
        %v3025 = vsel %vm1151, %v2925, 0.0
        %v3026 = vsel %vm1152, %v2994, 0.0
        %v3027 = vsel %vm1153, %v2995, 0.0
        %v3028 = vld [vmem:[#allocation3 + $0x117] sm:$0xff]
        %v3029 = vld [vmem:[#allocation3 + $0x11f] sm:$0xff]
        %v3030 = vsel %vm962, %v2802, 0.0
        %v3031 = vsel %vm963, %v2803, 0.0
        %v3032 = vsel %vm964, %v2804, 0.0
        %v3033 = vsel %vm965, %v2805, 0.0
        %v3034 = vsel %vm966, %v2806, 0.0
        %v3035 = vsel %vm967, %v2807, 0.0
        %v3036 = vsel %vm968, %v2808, 0.0
        %v3037 = vsel %vm969, %v2809, 0.0
        %v3038 = vsel %vm970, %v2810, 0.0
        %v3039 = vsel %vm971, %v2811, 0.0
        %v3040 = vsel %vm972, %v2812, 0.0
        %v3041 = vsel %vm973, %v2813, 0.0
        %v3042 = vsel %vm974, %v2814, 0.0
        %v3043 = vsel %vm975, %v2815, 0.0
        %v3044 = vsel %vm976, %v2816, 0.0
        %v3045 = vsel %vm977, %v2817, 0.0
        %v3046 = vsel %vm978, %v2818, 0.0
        %v3047 = vsel %vm979, %v2819, 0.0
        %v3048 = vsel %vm980, %v2820, 0.0
        %v3049 = vsel %vm981, %v2821, 0.0
        %v3050 = vsel %vm982, %v2822, 0.0
        %v3051 = vsel %vm983, %v2823, 0.0
        %v3052 = vsel %vm984, %v2824, 0.0
        %v3053 = vsel %vm985, %v2825, 0.0
        %v3054 = vsel %vm986, %v2826, 0.0
        %v3055 = vsel %vm987, %v2827, 0.0
        %v3056 = vsel %vm988, %v2828, 0.0
        %v3057 = vsel %vm989, %v2829, 0.0
        %v3058 = vsel %vm990, %v2958, 0.0
        %v3059 = vsel %vm991, %v2959, 0.0
        %v3060 = vsel %vm992, %v3028, 0.0
        %v3061 = vsel %vm993, %v3029, 0.0
        %v3062 = vld [vmem:[#allocation3 + $0x118] sm:$0xff]
        %v3063 = vld [vmem:[#allocation3 + $0x120] sm:$0xff]
        %v3064 = vld [vmem:[#allocation3 + $0x119] sm:$0xff]
        %v3065 = vld [vmem:[#allocation3 + $0x121] sm:$0xff]
        %v3066 = vsel %vm1122, %v2898, 0.0
        %v3067 = vsel %vm1123, %v2899, 0.0
        %v3068 = vsel %vm1124, %v2900, 0.0
        %v3069 = vsel %vm1125, %v2901, 0.0
        %v3070 = vsel %vm1126, %v2902, 0.0
        %v3071 = vsel %vm1127, %v2903, 0.0
        %v3072 = vsel %vm1128, %v2904, 0.0
        %v3073 = vsel %vm1129, %v2905, 0.0
        %v3074 = vsel %vm1130, %v2906, 0.0
        %v3075 = vsel %vm1131, %v2907, 0.0
        %v3076 = vsel %vm1132, %v2908, 0.0
        %v3077 = vsel %vm1133, %v2909, 0.0
        %v3078 = vsel %vm1134, %v2910, 0.0
        %v3079 = vsel %vm1135, %v2911, 0.0
        %v3080 = vsel %vm1136, %v2912, 0.0
        %v3081 = vsel %vm1137, %v2913, 0.0
        %v3082 = vsel %vm1138, %v2914, 0.0
        %v3083 = vsel %vm1139, %v2915, 0.0
        %v3084 = vsel %vm1140, %v2916, 0.0
        %v3085 = vsel %vm1141, %v2917, 0.0
        %v3086 = vsel %vm1142, %v2918, 0.0
        %v3087 = vsel %vm1143, %v2919, 0.0
        %v3088 = vsel %vm1144, %v2920, 0.0
        %v3089 = vsel %vm1145, %v2921, 0.0
        %v3090 = vsel %vm1146, %v2922, 0.0
        %v3091 = vsel %vm1147, %v2923, 0.0
        %v3092 = vsel %vm1148, %v2924, 0.0
        %v3093 = vsel %vm1149, %v2925, 0.0
        %v3094 = vsel %vm1150, %v2994, 0.0
        %v3095 = vsel %vm1151, %v2995, 0.0
        %v3096 = vsel %vm1152, %v3064, 0.0
        %v3097 = vsel %vm1153, %v3065, 0.0
        %3130 = vrot.lane.b32.xlu0 %v2862, 16
        %v3131 = vpop.permute.xlu0 %3130
        %3132 = vrot.lane.b32.xlu0 %v2863, 16
        %v3133 = vpop.permute.xlu0 %3132
        %3134 = vrot.lane.b32.xlu0 %v2864, 16
        %v3135 = vpop.permute.xlu0 %3134
        %3136 = vrot.lane.b32.xlu0 %v2865, 16
        %v3137 = vpop.permute.xlu0 %3136
        %3138 = vrot.lane.b32.xlu0 %v2866, 16
        %v3139 = vpop.permute.xlu0 %3138
        %3140 = vrot.lane.b32.xlu0 %v2867, 16
        %v3141 = vpop.permute.xlu0 %3140
        %3142 = vrot.lane.b32.xlu0 %v2868, 16
        %v3143 = vpop.permute.xlu0 %3142
        %3144 = vrot.lane.b32.xlu0 %v2869, 16
        %v3145 = vpop.permute.xlu0 %3144
        %3146 = vrot.lane.b32.xlu0 %v2870, 16
        %v3147 = vpop.permute.xlu0 %3146
        %3148 = vrot.lane.b32.xlu0 %v2871, 16
        %v3149 = vpop.permute.xlu0 %3148
        %3150 = vrot.lane.b32.xlu0 %v2872, 16
        %v3151 = vpop.permute.xlu0 %3150
        %3152 = vrot.lane.b32.xlu0 %v2873, 16
        %v3153 = vpop.permute.xlu0 %3152
        %3154 = vrot.lane.b32.xlu0 %v2874, 16
        %v3155 = vpop.permute.xlu0 %3154
        %3156 = vrot.lane.b32.xlu0 %v2875, 16
        %v3157 = vpop.permute.xlu0 %3156
        %3158 = vrot.lane.b32.xlu0 %v2876, 16
        %v3159 = vpop.permute.xlu0 %3158
        %3160 = vrot.lane.b32.xlu0 %v2877, 16
        %v3161 = vpop.permute.xlu0 %3160
        %3162 = vrot.lane.b32.xlu0 %v2878, 16
        %v3163 = vpop.permute.xlu0 %3162
        %3164 = vrot.lane.b32.xlu0 %v2879, 16
        %v3165 = vpop.permute.xlu0 %3164
        %3166 = vrot.lane.b32.xlu0 %v2880, 16
        %v3167 = vpop.permute.xlu0 %3166
        %3168 = vrot.lane.b32.xlu0 %v2881, 16
        %v3169 = vpop.permute.xlu0 %3168
        %3170 = vrot.lane.b32.xlu0 %v2882, 16
        %v3171 = vpop.permute.xlu0 %3170
        %3172 = vrot.lane.b32.xlu0 %v2883, 16
        %v3173 = vpop.permute.xlu0 %3172
        %3174 = vrot.lane.b32.xlu0 %v2884, 16
        %v3175 = vpop.permute.xlu0 %3174
        %3176 = vrot.lane.b32.xlu0 %v2885, 16
        %v3177 = vpop.permute.xlu0 %3176
        %3178 = vrot.lane.b32.xlu0 %v2886, 16
        %v3179 = vpop.permute.xlu0 %3178
        %3180 = vrot.lane.b32.xlu0 %v2887, 16
        %v3181 = vpop.permute.xlu0 %3180
        %3182 = vrot.lane.b32.xlu0 %v2888, 16
        %v3183 = vpop.permute.xlu0 %3182
        %3184 = vrot.lane.b32.xlu0 %v2889, 16
        %v3185 = vpop.permute.xlu0 %3184
        %3186 = vrot.lane.b32.xlu0 %v2890, 16
        %v3187 = vpop.permute.xlu0 %3186
        %3188 = vrot.lane.b32.xlu0 %v2891, 16
        %v3189 = vpop.permute.xlu0 %3188
        %3190 = vrot.lane.b32.xlu0 %v2892, 16
        %v3191 = vpop.permute.xlu0 %3190
        %3192 = vrot.lane.b32.xlu0 %v2893, 16
        %v3193 = vpop.permute.xlu0 %3192
        %3258 = vrot.lane.b32.xlu0 %v2926, 32
        %v3259 = vpop.permute.xlu0 %3258
        %3260 = vrot.lane.b32.xlu0 %v2927, 32
        %v3261 = vpop.permute.xlu0 %3260
        %3262 = vrot.lane.b32.xlu0 %v2928, 32
        %v3263 = vpop.permute.xlu0 %3262
        %3264 = vrot.lane.b32.xlu0 %v2929, 32
        %v3265 = vpop.permute.xlu0 %3264
        %3266 = vrot.lane.b32.xlu0 %v2930, 32
        %v3267 = vpop.permute.xlu0 %3266
        %3268 = vrot.lane.b32.xlu0 %v2931, 32
        %v3269 = vpop.permute.xlu0 %3268
        %3270 = vrot.lane.b32.xlu0 %v2932, 32
        %v3271 = vpop.permute.xlu0 %3270
        %3272 = vrot.lane.b32.xlu0 %v2933, 32
        %v3273 = vpop.permute.xlu0 %3272
        %3274 = vrot.lane.b32.xlu0 %v2934, 32
        %v3275 = vpop.permute.xlu0 %3274
        %3276 = vrot.lane.b32.xlu0 %v2935, 32
        %v3277 = vpop.permute.xlu0 %3276
        %3278 = vrot.lane.b32.xlu0 %v2936, 32
        %v3279 = vpop.permute.xlu0 %3278
        %3280 = vrot.lane.b32.xlu0 %v2937, 32
        %v3281 = vpop.permute.xlu0 %3280
        %3282 = vrot.lane.b32.xlu0 %v2938, 32
        %v3283 = vpop.permute.xlu0 %3282
        %3284 = vrot.lane.b32.xlu0 %v2939, 32
        %v3285 = vpop.permute.xlu0 %3284
        %3286 = vrot.lane.b32.xlu0 %v2940, 32
        %v3287 = vpop.permute.xlu0 %3286
        %3288 = vrot.lane.b32.xlu0 %v2941, 32
        %v3289 = vpop.permute.xlu0 %3288
        %3290 = vrot.lane.b32.xlu0 %v2942, 32
        %v3291 = vpop.permute.xlu0 %3290
        %3292 = vrot.lane.b32.xlu0 %v2943, 32
        %v3293 = vpop.permute.xlu0 %3292
        %3294 = vrot.lane.b32.xlu0 %v2944, 32
        %v3295 = vpop.permute.xlu0 %3294
        %3296 = vrot.lane.b32.xlu0 %v2945, 32
        %v3297 = vpop.permute.xlu0 %3296
        %3298 = vrot.lane.b32.xlu0 %v2946, 32
        %v3299 = vpop.permute.xlu0 %3298
        %3300 = vrot.lane.b32.xlu0 %v2947, 32
        %v3301 = vpop.permute.xlu0 %3300
        %3302 = vrot.lane.b32.xlu0 %v2948, 32
        %v3303 = vpop.permute.xlu0 %3302
        %3304 = vrot.lane.b32.xlu0 %v2949, 32
        %v3305 = vpop.permute.xlu0 %3304
        %3306 = vrot.lane.b32.xlu0 %v2950, 32
        %v3307 = vpop.permute.xlu0 %3306
        %3308 = vrot.lane.b32.xlu0 %v2951, 32
        %v3309 = vpop.permute.xlu0 %3308
        %3310 = vrot.lane.b32.xlu0 %v2952, 32
        %v3311 = vpop.permute.xlu0 %3310
        %3312 = vrot.lane.b32.xlu0 %v2953, 32
        %v3313 = vpop.permute.xlu0 %3312
        %3314 = vrot.lane.b32.xlu0 %v2954, 32
        %v3315 = vpop.permute.xlu0 %3314
        %3316 = vrot.lane.b32.xlu0 %v2955, 32
        %v3317 = vpop.permute.xlu0 %3316
        %3318 = vrot.lane.b32.xlu0 %v2956, 32
        %v3319 = vpop.permute.xlu0 %3318
        %3320 = vrot.lane.b32.xlu0 %v2957, 32
        %v3321 = vpop.permute.xlu0 %3320
        %3386 = vrot.lane.b32.xlu0 %v2960, 48
        %v3387 = vpop.permute.xlu0 %3386
        %3388 = vrot.lane.b32.xlu0 %v2961, 48
        %v3389 = vpop.permute.xlu0 %3388
        %3390 = vrot.lane.b32.xlu0 %v2962, 48
        %v3391 = vpop.permute.xlu0 %3390
        %3392 = vrot.lane.b32.xlu0 %v2963, 48
        %v3393 = vpop.permute.xlu0 %3392
        %3394 = vrot.lane.b32.xlu0 %v2964, 48
        %v3395 = vpop.permute.xlu0 %3394
        %3396 = vrot.lane.b32.xlu0 %v2965, 48
        %v3397 = vpop.permute.xlu0 %3396
        %3398 = vrot.lane.b32.xlu0 %v2966, 48
        %v3399 = vpop.permute.xlu0 %3398
        %3400 = vrot.lane.b32.xlu0 %v2967, 48
        %v3401 = vpop.permute.xlu0 %3400
        %3402 = vrot.lane.b32.xlu0 %v2968, 48
        %v3403 = vpop.permute.xlu0 %3402
        %3404 = vrot.lane.b32.xlu0 %v2969, 48
        %v3405 = vpop.permute.xlu0 %3404
        %3406 = vrot.lane.b32.xlu0 %v2970, 48
        %v3407 = vpop.permute.xlu0 %3406
        %3408 = vrot.lane.b32.xlu0 %v2971, 48
        %v3409 = vpop.permute.xlu0 %3408
        %3410 = vrot.lane.b32.xlu0 %v2972, 48
        %v3411 = vpop.permute.xlu0 %3410
        %3412 = vrot.lane.b32.xlu0 %v2973, 48
        %v3413 = vpop.permute.xlu0 %3412
        %3414 = vrot.lane.b32.xlu0 %v2974, 48
        %v3415 = vpop.permute.xlu0 %3414
        %3416 = vrot.lane.b32.xlu0 %v2975, 48
        %v3417 = vpop.permute.xlu0 %3416
        %3418 = vrot.lane.b32.xlu0 %v2976, 48
        %v3419 = vpop.permute.xlu0 %3418
        %3420 = vrot.lane.b32.xlu0 %v2977, 48
        %v3421 = vpop.permute.xlu0 %3420
        %3422 = vrot.lane.b32.xlu0 %v2978, 48
        %v3423 = vpop.permute.xlu0 %3422
        %3424 = vrot.lane.b32.xlu0 %v2979, 48
        %v3425 = vpop.permute.xlu0 %3424
        %3426 = vrot.lane.b32.xlu0 %v2980, 48
        %v3427 = vpop.permute.xlu0 %3426
        %3428 = vrot.lane.b32.xlu0 %v2981, 48
        %v3429 = vpop.permute.xlu0 %3428
        %3430 = vrot.lane.b32.xlu0 %v2982, 48
        %v3431 = vpop.permute.xlu0 %3430
        %3432 = vrot.lane.b32.xlu0 %v2983, 48
        %v3433 = vpop.permute.xlu0 %3432
        %3434 = vrot.lane.b32.xlu0 %v2984, 48
        %v3435 = vpop.permute.xlu0 %3434
        %3436 = vrot.lane.b32.xlu0 %v2985, 48
        %v3437 = vpop.permute.xlu0 %3436
        %3438 = vrot.lane.b32.xlu0 %v2986, 48
        %v3439 = vpop.permute.xlu0 %3438
        %3440 = vrot.lane.b32.xlu0 %v2987, 48
        %v3441 = vpop.permute.xlu0 %3440
        %3442 = vrot.lane.b32.xlu0 %v2988, 48
        %v3443 = vpop.permute.xlu0 %3442
        %3444 = vrot.lane.b32.xlu0 %v2989, 48
        %v3445 = vpop.permute.xlu0 %3444
        %3446 = vrot.lane.b32.xlu0 %v2990, 48
        %v3447 = vpop.permute.xlu0 %3446
        %3448 = vrot.lane.b32.xlu0 %v2991, 48
        %v3449 = vpop.permute.xlu0 %3448
        %3484 = vrot.lane.b32.xlu0 %v2864, 64
        %v3485 = vpop.permute.xlu0 %3484
        %3486 = vrot.lane.b32.xlu0 %v2865, 64
        %v3487 = vpop.permute.xlu0 %3486
        %3488 = vrot.lane.b32.xlu0 %v2866, 64
        %v3489 = vpop.permute.xlu0 %3488
        %3490 = vrot.lane.b32.xlu0 %v2867, 64
        %v3491 = vpop.permute.xlu0 %3490
        %3492 = vrot.lane.b32.xlu0 %v2868, 64
        %v3493 = vpop.permute.xlu0 %3492
        %3494 = vrot.lane.b32.xlu0 %v2869, 64
        %v3495 = vpop.permute.xlu0 %3494
        %3496 = vrot.lane.b32.xlu0 %v2870, 64
        %v3497 = vpop.permute.xlu0 %3496
        %3498 = vrot.lane.b32.xlu0 %v2871, 64
        %v3499 = vpop.permute.xlu0 %3498
        %3500 = vrot.lane.b32.xlu0 %v2872, 64
        %v3501 = vpop.permute.xlu0 %3500
        %3502 = vrot.lane.b32.xlu0 %v2873, 64
        %v3503 = vpop.permute.xlu0 %3502
        %3504 = vrot.lane.b32.xlu0 %v2874, 64
        %v3505 = vpop.permute.xlu0 %3504
        %3506 = vrot.lane.b32.xlu0 %v2875, 64
        %v3507 = vpop.permute.xlu0 %3506
        %3508 = vrot.lane.b32.xlu0 %v2876, 64
        %v3509 = vpop.permute.xlu0 %3508
        %3510 = vrot.lane.b32.xlu0 %v2877, 64
        %v3511 = vpop.permute.xlu0 %3510
        %3512 = vrot.lane.b32.xlu0 %v2878, 64
        %v3513 = vpop.permute.xlu0 %3512
        %3514 = vrot.lane.b32.xlu0 %v2879, 64
        %v3515 = vpop.permute.xlu0 %3514
        %3516 = vrot.lane.b32.xlu0 %v2880, 64
        %v3517 = vpop.permute.xlu0 %3516
        %3518 = vrot.lane.b32.xlu0 %v2881, 64
        %v3519 = vpop.permute.xlu0 %3518
        %3520 = vrot.lane.b32.xlu0 %v2882, 64
        %v3521 = vpop.permute.xlu0 %3520
        %3522 = vrot.lane.b32.xlu0 %v2883, 64
        %v3523 = vpop.permute.xlu0 %3522
        %3524 = vrot.lane.b32.xlu0 %v2884, 64
        %v3525 = vpop.permute.xlu0 %3524
        %3526 = vrot.lane.b32.xlu0 %v2885, 64
        %v3527 = vpop.permute.xlu0 %3526
        %3528 = vrot.lane.b32.xlu0 %v2886, 64
        %v3529 = vpop.permute.xlu0 %3528
        %3530 = vrot.lane.b32.xlu0 %v2887, 64
        %v3531 = vpop.permute.xlu0 %3530
        %3532 = vrot.lane.b32.xlu0 %v2888, 64
        %v3533 = vpop.permute.xlu0 %3532
        %3534 = vrot.lane.b32.xlu0 %v2889, 64
        %v3535 = vpop.permute.xlu0 %3534
        %3536 = vrot.lane.b32.xlu0 %v2890, 64
        %v3537 = vpop.permute.xlu0 %3536
        %3538 = vrot.lane.b32.xlu0 %v2891, 64
        %v3539 = vpop.permute.xlu0 %3538
        %3540 = vrot.lane.b32.xlu0 %v2892, 64
        %v3541 = vpop.permute.xlu0 %3540
        %3542 = vrot.lane.b32.xlu0 %v2893, 64
        %v3543 = vpop.permute.xlu0 %3542
        %3544 = vrot.lane.b32.xlu0 %v2992, 64
        %v3545 = vpop.permute.xlu0 %3544
        %3546 = vrot.lane.b32.xlu0 %v2993, 64
        %v3547 = vpop.permute.xlu0 %3546
        %3612 = vrot.lane.b32.xlu0 %v2996, 80
        %v3613 = vpop.permute.xlu0 %3612
        %3614 = vrot.lane.b32.xlu0 %v2997, 80
        %v3615 = vpop.permute.xlu0 %3614
        %3616 = vrot.lane.b32.xlu0 %v2998, 80
        %v3617 = vpop.permute.xlu0 %3616
        %3618 = vrot.lane.b32.xlu0 %v2999, 80
        %v3619 = vpop.permute.xlu0 %3618
        %3620 = vrot.lane.b32.xlu0 %v3000, 80
        %v3621 = vpop.permute.xlu0 %3620
        %3622 = vrot.lane.b32.xlu0 %v3001, 80
        %v3623 = vpop.permute.xlu0 %3622
        %3624 = vrot.lane.b32.xlu0 %v3002, 80
        %v3625 = vpop.permute.xlu0 %3624
        %3626 = vrot.lane.b32.xlu0 %v3003, 80
        %v3627 = vpop.permute.xlu0 %3626
        %3628 = vrot.lane.b32.xlu0 %v3004, 80
        %v3629 = vpop.permute.xlu0 %3628
        %3630 = vrot.lane.b32.xlu0 %v3005, 80
        %v3631 = vpop.permute.xlu0 %3630
        %3632 = vrot.lane.b32.xlu0 %v3006, 80
        %v3633 = vpop.permute.xlu0 %3632
        %3634 = vrot.lane.b32.xlu0 %v3007, 80
        %v3635 = vpop.permute.xlu0 %3634
        %3636 = vrot.lane.b32.xlu0 %v3008, 80
        %v3637 = vpop.permute.xlu0 %3636
        %3638 = vrot.lane.b32.xlu0 %v3009, 80
        %v3639 = vpop.permute.xlu0 %3638
        %3640 = vrot.lane.b32.xlu0 %v3010, 80
        %v3641 = vpop.permute.xlu0 %3640
        %3642 = vrot.lane.b32.xlu0 %v3011, 80
        %v3643 = vpop.permute.xlu0 %3642
        %3644 = vrot.lane.b32.xlu0 %v3012, 80
        %v3645 = vpop.permute.xlu0 %3644
        %3646 = vrot.lane.b32.xlu0 %v3013, 80
        %v3647 = vpop.permute.xlu0 %3646
        %3648 = vrot.lane.b32.xlu0 %v3014, 80
        %v3649 = vpop.permute.xlu0 %3648
        %3650 = vrot.lane.b32.xlu0 %v3015, 80
        %v3651 = vpop.permute.xlu0 %3650
        %3652 = vrot.lane.b32.xlu0 %v3016, 80
        %v3653 = vpop.permute.xlu0 %3652
        %3654 = vrot.lane.b32.xlu0 %v3017, 80
        %v3655 = vpop.permute.xlu0 %3654
        %3656 = vrot.lane.b32.xlu0 %v3018, 80
        %v3657 = vpop.permute.xlu0 %3656
        %3658 = vrot.lane.b32.xlu0 %v3019, 80
        %v3659 = vpop.permute.xlu0 %3658
        %3660 = vrot.lane.b32.xlu0 %v3020, 80
        %v3661 = vpop.permute.xlu0 %3660
        %3662 = vrot.lane.b32.xlu0 %v3021, 80
        %v3663 = vpop.permute.xlu0 %3662
        %3664 = vrot.lane.b32.xlu0 %v3022, 80
        %v3665 = vpop.permute.xlu0 %3664
        %3666 = vrot.lane.b32.xlu0 %v3023, 80
        %v3667 = vpop.permute.xlu0 %3666
        %3668 = vrot.lane.b32.xlu0 %v3024, 80
        %v3669 = vpop.permute.xlu0 %3668
        %3670 = vrot.lane.b32.xlu0 %v3025, 80
        %v3671 = vpop.permute.xlu0 %3670
        %3672 = vrot.lane.b32.xlu0 %v3026, 80
        %v3673 = vpop.permute.xlu0 %3672
        %3674 = vrot.lane.b32.xlu0 %v3027, 80
        %v3675 = vpop.permute.xlu0 %3674
        %3740 = vrot.lane.b32.xlu0 %v3030, 96
        %v3741 = vpop.permute.xlu0 %3740
        %3742 = vrot.lane.b32.xlu0 %v3031, 96
        %v3743 = vpop.permute.xlu0 %3742
        %3744 = vrot.lane.b32.xlu0 %v3032, 96
        %v3745 = vpop.permute.xlu0 %3744
        %3746 = vrot.lane.b32.xlu0 %v3033, 96
        %v3747 = vpop.permute.xlu0 %3746
        %3748 = vrot.lane.b32.xlu0 %v3034, 96
        %v3749 = vpop.permute.xlu0 %3748
        %3750 = vrot.lane.b32.xlu0 %v3035, 96
        %v3751 = vpop.permute.xlu0 %3750
        %3752 = vrot.lane.b32.xlu0 %v3036, 96
        %v3753 = vpop.permute.xlu0 %3752
        %3754 = vrot.lane.b32.xlu0 %v3037, 96
        %v3755 = vpop.permute.xlu0 %3754
        %3756 = vrot.lane.b32.xlu0 %v3038, 96
        %v3757 = vpop.permute.xlu0 %3756
        %3758 = vrot.lane.b32.xlu0 %v3039, 96
        %v3759 = vpop.permute.xlu0 %3758
        %3760 = vrot.lane.b32.xlu0 %v3040, 96
        %v3761 = vpop.permute.xlu0 %3760
        %3762 = vrot.lane.b32.xlu0 %v3041, 96
        %v3763 = vpop.permute.xlu0 %3762
        %3764 = vrot.lane.b32.xlu0 %v3042, 96
        %v3765 = vpop.permute.xlu0 %3764
        %3766 = vrot.lane.b32.xlu0 %v3043, 96
        %v3767 = vpop.permute.xlu0 %3766
        %3768 = vrot.lane.b32.xlu0 %v3044, 96
        %v3769 = vpop.permute.xlu0 %3768
        %3770 = vrot.lane.b32.xlu0 %v3045, 96
        %v3771 = vpop.permute.xlu0 %3770
        %3772 = vrot.lane.b32.xlu0 %v3046, 96
        %v3773 = vpop.permute.xlu0 %3772
        %3774 = vrot.lane.b32.xlu0 %v3047, 96
        %v3775 = vpop.permute.xlu0 %3774
        %3776 = vrot.lane.b32.xlu0 %v3048, 96
        %v3777 = vpop.permute.xlu0 %3776
        %3778 = vrot.lane.b32.xlu0 %v3049, 96
        %v3779 = vpop.permute.xlu0 %3778
        %3780 = vrot.lane.b32.xlu0 %v3050, 96
        %v3781 = vpop.permute.xlu0 %3780
        %3782 = vrot.lane.b32.xlu0 %v3051, 96
        %v3783 = vpop.permute.xlu0 %3782
        %3784 = vrot.lane.b32.xlu0 %v3052, 96
        %v3785 = vpop.permute.xlu0 %3784
        %3786 = vrot.lane.b32.xlu0 %v3053, 96
        %v3787 = vpop.permute.xlu0 %3786
        %3788 = vrot.lane.b32.xlu0 %v3054, 96
        %v3789 = vpop.permute.xlu0 %3788
        %3790 = vrot.lane.b32.xlu0 %v3055, 96
        %v3791 = vpop.permute.xlu0 %3790
        %3792 = vrot.lane.b32.xlu0 %v3056, 96
        %v3793 = vpop.permute.xlu0 %3792
        %3794 = vrot.lane.b32.xlu0 %v3057, 96
        %v3795 = vpop.permute.xlu0 %3794
        %3796 = vrot.lane.b32.xlu0 %v3058, 96
        %v3797 = vpop.permute.xlu0 %3796
        %3798 = vrot.lane.b32.xlu0 %v3059, 96
        %v3799 = vpop.permute.xlu0 %3798
        %3800 = vrot.lane.b32.xlu0 %v3060, 96
        %v3801 = vpop.permute.xlu0 %3800
        %3802 = vrot.lane.b32.xlu0 %v3061, 96
        %v3803 = vpop.permute.xlu0 %3802
        %3838 = vrot.lane.b32.xlu0 %v2866, 112
        %v3839 = vpop.permute.xlu0 %3838
        %3840 = vrot.lane.b32.xlu0 %v2867, 112
        %v3841 = vpop.permute.xlu0 %3840
        %3842 = vrot.lane.b32.xlu0 %v2868, 112
        %v3843 = vpop.permute.xlu0 %3842
        %3844 = vrot.lane.b32.xlu0 %v2869, 112
        %v3845 = vpop.permute.xlu0 %3844
        %3846 = vrot.lane.b32.xlu0 %v2870, 112
        %v3847 = vpop.permute.xlu0 %3846
        %3848 = vrot.lane.b32.xlu0 %v2871, 112
        %v3849 = vpop.permute.xlu0 %3848
        %3850 = vrot.lane.b32.xlu0 %v2872, 112
        %v3851 = vpop.permute.xlu0 %3850
        %3852 = vrot.lane.b32.xlu0 %v2873, 112
        %v3853 = vpop.permute.xlu0 %3852
        %3854 = vrot.lane.b32.xlu0 %v2874, 112
        %v3855 = vpop.permute.xlu0 %3854
        %3856 = vrot.lane.b32.xlu0 %v2875, 112
        %v3857 = vpop.permute.xlu0 %3856
        %3858 = vrot.lane.b32.xlu0 %v2876, 112
        %v3859 = vpop.permute.xlu0 %3858
        %3860 = vrot.lane.b32.xlu0 %v2877, 112
        %v3861 = vpop.permute.xlu0 %3860
        %3862 = vrot.lane.b32.xlu0 %v2878, 112
        %v3863 = vpop.permute.xlu0 %3862
        %3864 = vrot.lane.b32.xlu0 %v2879, 112
        %v3865 = vpop.permute.xlu0 %3864
        %3866 = vrot.lane.b32.xlu0 %v2880, 112
        %v3867 = vpop.permute.xlu0 %3866
        %3868 = vrot.lane.b32.xlu0 %v2881, 112
        %v3869 = vpop.permute.xlu0 %3868
        %3870 = vrot.lane.b32.xlu0 %v2882, 112
        %v3871 = vpop.permute.xlu0 %3870
        %3872 = vrot.lane.b32.xlu0 %v2883, 112
        %v3873 = vpop.permute.xlu0 %3872
        %3874 = vrot.lane.b32.xlu0 %v2884, 112
        %v3875 = vpop.permute.xlu0 %3874
        %3876 = vrot.lane.b32.xlu0 %v2885, 112
        %v3877 = vpop.permute.xlu0 %3876
        %3878 = vrot.lane.b32.xlu0 %v2886, 112
        %v3879 = vpop.permute.xlu0 %3878
        %3880 = vrot.lane.b32.xlu0 %v2887, 112
        %v3881 = vpop.permute.xlu0 %3880
        %3882 = vrot.lane.b32.xlu0 %v2888, 112
        %v3883 = vpop.permute.xlu0 %3882
        %3884 = vrot.lane.b32.xlu0 %v2889, 112
        %v3885 = vpop.permute.xlu0 %3884
        %3886 = vrot.lane.b32.xlu0 %v2890, 112
        %v3887 = vpop.permute.xlu0 %3886
        %3888 = vrot.lane.b32.xlu0 %v2891, 112
        %v3889 = vpop.permute.xlu0 %3888
        %3890 = vrot.lane.b32.xlu0 %v2892, 112
        %v3891 = vpop.permute.xlu0 %3890
        %3892 = vrot.lane.b32.xlu0 %v2893, 112
        %v3893 = vpop.permute.xlu0 %3892
        %3894 = vrot.lane.b32.xlu0 %v2992, 112
        %v3895 = vpop.permute.xlu0 %3894
        %3896 = vrot.lane.b32.xlu0 %v2993, 112
        %v3897 = vpop.permute.xlu0 %3896
        %3898 = vrot.lane.b32.xlu0 %v3062, 112
        %v3899 = vpop.permute.xlu0 %3898
        %3900 = vrot.lane.b32.xlu0 %v3063, 112
        %v3901 = vpop.permute.xlu0 %3900
        %v3934 = vsel %vm340, %v2830, %v3131
        %v3935 = vsel %vm340, %v2831, %v3133
        %v3936 = vsel %vm340, %v2832, %v3135
        %v3937 = vsel %vm340, %v2833, %v3137
        %v3938 = vsel %vm340, %v2834, %v3139
        %v3939 = vsel %vm340, %v2835, %v3141
        %v3940 = vsel %vm340, %v2836, %v3143
        %v3941 = vsel %vm340, %v2837, %v3145
        %v3942 = vsel %vm340, %v2838, %v3147
        %v3943 = vsel %vm340, %v2839, %v3149
        %v3944 = vsel %vm340, %v2840, %v3151
        %v3945 = vsel %vm340, %v2841, %v3153
        %v3946 = vsel %vm340, %v2842, %v3155
        %v3947 = vsel %vm340, %v2843, %v3157
        %v3948 = vsel %vm340, %v2844, %v3159
        %v3949 = vsel %vm340, %v2845, %v3161
        %v3950 = vsel %vm340, %v2846, %v3163
        %v3951 = vsel %vm340, %v2847, %v3165
        %v3952 = vsel %vm340, %v2848, %v3167
        %v3953 = vsel %vm340, %v2849, %v3169
        %v3954 = vsel %vm340, %v2850, %v3171
        %v3955 = vsel %vm340, %v2851, %v3173
        %v3956 = vsel %vm340, %v2852, %v3175
        %v3957 = vsel %vm340, %v2853, %v3177
        %v3958 = vsel %vm340, %v2854, %v3179
        %v3959 = vsel %vm340, %v2855, %v3181
        %v3960 = vsel %vm340, %v2856, %v3183
        %v3961 = vsel %vm340, %v2857, %v3185
        %v3962 = vsel %vm340, %v2858, %v3187
        %v3963 = vsel %vm340, %v2859, %v3189
        %v3964 = vsel %vm340, %v2860, %v3191
        %v3965 = vsel %vm340, %v2861, %v3193
        %v3966 = vsel %vm2519, %v3934, %v3259
        %v3967 = vsel %vm2519, %v3935, %v3261
        %v3968 = vsel %vm2519, %v3936, %v3263
        %v3969 = vsel %vm2519, %v3937, %v3265
        %v3970 = vsel %vm2519, %v3938, %v3267
        %v3971 = vsel %vm2519, %v3939, %v3269
        %v3972 = vsel %vm2519, %v3940, %v3271
        %v3973 = vsel %vm2519, %v3941, %v3273
        %v3974 = vsel %vm2519, %v3942, %v3275
        %v3975 = vsel %vm2519, %v3943, %v3277
        %v3976 = vsel %vm2519, %v3944, %v3279
        %v3977 = vsel %vm2519, %v3945, %v3281
        %v3978 = vsel %vm2519, %v3946, %v3283
        %v3979 = vsel %vm2519, %v3947, %v3285
        %v3980 = vsel %vm2519, %v3948, %v3287
        %v3981 = vsel %vm2519, %v3949, %v3289
        %v3982 = vsel %vm2519, %v3950, %v3291
        %v3983 = vsel %vm2519, %v3951, %v3293
        %v3984 = vsel %vm2519, %v3952, %v3295
        %v3985 = vsel %vm2519, %v3953, %v3297
        %v3986 = vsel %vm2519, %v3954, %v3299
        %v3987 = vsel %vm2519, %v3955, %v3301
        %v3988 = vsel %vm2519, %v3956, %v3303
        %v3989 = vsel %vm2519, %v3957, %v3305
        %v3990 = vsel %vm2519, %v3958, %v3307
        %v3991 = vsel %vm2519, %v3959, %v3309
        %v3992 = vsel %vm2519, %v3960, %v3311
        %v3993 = vsel %vm2519, %v3961, %v3313
        %v3994 = vsel %vm2519, %v3962, %v3315
        %v3995 = vsel %vm2519, %v3963, %v3317
        %v3996 = vsel %vm2519, %v3964, %v3319
        %v3997 = vsel %vm2519, %v3965, %v3321
        %vm3998 = vcmask 392192
        %v3999 = vsel %vm3998, %v3966, %v3387
        %v4000 = vsel %vm3998, %v3967, %v3389
        %v4001 = vsel %vm3998, %v3968, %v3391
        %v4002 = vsel %vm3998, %v3969, %v3393
        %v4003 = vsel %vm3998, %v3970, %v3395
        %v4004 = vsel %vm3998, %v3971, %v3397
        %v4005 = vsel %vm3998, %v3972, %v3399
        %v4006 = vsel %vm3998, %v3973, %v3401
        %v4007 = vsel %vm3998, %v3974, %v3403
        %v4008 = vsel %vm3998, %v3975, %v3405
        %v4009 = vsel %vm3998, %v3976, %v3407
        %v4010 = vsel %vm3998, %v3977, %v3409
        %v4011 = vsel %vm3998, %v3978, %v3411
        %v4012 = vsel %vm3998, %v3979, %v3413
        %v4013 = vsel %vm3998, %v3980, %v3415
        %v4014 = vsel %vm3998, %v3981, %v3417
        %v4015 = vsel %vm3998, %v3982, %v3419
        %v4016 = vsel %vm3998, %v3983, %v3421
        %v4017 = vsel %vm3998, %v3984, %v3423
        %v4018 = vsel %vm3998, %v3985, %v3425
        %v4019 = vsel %vm3998, %v3986, %v3427
        %v4020 = vsel %vm3998, %v3987, %v3429
        %v4021 = vsel %vm3998, %v3988, %v3431
        %v4022 = vsel %vm3998, %v3989, %v3433
        %v4023 = vsel %vm3998, %v3990, %v3435
        %v4024 = vsel %vm3998, %v3991, %v3437
        %v4025 = vsel %vm3998, %v3992, %v3439
        %v4026 = vsel %vm3998, %v3993, %v3441
        %v4027 = vsel %vm3998, %v3994, %v3443
        %v4028 = vsel %vm3998, %v3995, %v3445
        %v4029 = vsel %vm3998, %v3996, %v3447
        %v4030 = vsel %vm3998, %v3997, %v3449
        %vm4031 = vcmask 523264
        %v4032 = vsel %vm4031, %v3999, %v3485
        %v4033 = vsel %vm4031, %v4000, %v3487
        %v4034 = vsel %vm4031, %v4001, %v3489
        %v4035 = vsel %vm4031, %v4002, %v3491
        %v4036 = vsel %vm4031, %v4003, %v3493
        %v4037 = vsel %vm4031, %v4004, %v3495
        %v4038 = vsel %vm4031, %v4005, %v3497
        %v4039 = vsel %vm4031, %v4006, %v3499
        %v4040 = vsel %vm4031, %v4007, %v3501
        %v4041 = vsel %vm4031, %v4008, %v3503
        %v4042 = vsel %vm4031, %v4009, %v3505
        %v4043 = vsel %vm4031, %v4010, %v3507
        %v4044 = vsel %vm4031, %v4011, %v3509
        %v4045 = vsel %vm4031, %v4012, %v3511
        %v4046 = vsel %vm4031, %v4013, %v3513
        %v4047 = vsel %vm4031, %v4014, %v3515
        %v4048 = vsel %vm4031, %v4015, %v3517
        %v4049 = vsel %vm4031, %v4016, %v3519
        %v4050 = vsel %vm4031, %v4017, %v3521
        %v4051 = vsel %vm4031, %v4018, %v3523
        %v4052 = vsel %vm4031, %v4019, %v3525
        %v4053 = vsel %vm4031, %v4020, %v3527
        %v4054 = vsel %vm4031, %v4021, %v3529
        %v4055 = vsel %vm4031, %v4022, %v3531
        %v4056 = vsel %vm4031, %v4023, %v3533
        %v4057 = vsel %vm4031, %v4024, %v3535
        %v4058 = vsel %vm4031, %v4025, %v3537
        %v4059 = vsel %vm4031, %v4026, %v3539
        %v4060 = vsel %vm4031, %v4027, %v3541
        %v4061 = vsel %vm4031, %v4028, %v3543
        %v4062 = vsel %vm4031, %v4029, %v3545
        %v4063 = vsel %vm4031, %v4030, %v3547
        %vm4064 = vcmask 654336
        %v4065 = vsel %vm4064, %v4032, %v3613
        %v4066 = vsel %vm4064, %v4033, %v3615
        %v4067 = vsel %vm4064, %v4034, %v3617
        %v4068 = vsel %vm4064, %v4035, %v3619
        %v4069 = vsel %vm4064, %v4036, %v3621
        %v4070 = vsel %vm4064, %v4037, %v3623
        %v4071 = vsel %vm4064, %v4038, %v3625
        %v4072 = vsel %vm4064, %v4039, %v3627
        %v4073 = vsel %vm4064, %v4040, %v3629
        %v4074 = vsel %vm4064, %v4041, %v3631
        %v4075 = vsel %vm4064, %v4042, %v3633
        %v4076 = vsel %vm4064, %v4043, %v3635
        %v4077 = vsel %vm4064, %v4044, %v3637
        %v4078 = vsel %vm4064, %v4045, %v3639
        %v4079 = vsel %vm4064, %v4046, %v3641
        %v4080 = vsel %vm4064, %v4047, %v3643
        %v4081 = vsel %vm4064, %v4048, %v3645
        %v4082 = vsel %vm4064, %v4049, %v3647
        %v4083 = vsel %vm4064, %v4050, %v3649
        %v4084 = vsel %vm4064, %v4051, %v3651
        %v4085 = vsel %vm4064, %v4052, %v3653
        %v4086 = vsel %vm4064, %v4053, %v3655
        %v4087 = vsel %vm4064, %v4054, %v3657
        %v4088 = vsel %vm4064, %v4055, %v3659
        %v4089 = vsel %vm4064, %v4056, %v3661
        %v4090 = vsel %vm4064, %v4057, %v3663
        %v4091 = vsel %vm4064, %v4058, %v3665
        %v4092 = vsel %vm4064, %v4059, %v3667
        %v4093 = vsel %vm4064, %v4060, %v3669
        %v4094 = vsel %vm4064, %v4061, %v3671
        %v4095 = vsel %vm4064, %v4062, %v3673
        %v4096 = vsel %vm4064, %v4063, %v3675
        %vm4097 = vcmask 785408
        %v4098 = vsel %vm4097, %v4065, %v3741
        %v4099 = vsel %vm4097, %v4066, %v3743
        %v4100 = vsel %vm4097, %v4067, %v3745
        %v4101 = vsel %vm4097, %v4068, %v3747
        %v4102 = vsel %vm4097, %v4069, %v3749
        %v4103 = vsel %vm4097, %v4070, %v3751
        %v4104 = vsel %vm4097, %v4071, %v3753
        %v4105 = vsel %vm4097, %v4072, %v3755
        %v4106 = vsel %vm4097, %v4073, %v3757
        %v4107 = vsel %vm4097, %v4074, %v3759
        %v4108 = vsel %vm4097, %v4075, %v3761
        %v4109 = vsel %vm4097, %v4076, %v3763
        %v4110 = vsel %vm4097, %v4077, %v3765
        %v4111 = vsel %vm4097, %v4078, %v3767
        %v4112 = vsel %vm4097, %v4079, %v3769
        %v4113 = vsel %vm4097, %v4080, %v3771
        %v4114 = vsel %vm4097, %v4081, %v3773
        %v4115 = vsel %vm4097, %v4082, %v3775
        %v4116 = vsel %vm4097, %v4083, %v3777
        %v4117 = vsel %vm4097, %v4084, %v3779
        %v4118 = vsel %vm4097, %v4085, %v3781
        %v4119 = vsel %vm4097, %v4086, %v3783
        %v4120 = vsel %vm4097, %v4087, %v3785
        %v4121 = vsel %vm4097, %v4088, %v3787
        %v4122 = vsel %vm4097, %v4089, %v3789
        %v4123 = vsel %vm4097, %v4090, %v3791
        %v4124 = vsel %vm4097, %v4091, %v3793
        %v4125 = vsel %vm4097, %v4092, %v3795
        %v4126 = vsel %vm4097, %v4093, %v3797
        %v4127 = vsel %vm4097, %v4094, %v3799
        %v4128 = vsel %vm4097, %v4095, %v3801
        %v4129 = vsel %vm4097, %v4096, %v3803
        %vm4130 = vcmask 916480
        %v4131 = vsel %vm4130, %v4098, %v3839
        %v4132 = vsel %vm4130, %v4099, %v3841
        %v4133 = vsel %vm4130, %v4100, %v3843
        %v4134 = vsel %vm4130, %v4101, %v3845
        %v4135 = vsel %vm4130, %v4102, %v3847
        %v4136 = vsel %vm4130, %v4103, %v3849
        %v4137 = vsel %vm4130, %v4104, %v3851
        %v4138 = vsel %vm4130, %v4105, %v3853
        %v4139 = vsel %vm4130, %v4106, %v3855
        %v4140 = vsel %vm4130, %v4107, %v3857
        %v4141 = vsel %vm4130, %v4108, %v3859
        %v4142 = vsel %vm4130, %v4109, %v3861
        %v4143 = vsel %vm4130, %v4110, %v3863
        %v4144 = vsel %vm4130, %v4111, %v3865
        %v4145 = vsel %vm4130, %v4112, %v3867
        %v4146 = vsel %vm4130, %v4113, %v3869
        %v4147 = vsel %vm4130, %v4114, %v3871
        %v4148 = vsel %vm4130, %v4115, %v3873
        %v4149 = vsel %vm4130, %v4116, %v3875
        %v4150 = vsel %vm4130, %v4117, %v3877
        %v4151 = vsel %vm4130, %v4118, %v3879
        %v4152 = vsel %vm4130, %v4119, %v3881
        %v4153 = vsel %vm4130, %v4120, %v3883
        %v4154 = vsel %vm4130, %v4121, %v3885
        %v4155 = vsel %vm4130, %v4122, %v3887
        %v4156 = vsel %vm4130, %v4123, %v3889
        %v4157 = vsel %vm4130, %v4124, %v3891
        %v4158 = vsel %vm4130, %v4125, %v3893
        %v4159 = vsel %vm4130, %v4126, %v3895
        %v4160 = vsel %vm4130, %v4127, %v3897
        %v4161 = vsel %vm4130, %v4128, %v3899
        %v4162 = vsel %vm4130, %v4129, %v3901
        %v4163 = vpack.c.bf16 %v4132, %v4131
        %v4164 = vpack.c.bf16 %v3067, %v3066
        %v4165 = vpack.c.bf16 %v4134, %v4133
        %v4166 = vpack.c.bf16 %v3069, %v3068
        %v4167 = vpack.c.bf16 %v4136, %v4135
        %v4168 = vpack.c.bf16 %v3071, %v3070
        %v4169 = vpack.c.bf16 %v4138, %v4137
        %v4170 = vpack.c.bf16 %v3073, %v3072
        %v4171 = vpack.c.bf16 %v4140, %v4139
        %v4172 = vpack.c.bf16 %v3075, %v3074
        %v4173 = vpack.c.bf16 %v4142, %v4141
        %v4174 = vpack.c.bf16 %v3077, %v3076
        %v4175 = vpack.c.bf16 %v4144, %v4143
        %v4176 = vpack.c.bf16 %v3079, %v3078
        %v4177 = vpack.c.bf16 %v4146, %v4145
        %v4178 = vpack.c.bf16 %v3081, %v3080
        %v4179 = vpack.c.bf16 %v4148, %v4147
        %v4180 = vpack.c.bf16 %v3083, %v3082
        %v4181 = vpack.c.bf16 %v4150, %v4149
        %v4182 = vpack.c.bf16 %v3085, %v3084
        %v4183 = vpack.c.bf16 %v4152, %v4151
        %v4184 = vpack.c.bf16 %v3087, %v3086
        %v4185 = vpack.c.bf16 %v4154, %v4153
        %v4186 = vpack.c.bf16 %v3089, %v3088
        %v4187 = vpack.c.bf16 %v4156, %v4155
        %v4188 = vpack.c.bf16 %v3091, %v3090
        %v4189 = vpack.c.bf16 %v4158, %v4157
        %v4190 = vpack.c.bf16 %v3093, %v3092
        %v4191 = vpack.c.bf16 %v4160, %v4159
        %v4192 = vpack.c.bf16 %v3095, %v3094
        %v4193 = vpack.c.bf16 %v4162, %v4161
        %v4194 = vpack.c.bf16 %v3097, %v3096
        %v4195 = vld [vmem:[%s3] sm:$0xf]
        %v4196 = vld [vmem:[%s3 + $0x4] sm:$0xf]
        %v4197 = vld [vmem:[%s3 + $0x8] sm:$0xf]
        %v4198 = vld [vmem:[%s3 + $0xc] sm:$0xf]
        %v4199 = vld [vmem:[%s3 + $0x10] sm:$0xf]
        %v4200 = vld [vmem:[%s3 + $0x14] sm:$0xf]
        %v4201 = vld [vmem:[%s3 + $0x18] sm:$0xf]
        %v4202 = vld [vmem:[%s3 + $0x1c] sm:$0xf]
        %v4203 = vld [vmem:[%s3 + $0x20] sm:$0xf]
        %v4204 = vld [vmem:[%s3 + $0x24] sm:$0xf]
        %v4205 = vld [vmem:[%s3 + $0x28] sm:$0xf]
        %v4206 = vld [vmem:[%s3 + $0x2c] sm:$0xf]
        %v4207 = vld [vmem:[%s3 + $0x30] sm:$0xf]
        %v4208 = vld [vmem:[%s3 + $0x34] sm:$0xf]
        %v4209 = vld [vmem:[%s3 + $0x38] sm:$0xf]
        %v4210 = vld [vmem:[%s3 + $0x3c] sm:$0xf]
        %v4211 = vld [vmem:[%s3 + $0x40] sm:$0xf]
        %v4212 = vld [vmem:[%s3 + $0x44] sm:$0xf]
        %v4213 = vld [vmem:[%s4] sm:$0x1]
        %v4215 = vperm.slane %v4213, 0
        %v4235 = vunpack.c.l.b16 %v4195
        %v4236 = vunpack.c.l.b16 %v4196
        %v4237 = vunpack.c.l.b16 %v4197
        %v4238 = vunpack.c.l.b16 %v4198
        %v4239 = vunpack.c.l.b16 %v4199
        %v4240 = vunpack.c.l.b16 %v4200
        %v4241 = vunpack.c.l.b16 %v4201
        %v4242 = vunpack.c.l.b16 %v4202
        %v4243 = vunpack.c.l.b16 %v4203
        %v4244 = vunpack.c.l.b16 %v4204
        %v4245 = vunpack.c.l.b16 %v4205
        %v4246 = vunpack.c.l.b16 %v4206
        %v4247 = vunpack.c.l.b16 %v4207
        %v4248 = vunpack.c.l.b16 %v4208
        %v4249 = vunpack.c.l.b16 %v4209
        %v4250 = vunpack.c.l.b16 %v4210
        %v4251 = vunpack.c.l.b16 %v4211
        %v4252 = vunpack.c.l.b16 %v4212
        %v4253 = vpack.c.b16 %v4236, %v4235
        %v4254 = vpack.c.b16 %v4238, %v4237
        %v4255 = vpack.c.b16 %v4240, %v4239
        %v4256 = vpack.c.b16 %v4242, %v4241
        %v4257 = vpack.c.b16 %v4244, %v4243
        %v4258 = vpack.c.b16 %v4246, %v4245
        %v4259 = vpack.c.b16 %v4248, %v4247
        %v4260 = vpack.c.b16 %v4250, %v4249
        %v4261 = vpack.c.b16 %v4252, %v4251
        %v4272 = vsel %vm340, %v4164, 0
        %v4275 = vsel %vm340, %v4166, 0
        %v4278 = vsel %vm340, %v4168, 0
        %v4281 = vsel %vm340, %v4170, 0
        %v4284 = vsel %vm340, %v4172, 0
        %v4287 = vsel %vm340, %v4174, 0
        %v4290 = vsel %vm340, %v4176, 0
        %v4293 = vsel %vm340, %v4178, 0
        %v4296 = vsel %vm340, %v4180, 0
        %v4299 = vsel %vm340, %v4182, 0
        %v4302 = vsel %vm340, %v4184, 0
        %v4305 = vsel %vm340, %v4186, 0
        %v4308 = vsel %vm340, %v4188, 0
        %v4311 = vsel %vm340, %v4190, 0
        %v4314 = vsel %vm340, %v4192, 0
        %v4317 = vsel %vm340, %v4194, 0
        %4319 = vmatpush.bf16.msra.mxu0 %v4260
        %4320 = vmatpush.bf16.msra.mxu0 %v4259
        %4321 = vmatpush.bf16.msra.mxu0 %v4258
        %4322 = vmatpush.bf16.msra.mxu0 %v4257
        %4323 = vmatpush.bf16.msra.mxu0 %v4256
        %4324 = vmatpush.bf16.msra.mxu0 %v4255
        %4325 = vmatpush.bf16.msra.mxu0 %v4254
        %4326 = vmatpush.bf16.msra.mxu0 %v4253
        %4327 = vmatmul.bf16.gmra.mxu0 %v4163
        %v4328 = vpop.f32.mrf.mxu0
        %v4329 = vadd.f32 %v4215, %v4328
        %v4330 = vpop.f32.mrf.mxu0
        %v4331 = vadd.f32 %v4215, %v4330
        %4332 = vmatmul.bf16.gmra.mxu0 %v4165
        %v4333 = vpop.f32.mrf.mxu0
        %v4334 = vadd.f32 %v4215, %v4333
        %v4335 = vpop.f32.mrf.mxu0
        %v4336 = vadd.f32 %v4215, %v4335
        %4337 = vmatmul.bf16.gmra.mxu0 %v4167
        %v4338 = vpop.f32.mrf.mxu0
        %v4339 = vadd.f32 %v4215, %v4338
        %v4340 = vpop.f32.mrf.mxu0
        %v4341 = vadd.f32 %v4215, %v4340
        %4342 = vmatmul.bf16.gmra.mxu0 %v4169
        %v4343 = vpop.f32.mrf.mxu0
        %v4344 = vadd.f32 %v4215, %v4343
        %v4345 = vpop.f32.mrf.mxu0
        %v4346 = vadd.f32 %v4215, %v4345
        %4347 = vmatmul.bf16.gmra.mxu0 %v4171
        %v4348 = vpop.f32.mrf.mxu0
        %v4349 = vadd.f32 %v4215, %v4348
        %v4350 = vpop.f32.mrf.mxu0
        %v4351 = vadd.f32 %v4215, %v4350
        %4352 = vmatmul.bf16.gmra.mxu0 %v4173
        %v4353 = vpop.f32.mrf.mxu0
        %v4354 = vadd.f32 %v4215, %v4353
        %v4355 = vpop.f32.mrf.mxu0
        %v4356 = vadd.f32 %v4215, %v4355
        %4357 = vmatmul.bf16.gmra.mxu0 %v4175
        %v4358 = vpop.f32.mrf.mxu0
        %v4359 = vadd.f32 %v4215, %v4358
        %v4360 = vpop.f32.mrf.mxu0
        %v4361 = vadd.f32 %v4215, %v4360
        %4362 = vmatmul.bf16.gmra.mxu0 %v4177
        %v4363 = vpop.f32.mrf.mxu0
        %v4364 = vadd.f32 %v4215, %v4363
        %v4365 = vpop.f32.mrf.mxu0
        %v4366 = vadd.f32 %v4215, %v4365
        %4367 = vmatmul.bf16.gmra.mxu0 %v4179
        %v4368 = vpop.f32.mrf.mxu0
        %v4369 = vadd.f32 %v4215, %v4368
        %v4370 = vpop.f32.mrf.mxu0
        %v4371 = vadd.f32 %v4215, %v4370
        %4372 = vmatmul.bf16.gmra.mxu0 %v4181
        %v4373 = vpop.f32.mrf.mxu0
        %v4374 = vadd.f32 %v4215, %v4373
        %v4375 = vpop.f32.mrf.mxu0
        %v4376 = vadd.f32 %v4215, %v4375
        %4377 = vmatmul.bf16.gmra.mxu0 %v4183
        %v4378 = vpop.f32.mrf.mxu0
        %v4379 = vadd.f32 %v4215, %v4378
        %v4380 = vpop.f32.mrf.mxu0
        %v4381 = vadd.f32 %v4215, %v4380
        %4382 = vmatmul.bf16.gmra.mxu0 %v4185
        %v4383 = vpop.f32.mrf.mxu0
        %v4384 = vadd.f32 %v4215, %v4383
        %v4385 = vpop.f32.mrf.mxu0
        %v4386 = vadd.f32 %v4215, %v4385
        %4387 = vmatmul.bf16.gmra.mxu0 %v4187
        %v4388 = vpop.f32.mrf.mxu0
        %v4389 = vadd.f32 %v4215, %v4388
        %v4390 = vpop.f32.mrf.mxu0
        %v4391 = vadd.f32 %v4215, %v4390
        %4392 = vmatmul.bf16.gmra.mxu0 %v4189
        %v4393 = vpop.f32.mrf.mxu0
        %v4394 = vadd.f32 %v4215, %v4393
        %v4395 = vpop.f32.mrf.mxu0
        %v4396 = vadd.f32 %v4215, %v4395
        %4397 = vmatmul.bf16.gmra.mxu0 %v4191
        %v4398 = vpop.f32.mrf.mxu0
        %v4399 = vadd.f32 %v4215, %v4398
        %v4400 = vpop.f32.mrf.mxu0
        %v4401 = vadd.f32 %v4215, %v4400
        %4402 = vmatmul.bf16.gmra.mxu0 %v4193
        %v4403 = vpop.f32.mrf.mxu0
        %v4404 = vadd.f32 %v4215, %v4403
        %v4405 = vpop.f32.mrf.mxu0
        %v4406 = vadd.f32 %v4215, %v4405
        %4407 = vdwg.mxu0
        %4408 = vmatpush.bf16.msra.mxu0 0
        %4409 = vmatpush.bf16.msra.mxu0 0
        %4410 = vmatpush.bf16.msra.mxu0 0
        %4411 = vmatpush.bf16.msra.mxu0 0
        %4412 = vmatpush.bf16.msra.mxu0 0
        %4413 = vmatpush.bf16.msra.mxu0 0
        %4414 = vmatpush.bf16.msra.mxu0 0
        %4415 = vmatpush.bf16.msra.mxu0 %v4261
        %4416 = vmatmul.bf16.gmra.mxu0 %v4272
        %v4417 = vpop.f32.mrf.mxu0
        %v4418 = vadd.f32 %v4329, %v4417
        %v4419 = vpop.f32.mrf.mxu0
        %v4420 = vadd.f32 %v4331, %v4419
        %4421 = vmatmul.bf16.gmra.mxu0 %v4275
        %v4422 = vpop.f32.mrf.mxu0
        %v4423 = vadd.f32 %v4334, %v4422
        %v4424 = vpop.f32.mrf.mxu0
        %v4425 = vadd.f32 %v4336, %v4424
        %4426 = vmatmul.bf16.gmra.mxu0 %v4278
        %v4427 = vpop.f32.mrf.mxu0
        %v4428 = vadd.f32 %v4339, %v4427
        %v4429 = vpop.f32.mrf.mxu0
        %v4430 = vadd.f32 %v4341, %v4429
        %4431 = vmatmul.bf16.gmra.mxu0 %v4281
        %v4432 = vpop.f32.mrf.mxu0
        %v4433 = vadd.f32 %v4344, %v4432
        %v4434 = vpop.f32.mrf.mxu0
        %v4435 = vadd.f32 %v4346, %v4434
        %4436 = vmatmul.bf16.gmra.mxu0 %v4284
        %v4437 = vpop.f32.mrf.mxu0
        %v4438 = vadd.f32 %v4349, %v4437
        %v4439 = vpop.f32.mrf.mxu0
        %v4440 = vadd.f32 %v4351, %v4439
        %4441 = vmatmul.bf16.gmra.mxu0 %v4287
        %v4442 = vpop.f32.mrf.mxu0
        %v4443 = vadd.f32 %v4354, %v4442
        %v4444 = vpop.f32.mrf.mxu0
        %v4445 = vadd.f32 %v4356, %v4444
        %4446 = vmatmul.bf16.gmra.mxu0 %v4290
        %v4447 = vpop.f32.mrf.mxu0
        %v4448 = vadd.f32 %v4359, %v4447
        %v4449 = vpop.f32.mrf.mxu0
        %v4450 = vadd.f32 %v4361, %v4449
        %4451 = vmatmul.bf16.gmra.mxu0 %v4293
        %v4452 = vpop.f32.mrf.mxu0
        %v4453 = vadd.f32 %v4364, %v4452
        %v4454 = vpop.f32.mrf.mxu0
        %v4455 = vadd.f32 %v4366, %v4454
        %4456 = vmatmul.bf16.gmra.mxu0 %v4296
        %v4457 = vpop.f32.mrf.mxu0
        %v4458 = vadd.f32 %v4369, %v4457
        %v4459 = vpop.f32.mrf.mxu0
        %v4460 = vadd.f32 %v4371, %v4459
        %4461 = vmatmul.bf16.gmra.mxu0 %v4299
        %v4462 = vpop.f32.mrf.mxu0
        %v4463 = vadd.f32 %v4374, %v4462
        %v4464 = vpop.f32.mrf.mxu0
        %v4465 = vadd.f32 %v4376, %v4464
        %4466 = vmatmul.bf16.gmra.mxu0 %v4302
        %v4467 = vpop.f32.mrf.mxu0
        %v4468 = vadd.f32 %v4379, %v4467
        %v4469 = vpop.f32.mrf.mxu0
        %v4470 = vadd.f32 %v4381, %v4469
        %4471 = vmatmul.bf16.gmra.mxu0 %v4305
        %v4472 = vpop.f32.mrf.mxu0
        %v4473 = vadd.f32 %v4384, %v4472
        %v4474 = vpop.f32.mrf.mxu0
        %v4475 = vadd.f32 %v4386, %v4474
        %4476 = vmatmul.bf16.gmra.mxu0 %v4308
        %v4477 = vpop.f32.mrf.mxu0
        %v4478 = vadd.f32 %v4389, %v4477
        %v4479 = vpop.f32.mrf.mxu0
        %v4480 = vadd.f32 %v4391, %v4479
        %4481 = vmatmul.bf16.gmra.mxu0 %v4311
        %v4482 = vpop.f32.mrf.mxu0
        %v4483 = vadd.f32 %v4394, %v4482
        %v4484 = vpop.f32.mrf.mxu0
        %v4485 = vadd.f32 %v4396, %v4484
        %4486 = vmatmul.bf16.gmra.mxu0 %v4314
        %v4487 = vpop.f32.mrf.mxu0
        %v4488 = vadd.f32 %v4399, %v4487
        %v4489 = vpop.f32.mrf.mxu0
        %v4490 = vadd.f32 %v4401, %v4489
        %4491 = vmatmul.bf16.gmra.mxu0 %v4317
        %v4492 = vpop.f32.mrf.mxu0
        %v4493 = vadd.f32 %v4404, %v4492
        %v4494 = vpop.f32.mrf.mxu0
        %v4495 = vadd.f32 %v4406, %v4494
        %4496 = vdwg.mxu0
        %v4497 = vmax.f32 %v4418, 0.0
        %v4498 = vmax.f32 %v4420, 0.0
        %v4499 = vmax.f32 %v4423, 0.0
        %v4500 = vmax.f32 %v4425, 0.0
        %v4501 = vmax.f32 %v4428, 0.0
        %v4502 = vmax.f32 %v4430, 0.0
        %v4503 = vmax.f32 %v4433, 0.0
        %v4504 = vmax.f32 %v4435, 0.0
        %v4505 = vmax.f32 %v4438, 0.0
        %v4506 = vmax.f32 %v4440, 0.0
        %v4507 = vmax.f32 %v4443, 0.0
        %v4508 = vmax.f32 %v4445, 0.0
        %v4509 = vmax.f32 %v4448, 0.0
        %v4510 = vmax.f32 %v4450, 0.0
        %v4511 = vmax.f32 %v4453, 0.0
        %v4512 = vmax.f32 %v4455, 0.0
        %v4513 = vmax.f32 %v4458, 0.0
        %v4514 = vmax.f32 %v4460, 0.0
        %v4515 = vmax.f32 %v4463, 0.0
        %v4516 = vmax.f32 %v4465, 0.0
        %v4517 = vmax.f32 %v4468, 0.0
        %v4518 = vmax.f32 %v4470, 0.0
        %v4519 = vmax.f32 %v4473, 0.0
        %v4520 = vmax.f32 %v4475, 0.0
        %v4521 = vmax.f32 %v4478, 0.0
        %v4522 = vmax.f32 %v4480, 0.0
        %v4523 = vmax.f32 %v4483, 0.0
        %v4524 = vmax.f32 %v4485, 0.0
        %v4525 = vmax.f32 %v4488, 0.0
        %v4526 = vmax.f32 %v4490, 0.0
        %v4527 = vmax.f32 %v4493, 0.0
        %v4528 = vmax.f32 %v4495, 0.0
        %4529 = vst.msk [vmem:[#allocation4 + $0x18] sm:$0xff] %vm340, %v4497
        %4530 = vst.msk [vmem:[#allocation4 + $0x20] sm:$0xff] %vm340, %v4498
        %4531 = vst.msk [vmem:[#allocation4 + $0x28] sm:$0xff] %vm340, %v4499
        %4532 = vst.msk [vmem:[#allocation4 + $0x30] sm:$0xff] %vm340, %v4500
        %4533 = vst.msk [vmem:[#allocation4 + $0x38] sm:$0xff] %vm340, %v4501
        %4534 = vst.msk [vmem:[#allocation4 + $0x40] sm:$0xff] %vm340, %v4502
        %4535 = vst.msk [vmem:[#allocation4 + $0x48] sm:$0xff] %vm340, %v4503
        %4536 = vst.msk [vmem:[#allocation4 + $0x50] sm:$0xff] %vm340, %v4504
        %4537 = vst.msk [vmem:[#allocation4 + $0x58] sm:$0xff] %vm340, %v4505
        %4538 = vst.msk [vmem:[#allocation4 + $0x60] sm:$0xff] %vm340, %v4506
        %4539 = vst.msk [vmem:[#allocation4 + $0x68] sm:$0xff] %vm340, %v4507
        %4540 = vst.msk [vmem:[#allocation4 + $0x70] sm:$0xff] %vm340, %v4508
        %4541 = vst.msk [vmem:[#allocation4 + $0x78] sm:$0xff] %vm340, %v4509
        %4542 = vst.msk [vmem:[#allocation4 + $0x80] sm:$0xff] %vm340, %v4510
        %4543 = vst.msk [vmem:[#allocation4 + $0x88] sm:$0xff] %vm340, %v4511
        %4544 = vst.msk [vmem:[#allocation4 + $0x90] sm:$0xff] %vm340, %v4512
        %4545 = vst.msk [vmem:[#allocation4 + $0x98] sm:$0xff] %vm340, %v4513
        %4546 = vst.msk [vmem:[#allocation4 + $0xa0] sm:$0xff] %vm340, %v4514
        %4547 = vst.msk [vmem:[#allocation4 + $0xa8] sm:$0xff] %vm340, %v4515
        %4548 = vst.msk [vmem:[#allocation4 + $0xb0] sm:$0xff] %vm340, %v4516
        %4549 = vst.msk [vmem:[#allocation4 + $0xb8] sm:$0xff] %vm340, %v4517
        %4550 = vst.msk [vmem:[#allocation4 + $0xc0] sm:$0xff] %vm340, %v4518
        %4551 = vst.msk [vmem:[#allocation4 + $0xc8] sm:$0xff] %vm340, %v4519
        %4552 = vst.msk [vmem:[#allocation4 + $0xd0] sm:$0xff] %vm340, %v4520
        %4553 = vst.msk [vmem:[#allocation4 + $0xd8] sm:$0xff] %vm340, %v4521
        %4554 = vst.msk [vmem:[#allocation4 + $0xe0] sm:$0xff] %vm340, %v4522
        %4555 = vst.msk [vmem:[#allocation4 + $0xe8] sm:$0xff] %vm340, %v4523
        %4556 = vst.msk [vmem:[#allocation4 + $0xf0] sm:$0xff] %vm340, %v4524
        %4557 = vst.msk [vmem:[#allocation4 + $0xf8] sm:$0xff] %vm340, %v4525
        %4558 = vst.msk [vmem:[#allocation4 + $0x100] sm:$0xff] %vm340, %v4526
        %4559 = vst.msk [vmem:[#allocation4 + $0x108] sm:$0xff] %vm340, %v4527
        %4560 = vst.msk [vmem:[#allocation4 + $0x110] sm:$0xff] %vm340, %v4528
        %v4561 = vld [vmem:[#allocation4 + $0x7] sm:$0xff]
        %v4562 = vld [vmem:[#allocation4 + $0xf] sm:$0xff]
        %v4563 = vld [vmem:[#allocation4 + $0x17] sm:$0xff]
        %v4564 = vld [vmem:[#allocation4 + $0x1f] sm:$0xff]
        %v4565 = vld [vmem:[#allocation4 + $0x27] sm:$0xff]
        %v4566 = vld [vmem:[#allocation4 + $0x2f] sm:$0xff]
        %v4567 = vld [vmem:[#allocation4 + $0x37] sm:$0xff]
        %v4568 = vld [vmem:[#allocation4 + $0x3f] sm:$0xff]
        %v4569 = vld [vmem:[#allocation4 + $0x47] sm:$0xff]
        %v4570 = vld [vmem:[#allocation4 + $0x4f] sm:$0xff]
        %v4571 = vld [vmem:[#allocation4 + $0x57] sm:$0xff]
        %v4572 = vld [vmem:[#allocation4 + $0x5f] sm:$0xff]
        %v4573 = vld [vmem:[#allocation4 + $0x67] sm:$0xff]
        %v4574 = vld [vmem:[#allocation4 + $0x6f] sm:$0xff]
        %v4575 = vld [vmem:[#allocation4 + $0x77] sm:$0xff]
        %v4576 = vld [vmem:[#allocation4 + $0x7f] sm:$0xff]
        %v4577 = vld [vmem:[#allocation4 + $0x87] sm:$0xff]
        %v4578 = vld [vmem:[#allocation4 + $0x8f] sm:$0xff]
        %v4579 = vld [vmem:[#allocation4 + $0x97] sm:$0xff]
        %v4580 = vld [vmem:[#allocation4 + $0x9f] sm:$0xff]
        %v4581 = vld [vmem:[#allocation4 + $0xa7] sm:$0xff]
        %v4582 = vld [vmem:[#allocation4 + $0xaf] sm:$0xff]
        %v4583 = vld [vmem:[#allocation4 + $0xb7] sm:$0xff]
        %v4584 = vld [vmem:[#allocation4 + $0xbf] sm:$0xff]
        %v4585 = vld [vmem:[#allocation4 + $0xc7] sm:$0xff]
        %v4586 = vld [vmem:[#allocation4 + $0xcf] sm:$0xff]
        %v4587 = vld [vmem:[#allocation4 + $0xd7] sm:$0xff]
        %v4588 = vld [vmem:[#allocation4 + $0xdf] sm:$0xff]
        %v4589 = vld [vmem:[#allocation4 + $0xe7] sm:$0xff]
        %v4590 = vld [vmem:[#allocation4 + $0xef] sm:$0xff]
        %v4591 = vld [vmem:[#allocation4 + $0xf7] sm:$0xff]
        %v4592 = vld [vmem:[#allocation4 + $0xff] sm:$0xff]
        %v4593 = vsel %vm962, %v4561, 0.0
        %v4594 = vsel %vm963, %v4562, 0.0
        %v4595 = vsel %vm964, %v4563, 0.0
        %v4596 = vsel %vm965, %v4564, 0.0
        %v4597 = vsel %vm966, %v4565, 0.0
        %v4598 = vsel %vm967, %v4566, 0.0
        %v4599 = vsel %vm968, %v4567, 0.0
        %v4600 = vsel %vm969, %v4568, 0.0
        %v4601 = vsel %vm970, %v4569, 0.0
        %v4602 = vsel %vm971, %v4570, 0.0
        %v4603 = vsel %vm972, %v4571, 0.0
        %v4604 = vsel %vm973, %v4572, 0.0
        %v4605 = vsel %vm974, %v4573, 0.0
        %v4606 = vsel %vm975, %v4574, 0.0
        %v4607 = vsel %vm976, %v4575, 0.0
        %v4608 = vsel %vm977, %v4576, 0.0
        %v4609 = vsel %vm978, %v4577, 0.0
        %v4610 = vsel %vm979, %v4578, 0.0
        %v4611 = vsel %vm980, %v4579, 0.0
        %v4612 = vsel %vm981, %v4580, 0.0
        %v4613 = vsel %vm982, %v4581, 0.0
        %v4614 = vsel %vm983, %v4582, 0.0
        %v4615 = vsel %vm984, %v4583, 0.0
        %v4616 = vsel %vm985, %v4584, 0.0
        %v4617 = vsel %vm986, %v4585, 0.0
        %v4618 = vsel %vm987, %v4586, 0.0
        %v4619 = vsel %vm988, %v4587, 0.0
        %v4620 = vsel %vm989, %v4588, 0.0
        %v4621 = vsel %vm990, %v4589, 0.0
        %v4622 = vsel %vm991, %v4590, 0.0
        %v4623 = vsel %vm992, %v4591, 0.0
        %v4624 = vsel %vm993, %v4592, 0.0
        %v4625 = vld [vmem:[#allocation4 + $0x8] sm:$0xff]
        %v4626 = vld [vmem:[#allocation4 + $0x10] sm:$0xff]
        %v4627 = vld [vmem:[#allocation4 + $0x18] sm:$0xff]
        %v4628 = vld [vmem:[#allocation4 + $0x20] sm:$0xff]
        %v4629 = vld [vmem:[#allocation4 + $0x28] sm:$0xff]
        %v4630 = vld [vmem:[#allocation4 + $0x30] sm:$0xff]
        %v4631 = vld [vmem:[#allocation4 + $0x38] sm:$0xff]
        %v4632 = vld [vmem:[#allocation4 + $0x40] sm:$0xff]
        %v4633 = vld [vmem:[#allocation4 + $0x48] sm:$0xff]
        %v4634 = vld [vmem:[#allocation4 + $0x50] sm:$0xff]
        %v4635 = vld [vmem:[#allocation4 + $0x58] sm:$0xff]
        %v4636 = vld [vmem:[#allocation4 + $0x60] sm:$0xff]
        %v4637 = vld [vmem:[#allocation4 + $0x68] sm:$0xff]
        %v4638 = vld [vmem:[#allocation4 + $0x70] sm:$0xff]
        %v4639 = vld [vmem:[#allocation4 + $0x78] sm:$0xff]
        %v4640 = vld [vmem:[#allocation4 + $0x80] sm:$0xff]
        %v4641 = vld [vmem:[#allocation4 + $0x88] sm:$0xff]
        %v4642 = vld [vmem:[#allocation4 + $0x90] sm:$0xff]
        %v4643 = vld [vmem:[#allocation4 + $0x98] sm:$0xff]
        %v4644 = vld [vmem:[#allocation4 + $0xa0] sm:$0xff]
        %v4645 = vld [vmem:[#allocation4 + $0xa8] sm:$0xff]
        %v4646 = vld [vmem:[#allocation4 + $0xb0] sm:$0xff]
        %v4647 = vld [vmem:[#allocation4 + $0xb8] sm:$0xff]
        %v4648 = vld [vmem:[#allocation4 + $0xc0] sm:$0xff]
        %v4649 = vld [vmem:[#allocation4 + $0xc8] sm:$0xff]
        %v4650 = vld [vmem:[#allocation4 + $0xd0] sm:$0xff]
        %v4651 = vld [vmem:[#allocation4 + $0xd8] sm:$0xff]
        %v4652 = vld [vmem:[#allocation4 + $0xe0] sm:$0xff]
        %v4653 = vld [vmem:[#allocation4 + $0xe8] sm:$0xff]
        %v4654 = vld [vmem:[#allocation4 + $0xf0] sm:$0xff]
        %v4655 = vld [vmem:[#allocation4 + $0xf8] sm:$0xff]
        %v4656 = vld [vmem:[#allocation4 + $0x100] sm:$0xff]
        %v4657 = vld [vmem:[#allocation4 + $0x9] sm:$0xff]
        %v4658 = vld [vmem:[#allocation4 + $0x11] sm:$0xff]
        %v4659 = vld [vmem:[#allocation4 + $0x19] sm:$0xff]
        %v4660 = vld [vmem:[#allocation4 + $0x21] sm:$0xff]
        %v4661 = vld [vmem:[#allocation4 + $0x29] sm:$0xff]
        %v4662 = vld [vmem:[#allocation4 + $0x31] sm:$0xff]
        %v4663 = vld [vmem:[#allocation4 + $0x39] sm:$0xff]
        %v4664 = vld [vmem:[#allocation4 + $0x41] sm:$0xff]
        %v4665 = vld [vmem:[#allocation4 + $0x49] sm:$0xff]
        %v4666 = vld [vmem:[#allocation4 + $0x51] sm:$0xff]
        %v4667 = vld [vmem:[#allocation4 + $0x59] sm:$0xff]
        %v4668 = vld [vmem:[#allocation4 + $0x61] sm:$0xff]
        %v4669 = vld [vmem:[#allocation4 + $0x69] sm:$0xff]
        %v4670 = vld [vmem:[#allocation4 + $0x71] sm:$0xff]
        %v4671 = vld [vmem:[#allocation4 + $0x79] sm:$0xff]
        %v4672 = vld [vmem:[#allocation4 + $0x81] sm:$0xff]
        %v4673 = vld [vmem:[#allocation4 + $0x89] sm:$0xff]
        %v4674 = vld [vmem:[#allocation4 + $0x91] sm:$0xff]
        %v4675 = vld [vmem:[#allocation4 + $0x99] sm:$0xff]
        %v4676 = vld [vmem:[#allocation4 + $0xa1] sm:$0xff]
        %v4677 = vld [vmem:[#allocation4 + $0xa9] sm:$0xff]
        %v4678 = vld [vmem:[#allocation4 + $0xb1] sm:$0xff]
        %v4679 = vld [vmem:[#allocation4 + $0xb9] sm:$0xff]
        %v4680 = vld [vmem:[#allocation4 + $0xc1] sm:$0xff]
        %v4681 = vld [vmem:[#allocation4 + $0xc9] sm:$0xff]
        %v4682 = vld [vmem:[#allocation4 + $0xd1] sm:$0xff]
        %v4683 = vld [vmem:[#allocation4 + $0xd9] sm:$0xff]
        %v4684 = vld [vmem:[#allocation4 + $0xe1] sm:$0xff]
        %v4685 = vld [vmem:[#allocation4 + $0xe9] sm:$0xff]
        %v4686 = vld [vmem:[#allocation4 + $0xf1] sm:$0xff]
        %v4687 = vld [vmem:[#allocation4 + $0xf9] sm:$0xff]
        %v4688 = vld [vmem:[#allocation4 + $0x101] sm:$0xff]
        %v4689 = vsel %vm1122, %v4657, 0.0
        %v4690 = vsel %vm1123, %v4658, 0.0
        %v4691 = vsel %vm1124, %v4659, 0.0
        %v4692 = vsel %vm1125, %v4660, 0.0
        %v4693 = vsel %vm1126, %v4661, 0.0
        %v4694 = vsel %vm1127, %v4662, 0.0
        %v4695 = vsel %vm1128, %v4663, 0.0
        %v4696 = vsel %vm1129, %v4664, 0.0
        %v4697 = vsel %vm1130, %v4665, 0.0
        %v4698 = vsel %vm1131, %v4666, 0.0
        %v4699 = vsel %vm1132, %v4667, 0.0
        %v4700 = vsel %vm1133, %v4668, 0.0
        %v4701 = vsel %vm1134, %v4669, 0.0
        %v4702 = vsel %vm1135, %v4670, 0.0
        %v4703 = vsel %vm1136, %v4671, 0.0
        %v4704 = vsel %vm1137, %v4672, 0.0
        %v4705 = vsel %vm1138, %v4673, 0.0
        %v4706 = vsel %vm1139, %v4674, 0.0
        %v4707 = vsel %vm1140, %v4675, 0.0
        %v4708 = vsel %vm1141, %v4676, 0.0
        %v4709 = vsel %vm1142, %v4677, 0.0
        %v4710 = vsel %vm1143, %v4678, 0.0
        %v4711 = vsel %vm1144, %v4679, 0.0
        %v4712 = vsel %vm1145, %v4680, 0.0
        %v4713 = vsel %vm1146, %v4681, 0.0
        %v4714 = vsel %vm1147, %v4682, 0.0
        %v4715 = vsel %vm1148, %v4683, 0.0
        %v4716 = vsel %vm1149, %v4684, 0.0
        %v4717 = vsel %vm1150, %v4685, 0.0
        %v4718 = vsel %vm1151, %v4686, 0.0
        %v4719 = vsel %vm1152, %v4687, 0.0
        %v4720 = vsel %vm1153, %v4688, 0.0
        %v4721 = vld [vmem:[#allocation4 + $0x107] sm:$0xff]
        %v4722 = vld [vmem:[#allocation4 + $0x10f] sm:$0xff]
        %v4723 = vsel %vm962, %v4563, 0.0
        %v4724 = vsel %vm963, %v4564, 0.0
        %v4725 = vsel %vm964, %v4565, 0.0
        %v4726 = vsel %vm965, %v4566, 0.0
        %v4727 = vsel %vm966, %v4567, 0.0
        %v4728 = vsel %vm967, %v4568, 0.0
        %v4729 = vsel %vm968, %v4569, 0.0
        %v4730 = vsel %vm969, %v4570, 0.0
        %v4731 = vsel %vm970, %v4571, 0.0
        %v4732 = vsel %vm971, %v4572, 0.0
        %v4733 = vsel %vm972, %v4573, 0.0
        %v4734 = vsel %vm973, %v4574, 0.0
        %v4735 = vsel %vm974, %v4575, 0.0
        %v4736 = vsel %vm975, %v4576, 0.0
        %v4737 = vsel %vm976, %v4577, 0.0
        %v4738 = vsel %vm977, %v4578, 0.0
        %v4739 = vsel %vm978, %v4579, 0.0
        %v4740 = vsel %vm979, %v4580, 0.0
        %v4741 = vsel %vm980, %v4581, 0.0
        %v4742 = vsel %vm981, %v4582, 0.0
        %v4743 = vsel %vm982, %v4583, 0.0
        %v4744 = vsel %vm983, %v4584, 0.0
        %v4745 = vsel %vm984, %v4585, 0.0
        %v4746 = vsel %vm985, %v4586, 0.0
        %v4747 = vsel %vm986, %v4587, 0.0
        %v4748 = vsel %vm987, %v4588, 0.0
        %v4749 = vsel %vm988, %v4589, 0.0
        %v4750 = vsel %vm989, %v4590, 0.0
        %v4751 = vsel %vm990, %v4591, 0.0
        %v4752 = vsel %vm991, %v4592, 0.0
        %v4753 = vsel %vm992, %v4721, 0.0
        %v4754 = vsel %vm993, %v4722, 0.0
        %v4755 = vld [vmem:[#allocation4 + $0x108] sm:$0xff]
        %v4756 = vld [vmem:[#allocation4 + $0x110] sm:$0xff]
        %v4757 = vld [vmem:[#allocation4 + $0x109] sm:$0xff]
        %v4758 = vld [vmem:[#allocation4 + $0x111] sm:$0xff]
        %v4759 = vsel %vm1122, %v4659, 0.0
        %v4760 = vsel %vm1123, %v4660, 0.0
        %v4761 = vsel %vm1124, %v4661, 0.0
        %v4762 = vsel %vm1125, %v4662, 0.0
        %v4763 = vsel %vm1126, %v4663, 0.0
        %v4764 = vsel %vm1127, %v4664, 0.0
        %v4765 = vsel %vm1128, %v4665, 0.0
        %v4766 = vsel %vm1129, %v4666, 0.0
        %v4767 = vsel %vm1130, %v4667, 0.0
        %v4768 = vsel %vm1131, %v4668, 0.0
        %v4769 = vsel %vm1132, %v4669, 0.0
        %v4770 = vsel %vm1133, %v4670, 0.0
        %v4771 = vsel %vm1134, %v4671, 0.0
        %v4772 = vsel %vm1135, %v4672, 0.0
        %v4773 = vsel %vm1136, %v4673, 0.0
        %v4774 = vsel %vm1137, %v4674, 0.0
        %v4775 = vsel %vm1138, %v4675, 0.0
        %v4776 = vsel %vm1139, %v4676, 0.0
        %v4777 = vsel %vm1140, %v4677, 0.0
        %v4778 = vsel %vm1141, %v4678, 0.0
        %v4779 = vsel %vm1142, %v4679, 0.0
        %v4780 = vsel %vm1143, %v4680, 0.0
        %v4781 = vsel %vm1144, %v4681, 0.0
        %v4782 = vsel %vm1145, %v4682, 0.0
        %v4783 = vsel %vm1146, %v4683, 0.0
        %v4784 = vsel %vm1147, %v4684, 0.0
        %v4785 = vsel %vm1148, %v4685, 0.0
        %v4786 = vsel %vm1149, %v4686, 0.0
        %v4787 = vsel %vm1150, %v4687, 0.0
        %v4788 = vsel %vm1151, %v4688, 0.0
        %v4789 = vsel %vm1152, %v4757, 0.0
        %v4790 = vsel %vm1153, %v4758, 0.0
        %v4791 = vld [vmem:[#allocation4 + $0x117] sm:$0xff]
        %v4792 = vld [vmem:[#allocation4 + $0x11f] sm:$0xff]
        %v4793 = vsel %vm962, %v4565, 0.0
        %v4794 = vsel %vm963, %v4566, 0.0
        %v4795 = vsel %vm964, %v4567, 0.0
        %v4796 = vsel %vm965, %v4568, 0.0
        %v4797 = vsel %vm966, %v4569, 0.0
        %v4798 = vsel %vm967, %v4570, 0.0
        %v4799 = vsel %vm968, %v4571, 0.0
        %v4800 = vsel %vm969, %v4572, 0.0
        %v4801 = vsel %vm970, %v4573, 0.0
        %v4802 = vsel %vm971, %v4574, 0.0
        %v4803 = vsel %vm972, %v4575, 0.0
        %v4804 = vsel %vm973, %v4576, 0.0
        %v4805 = vsel %vm974, %v4577, 0.0
        %v4806 = vsel %vm975, %v4578, 0.0
        %v4807 = vsel %vm976, %v4579, 0.0
        %v4808 = vsel %vm977, %v4580, 0.0
        %v4809 = vsel %vm978, %v4581, 0.0
        %v4810 = vsel %vm979, %v4582, 0.0
        %v4811 = vsel %vm980, %v4583, 0.0
        %v4812 = vsel %vm981, %v4584, 0.0
        %v4813 = vsel %vm982, %v4585, 0.0
        %v4814 = vsel %vm983, %v4586, 0.0
        %v4815 = vsel %vm984, %v4587, 0.0
        %v4816 = vsel %vm985, %v4588, 0.0
        %v4817 = vsel %vm986, %v4589, 0.0
        %v4818 = vsel %vm987, %v4590, 0.0
        %v4819 = vsel %vm988, %v4591, 0.0
        %v4820 = vsel %vm989, %v4592, 0.0
        %v4821 = vsel %vm990, %v4721, 0.0
        %v4822 = vsel %vm991, %v4722, 0.0
        %v4823 = vsel %vm992, %v4791, 0.0
        %v4824 = vsel %vm993, %v4792, 0.0
        %v4825 = vld [vmem:[#allocation4 + $0x118] sm:$0xff]
        %v4826 = vld [vmem:[#allocation4 + $0x120] sm:$0xff]
        %v4827 = vld [vmem:[#allocation4 + $0x119] sm:$0xff]
        %v4828 = vld [vmem:[#allocation4 + $0x121] sm:$0xff]
        %v4829 = vsel %vm1122, %v4661, 0.0
        %v4830 = vsel %vm1123, %v4662, 0.0
        %v4831 = vsel %vm1124, %v4663, 0.0
        %v4832 = vsel %vm1125, %v4664, 0.0
        %v4833 = vsel %vm1126, %v4665, 0.0
        %v4834 = vsel %vm1127, %v4666, 0.0
        %v4835 = vsel %vm1128, %v4667, 0.0
        %v4836 = vsel %vm1129, %v4668, 0.0
        %v4837 = vsel %vm1130, %v4669, 0.0
        %v4838 = vsel %vm1131, %v4670, 0.0
        %v4839 = vsel %vm1132, %v4671, 0.0
        %v4840 = vsel %vm1133, %v4672, 0.0
        %v4841 = vsel %vm1134, %v4673, 0.0
        %v4842 = vsel %vm1135, %v4674, 0.0
        %v4843 = vsel %vm1136, %v4675, 0.0
        %v4844 = vsel %vm1137, %v4676, 0.0
        %v4845 = vsel %vm1138, %v4677, 0.0
        %v4846 = vsel %vm1139, %v4678, 0.0
        %v4847 = vsel %vm1140, %v4679, 0.0
        %v4848 = vsel %vm1141, %v4680, 0.0
        %v4849 = vsel %vm1142, %v4681, 0.0
        %v4850 = vsel %vm1143, %v4682, 0.0
        %v4851 = vsel %vm1144, %v4683, 0.0
        %v4852 = vsel %vm1145, %v4684, 0.0
        %v4853 = vsel %vm1146, %v4685, 0.0
        %v4854 = vsel %vm1147, %v4686, 0.0
        %v4855 = vsel %vm1148, %v4687, 0.0
        %v4856 = vsel %vm1149, %v4688, 0.0
        %v4857 = vsel %vm1150, %v4757, 0.0
        %v4858 = vsel %vm1151, %v4758, 0.0
        %v4859 = vsel %vm1152, %v4827, 0.0
        %v4860 = vsel %vm1153, %v4828, 0.0
        %4893 = vrot.lane.b32.xlu0 %v4625, 16
        %v4894 = vpop.permute.xlu0 %4893
        %4895 = vrot.lane.b32.xlu0 %v4626, 16
        %v4896 = vpop.permute.xlu0 %4895
        %4897 = vrot.lane.b32.xlu0 %v4627, 16
        %v4898 = vpop.permute.xlu0 %4897
        %4899 = vrot.lane.b32.xlu0 %v4628, 16
        %v4900 = vpop.permute.xlu0 %4899
        %4901 = vrot.lane.b32.xlu0 %v4629, 16
        %v4902 = vpop.permute.xlu0 %4901
        %4903 = vrot.lane.b32.xlu0 %v4630, 16
        %v4904 = vpop.permute.xlu0 %4903
        %4905 = vrot.lane.b32.xlu0 %v4631, 16
        %v4906 = vpop.permute.xlu0 %4905
        %4907 = vrot.lane.b32.xlu0 %v4632, 16
        %v4908 = vpop.permute.xlu0 %4907
        %4909 = vrot.lane.b32.xlu0 %v4633, 16
        %v4910 = vpop.permute.xlu0 %4909
        %4911 = vrot.lane.b32.xlu0 %v4634, 16
        %v4912 = vpop.permute.xlu0 %4911
        %4913 = vrot.lane.b32.xlu0 %v4635, 16
        %v4914 = vpop.permute.xlu0 %4913
        %4915 = vrot.lane.b32.xlu0 %v4636, 16
        %v4916 = vpop.permute.xlu0 %4915
        %4917 = vrot.lane.b32.xlu0 %v4637, 16
        %v4918 = vpop.permute.xlu0 %4917
        %4919 = vrot.lane.b32.xlu0 %v4638, 16
        %v4920 = vpop.permute.xlu0 %4919
        %4921 = vrot.lane.b32.xlu0 %v4639, 16
        %v4922 = vpop.permute.xlu0 %4921
        %4923 = vrot.lane.b32.xlu0 %v4640, 16
        %v4924 = vpop.permute.xlu0 %4923
        %4925 = vrot.lane.b32.xlu0 %v4641, 16
        %v4926 = vpop.permute.xlu0 %4925
        %4927 = vrot.lane.b32.xlu0 %v4642, 16
        %v4928 = vpop.permute.xlu0 %4927
        %4929 = vrot.lane.b32.xlu0 %v4643, 16
        %v4930 = vpop.permute.xlu0 %4929
        %4931 = vrot.lane.b32.xlu0 %v4644, 16
        %v4932 = vpop.permute.xlu0 %4931
        %4933 = vrot.lane.b32.xlu0 %v4645, 16
        %v4934 = vpop.permute.xlu0 %4933
        %4935 = vrot.lane.b32.xlu0 %v4646, 16
        %v4936 = vpop.permute.xlu0 %4935
        %4937 = vrot.lane.b32.xlu0 %v4647, 16
        %v4938 = vpop.permute.xlu0 %4937
        %4939 = vrot.lane.b32.xlu0 %v4648, 16
        %v4940 = vpop.permute.xlu0 %4939
        %4941 = vrot.lane.b32.xlu0 %v4649, 16
        %v4942 = vpop.permute.xlu0 %4941
        %4943 = vrot.lane.b32.xlu0 %v4650, 16
        %v4944 = vpop.permute.xlu0 %4943
        %4945 = vrot.lane.b32.xlu0 %v4651, 16
        %v4946 = vpop.permute.xlu0 %4945
        %4947 = vrot.lane.b32.xlu0 %v4652, 16
        %v4948 = vpop.permute.xlu0 %4947
        %4949 = vrot.lane.b32.xlu0 %v4653, 16
        %v4950 = vpop.permute.xlu0 %4949
        %4951 = vrot.lane.b32.xlu0 %v4654, 16
        %v4952 = vpop.permute.xlu0 %4951
        %4953 = vrot.lane.b32.xlu0 %v4655, 16
        %v4954 = vpop.permute.xlu0 %4953
        %4955 = vrot.lane.b32.xlu0 %v4656, 16
        %v4956 = vpop.permute.xlu0 %4955
        %5021 = vrot.lane.b32.xlu0 %v4689, 32
        %v5022 = vpop.permute.xlu0 %5021
        %5023 = vrot.lane.b32.xlu0 %v4690, 32
        %v5024 = vpop.permute.xlu0 %5023
        %5025 = vrot.lane.b32.xlu0 %v4691, 32
        %v5026 = vpop.permute.xlu0 %5025
        %5027 = vrot.lane.b32.xlu0 %v4692, 32
        %v5028 = vpop.permute.xlu0 %5027
        %5029 = vrot.lane.b32.xlu0 %v4693, 32
        %v5030 = vpop.permute.xlu0 %5029
        %5031 = vrot.lane.b32.xlu0 %v4694, 32
        %v5032 = vpop.permute.xlu0 %5031
        %5033 = vrot.lane.b32.xlu0 %v4695, 32
        %v5034 = vpop.permute.xlu0 %5033
        %5035 = vrot.lane.b32.xlu0 %v4696, 32
        %v5036 = vpop.permute.xlu0 %5035
        %5037 = vrot.lane.b32.xlu0 %v4697, 32
        %v5038 = vpop.permute.xlu0 %5037
        %5039 = vrot.lane.b32.xlu0 %v4698, 32
        %v5040 = vpop.permute.xlu0 %5039
        %5041 = vrot.lane.b32.xlu0 %v4699, 32
        %v5042 = vpop.permute.xlu0 %5041
        %5043 = vrot.lane.b32.xlu0 %v4700, 32
        %v5044 = vpop.permute.xlu0 %5043
        %5045 = vrot.lane.b32.xlu0 %v4701, 32
        %v5046 = vpop.permute.xlu0 %5045
        %5047 = vrot.lane.b32.xlu0 %v4702, 32
        %v5048 = vpop.permute.xlu0 %5047
        %5049 = vrot.lane.b32.xlu0 %v4703, 32
        %v5050 = vpop.permute.xlu0 %5049
        %5051 = vrot.lane.b32.xlu0 %v4704, 32
        %v5052 = vpop.permute.xlu0 %5051
        %5053 = vrot.lane.b32.xlu0 %v4705, 32
        %v5054 = vpop.permute.xlu0 %5053
        %5055 = vrot.lane.b32.xlu0 %v4706, 32
        %v5056 = vpop.permute.xlu0 %5055
        %5057 = vrot.lane.b32.xlu0 %v4707, 32
        %v5058 = vpop.permute.xlu0 %5057
        %5059 = vrot.lane.b32.xlu0 %v4708, 32
        %v5060 = vpop.permute.xlu0 %5059
        %5061 = vrot.lane.b32.xlu0 %v4709, 32
        %v5062 = vpop.permute.xlu0 %5061
        %5063 = vrot.lane.b32.xlu0 %v4710, 32
        %v5064 = vpop.permute.xlu0 %5063
        %5065 = vrot.lane.b32.xlu0 %v4711, 32
        %v5066 = vpop.permute.xlu0 %5065
        %5067 = vrot.lane.b32.xlu0 %v4712, 32
        %v5068 = vpop.permute.xlu0 %5067
        %5069 = vrot.lane.b32.xlu0 %v4713, 32
        %v5070 = vpop.permute.xlu0 %5069
        %5071 = vrot.lane.b32.xlu0 %v4714, 32
        %v5072 = vpop.permute.xlu0 %5071
        %5073 = vrot.lane.b32.xlu0 %v4715, 32
        %v5074 = vpop.permute.xlu0 %5073
        %5075 = vrot.lane.b32.xlu0 %v4716, 32
        %v5076 = vpop.permute.xlu0 %5075
        %5077 = vrot.lane.b32.xlu0 %v4717, 32
        %v5078 = vpop.permute.xlu0 %5077
        %5079 = vrot.lane.b32.xlu0 %v4718, 32
        %v5080 = vpop.permute.xlu0 %5079
        %5081 = vrot.lane.b32.xlu0 %v4719, 32
        %v5082 = vpop.permute.xlu0 %5081
        %5083 = vrot.lane.b32.xlu0 %v4720, 32
        %v5084 = vpop.permute.xlu0 %5083
        %5149 = vrot.lane.b32.xlu0 %v4723, 48
        %v5150 = vpop.permute.xlu0 %5149
        %5151 = vrot.lane.b32.xlu0 %v4724, 48
        %v5152 = vpop.permute.xlu0 %5151
        %5153 = vrot.lane.b32.xlu0 %v4725, 48
        %v5154 = vpop.permute.xlu0 %5153
        %5155 = vrot.lane.b32.xlu0 %v4726, 48
        %v5156 = vpop.permute.xlu0 %5155
        %5157 = vrot.lane.b32.xlu0 %v4727, 48
        %v5158 = vpop.permute.xlu0 %5157
        %5159 = vrot.lane.b32.xlu0 %v4728, 48
        %v5160 = vpop.permute.xlu0 %5159
        %5161 = vrot.lane.b32.xlu0 %v4729, 48
        %v5162 = vpop.permute.xlu0 %5161
        %5163 = vrot.lane.b32.xlu0 %v4730, 48
        %v5164 = vpop.permute.xlu0 %5163
        %5165 = vrot.lane.b32.xlu0 %v4731, 48
        %v5166 = vpop.permute.xlu0 %5165
        %5167 = vrot.lane.b32.xlu0 %v4732, 48
        %v5168 = vpop.permute.xlu0 %5167
        %5169 = vrot.lane.b32.xlu0 %v4733, 48
        %v5170 = vpop.permute.xlu0 %5169
        %5171 = vrot.lane.b32.xlu0 %v4734, 48
        %v5172 = vpop.permute.xlu0 %5171
        %5173 = vrot.lane.b32.xlu0 %v4735, 48
        %v5174 = vpop.permute.xlu0 %5173
        %5175 = vrot.lane.b32.xlu0 %v4736, 48
        %v5176 = vpop.permute.xlu0 %5175
        %5177 = vrot.lane.b32.xlu0 %v4737, 48
        %v5178 = vpop.permute.xlu0 %5177
        %5179 = vrot.lane.b32.xlu0 %v4738, 48
        %v5180 = vpop.permute.xlu0 %5179
        %5181 = vrot.lane.b32.xlu0 %v4739, 48
        %v5182 = vpop.permute.xlu0 %5181
        %5183 = vrot.lane.b32.xlu0 %v4740, 48
        %v5184 = vpop.permute.xlu0 %5183
        %5185 = vrot.lane.b32.xlu0 %v4741, 48
        %v5186 = vpop.permute.xlu0 %5185
        %5187 = vrot.lane.b32.xlu0 %v4742, 48
        %v5188 = vpop.permute.xlu0 %5187
        %5189 = vrot.lane.b32.xlu0 %v4743, 48
        %v5190 = vpop.permute.xlu0 %5189
        %5191 = vrot.lane.b32.xlu0 %v4744, 48
        %v5192 = vpop.permute.xlu0 %5191
        %5193 = vrot.lane.b32.xlu0 %v4745, 48
        %v5194 = vpop.permute.xlu0 %5193
        %5195 = vrot.lane.b32.xlu0 %v4746, 48
        %v5196 = vpop.permute.xlu0 %5195
        %5197 = vrot.lane.b32.xlu0 %v4747, 48
        %v5198 = vpop.permute.xlu0 %5197
        %5199 = vrot.lane.b32.xlu0 %v4748, 48
        %v5200 = vpop.permute.xlu0 %5199
        %5201 = vrot.lane.b32.xlu0 %v4749, 48
        %v5202 = vpop.permute.xlu0 %5201
        %5203 = vrot.lane.b32.xlu0 %v4750, 48
        %v5204 = vpop.permute.xlu0 %5203
        %5205 = vrot.lane.b32.xlu0 %v4751, 48
        %v5206 = vpop.permute.xlu0 %5205
        %5207 = vrot.lane.b32.xlu0 %v4752, 48
        %v5208 = vpop.permute.xlu0 %5207
        %5209 = vrot.lane.b32.xlu0 %v4753, 48
        %v5210 = vpop.permute.xlu0 %5209
        %5211 = vrot.lane.b32.xlu0 %v4754, 48
        %v5212 = vpop.permute.xlu0 %5211
        %5247 = vrot.lane.b32.xlu0 %v4627, 64
        %v5248 = vpop.permute.xlu0 %5247
        %5249 = vrot.lane.b32.xlu0 %v4628, 64
        %v5250 = vpop.permute.xlu0 %5249
        %5251 = vrot.lane.b32.xlu0 %v4629, 64
        %v5252 = vpop.permute.xlu0 %5251
        %5253 = vrot.lane.b32.xlu0 %v4630, 64
        %v5254 = vpop.permute.xlu0 %5253
        %5255 = vrot.lane.b32.xlu0 %v4631, 64
        %v5256 = vpop.permute.xlu0 %5255
        %5257 = vrot.lane.b32.xlu0 %v4632, 64
        %v5258 = vpop.permute.xlu0 %5257
        %5259 = vrot.lane.b32.xlu0 %v4633, 64
        %v5260 = vpop.permute.xlu0 %5259
        %5261 = vrot.lane.b32.xlu0 %v4634, 64
        %v5262 = vpop.permute.xlu0 %5261
        %5263 = vrot.lane.b32.xlu0 %v4635, 64
        %v5264 = vpop.permute.xlu0 %5263
        %5265 = vrot.lane.b32.xlu0 %v4636, 64
        %v5266 = vpop.permute.xlu0 %5265
        %5267 = vrot.lane.b32.xlu0 %v4637, 64
        %v5268 = vpop.permute.xlu0 %5267
        %5269 = vrot.lane.b32.xlu0 %v4638, 64
        %v5270 = vpop.permute.xlu0 %5269
        %5271 = vrot.lane.b32.xlu0 %v4639, 64
        %v5272 = vpop.permute.xlu0 %5271
        %5273 = vrot.lane.b32.xlu0 %v4640, 64
        %v5274 = vpop.permute.xlu0 %5273
        %5275 = vrot.lane.b32.xlu0 %v4641, 64
        %v5276 = vpop.permute.xlu0 %5275
        %5277 = vrot.lane.b32.xlu0 %v4642, 64
        %v5278 = vpop.permute.xlu0 %5277
        %5279 = vrot.lane.b32.xlu0 %v4643, 64
        %v5280 = vpop.permute.xlu0 %5279
        %5281 = vrot.lane.b32.xlu0 %v4644, 64
        %v5282 = vpop.permute.xlu0 %5281
        %5283 = vrot.lane.b32.xlu0 %v4645, 64
        %v5284 = vpop.permute.xlu0 %5283
        %5285 = vrot.lane.b32.xlu0 %v4646, 64
        %v5286 = vpop.permute.xlu0 %5285
        %5287 = vrot.lane.b32.xlu0 %v4647, 64
        %v5288 = vpop.permute.xlu0 %5287
        %5289 = vrot.lane.b32.xlu0 %v4648, 64
        %v5290 = vpop.permute.xlu0 %5289
        %5291 = vrot.lane.b32.xlu0 %v4649, 64
        %v5292 = vpop.permute.xlu0 %5291
        %5293 = vrot.lane.b32.xlu0 %v4650, 64
        %v5294 = vpop.permute.xlu0 %5293
        %5295 = vrot.lane.b32.xlu0 %v4651, 64
        %v5296 = vpop.permute.xlu0 %5295
        %5297 = vrot.lane.b32.xlu0 %v4652, 64
        %v5298 = vpop.permute.xlu0 %5297
        %5299 = vrot.lane.b32.xlu0 %v4653, 64
        %v5300 = vpop.permute.xlu0 %5299
        %5301 = vrot.lane.b32.xlu0 %v4654, 64
        %v5302 = vpop.permute.xlu0 %5301
        %5303 = vrot.lane.b32.xlu0 %v4655, 64
        %v5304 = vpop.permute.xlu0 %5303
        %5305 = vrot.lane.b32.xlu0 %v4656, 64
        %v5306 = vpop.permute.xlu0 %5305
        %5307 = vrot.lane.b32.xlu0 %v4755, 64
        %v5308 = vpop.permute.xlu0 %5307
        %5309 = vrot.lane.b32.xlu0 %v4756, 64
        %v5310 = vpop.permute.xlu0 %5309
        %5375 = vrot.lane.b32.xlu0 %v4759, 80
        %v5376 = vpop.permute.xlu0 %5375
        %5377 = vrot.lane.b32.xlu0 %v4760, 80
        %v5378 = vpop.permute.xlu0 %5377
        %5379 = vrot.lane.b32.xlu0 %v4761, 80
        %v5380 = vpop.permute.xlu0 %5379
        %5381 = vrot.lane.b32.xlu0 %v4762, 80
        %v5382 = vpop.permute.xlu0 %5381
        %5383 = vrot.lane.b32.xlu0 %v4763, 80
        %v5384 = vpop.permute.xlu0 %5383
        %5385 = vrot.lane.b32.xlu0 %v4764, 80
        %v5386 = vpop.permute.xlu0 %5385
        %5387 = vrot.lane.b32.xlu0 %v4765, 80
        %v5388 = vpop.permute.xlu0 %5387
        %5389 = vrot.lane.b32.xlu0 %v4766, 80
        %v5390 = vpop.permute.xlu0 %5389
        %5391 = vrot.lane.b32.xlu0 %v4767, 80
        %v5392 = vpop.permute.xlu0 %5391
        %5393 = vrot.lane.b32.xlu0 %v4768, 80
        %v5394 = vpop.permute.xlu0 %5393
        %5395 = vrot.lane.b32.xlu0 %v4769, 80
        %v5396 = vpop.permute.xlu0 %5395
        %5397 = vrot.lane.b32.xlu0 %v4770, 80
        %v5398 = vpop.permute.xlu0 %5397
        %5399 = vrot.lane.b32.xlu0 %v4771, 80
        %v5400 = vpop.permute.xlu0 %5399
        %5401 = vrot.lane.b32.xlu0 %v4772, 80
        %v5402 = vpop.permute.xlu0 %5401
        %5403 = vrot.lane.b32.xlu0 %v4773, 80
        %v5404 = vpop.permute.xlu0 %5403
        %5405 = vrot.lane.b32.xlu0 %v4774, 80
        %v5406 = vpop.permute.xlu0 %5405
        %5407 = vrot.lane.b32.xlu0 %v4775, 80
        %v5408 = vpop.permute.xlu0 %5407
        %5409 = vrot.lane.b32.xlu0 %v4776, 80
        %v5410 = vpop.permute.xlu0 %5409
        %5411 = vrot.lane.b32.xlu0 %v4777, 80
        %v5412 = vpop.permute.xlu0 %5411
        %5413 = vrot.lane.b32.xlu0 %v4778, 80
        %v5414 = vpop.permute.xlu0 %5413
        %5415 = vrot.lane.b32.xlu0 %v4779, 80
        %v5416 = vpop.permute.xlu0 %5415
        %5417 = vrot.lane.b32.xlu0 %v4780, 80
        %v5418 = vpop.permute.xlu0 %5417
        %5419 = vrot.lane.b32.xlu0 %v4781, 80
        %v5420 = vpop.permute.xlu0 %5419
        %5421 = vrot.lane.b32.xlu0 %v4782, 80
        %v5422 = vpop.permute.xlu0 %5421
        %5423 = vrot.lane.b32.xlu0 %v4783, 80
        %v5424 = vpop.permute.xlu0 %5423
        %5425 = vrot.lane.b32.xlu0 %v4784, 80
        %v5426 = vpop.permute.xlu0 %5425
        %5427 = vrot.lane.b32.xlu0 %v4785, 80
        %v5428 = vpop.permute.xlu0 %5427
        %5429 = vrot.lane.b32.xlu0 %v4786, 80
        %v5430 = vpop.permute.xlu0 %5429
        %5431 = vrot.lane.b32.xlu0 %v4787, 80
        %v5432 = vpop.permute.xlu0 %5431
        %5433 = vrot.lane.b32.xlu0 %v4788, 80
        %v5434 = vpop.permute.xlu0 %5433
        %5435 = vrot.lane.b32.xlu0 %v4789, 80
        %v5436 = vpop.permute.xlu0 %5435
        %5437 = vrot.lane.b32.xlu0 %v4790, 80
        %v5438 = vpop.permute.xlu0 %5437
        %5503 = vrot.lane.b32.xlu0 %v4793, 96
        %v5504 = vpop.permute.xlu0 %5503
        %5505 = vrot.lane.b32.xlu0 %v4794, 96
        %v5506 = vpop.permute.xlu0 %5505
        %5507 = vrot.lane.b32.xlu0 %v4795, 96
        %v5508 = vpop.permute.xlu0 %5507
        %5509 = vrot.lane.b32.xlu0 %v4796, 96
        %v5510 = vpop.permute.xlu0 %5509
        %5511 = vrot.lane.b32.xlu0 %v4797, 96
        %v5512 = vpop.permute.xlu0 %5511
        %5513 = vrot.lane.b32.xlu0 %v4798, 96
        %v5514 = vpop.permute.xlu0 %5513
        %5515 = vrot.lane.b32.xlu0 %v4799, 96
        %v5516 = vpop.permute.xlu0 %5515
        %5517 = vrot.lane.b32.xlu0 %v4800, 96
        %v5518 = vpop.permute.xlu0 %5517
        %5519 = vrot.lane.b32.xlu0 %v4801, 96
        %v5520 = vpop.permute.xlu0 %5519
        %5521 = vrot.lane.b32.xlu0 %v4802, 96
        %v5522 = vpop.permute.xlu0 %5521
        %5523 = vrot.lane.b32.xlu0 %v4803, 96
        %v5524 = vpop.permute.xlu0 %5523
        %5525 = vrot.lane.b32.xlu0 %v4804, 96
        %v5526 = vpop.permute.xlu0 %5525
        %5527 = vrot.lane.b32.xlu0 %v4805, 96
        %v5528 = vpop.permute.xlu0 %5527
        %5529 = vrot.lane.b32.xlu0 %v4806, 96
        %v5530 = vpop.permute.xlu0 %5529
        %5531 = vrot.lane.b32.xlu0 %v4807, 96
        %v5532 = vpop.permute.xlu0 %5531
        %5533 = vrot.lane.b32.xlu0 %v4808, 96
        %v5534 = vpop.permute.xlu0 %5533
        %5535 = vrot.lane.b32.xlu0 %v4809, 96
        %v5536 = vpop.permute.xlu0 %5535
        %5537 = vrot.lane.b32.xlu0 %v4810, 96
        %v5538 = vpop.permute.xlu0 %5537
        %5539 = vrot.lane.b32.xlu0 %v4811, 96
        %v5540 = vpop.permute.xlu0 %5539
        %5541 = vrot.lane.b32.xlu0 %v4812, 96
        %v5542 = vpop.permute.xlu0 %5541
        %5543 = vrot.lane.b32.xlu0 %v4813, 96
        %v5544 = vpop.permute.xlu0 %5543
        %5545 = vrot.lane.b32.xlu0 %v4814, 96
        %v5546 = vpop.permute.xlu0 %5545
        %5547 = vrot.lane.b32.xlu0 %v4815, 96
        %v5548 = vpop.permute.xlu0 %5547
        %5549 = vrot.lane.b32.xlu0 %v4816, 96
        %v5550 = vpop.permute.xlu0 %5549
        %5551 = vrot.lane.b32.xlu0 %v4817, 96
        %v5552 = vpop.permute.xlu0 %5551
        %5553 = vrot.lane.b32.xlu0 %v4818, 96
        %v5554 = vpop.permute.xlu0 %5553
        %5555 = vrot.lane.b32.xlu0 %v4819, 96
        %v5556 = vpop.permute.xlu0 %5555
        %5557 = vrot.lane.b32.xlu0 %v4820, 96
        %v5558 = vpop.permute.xlu0 %5557
        %5559 = vrot.lane.b32.xlu0 %v4821, 96
        %v5560 = vpop.permute.xlu0 %5559
        %5561 = vrot.lane.b32.xlu0 %v4822, 96
        %v5562 = vpop.permute.xlu0 %5561
        %5563 = vrot.lane.b32.xlu0 %v4823, 96
        %v5564 = vpop.permute.xlu0 %5563
        %5565 = vrot.lane.b32.xlu0 %v4824, 96
        %v5566 = vpop.permute.xlu0 %5565
        %5601 = vrot.lane.b32.xlu0 %v4629, 112
        %v5602 = vpop.permute.xlu0 %5601
        %5603 = vrot.lane.b32.xlu0 %v4630, 112
        %v5604 = vpop.permute.xlu0 %5603
        %5605 = vrot.lane.b32.xlu0 %v4631, 112
        %v5606 = vpop.permute.xlu0 %5605
        %5607 = vrot.lane.b32.xlu0 %v4632, 112
        %v5608 = vpop.permute.xlu0 %5607
        %5609 = vrot.lane.b32.xlu0 %v4633, 112
        %v5610 = vpop.permute.xlu0 %5609
        %5611 = vrot.lane.b32.xlu0 %v4634, 112
        %v5612 = vpop.permute.xlu0 %5611
        %5613 = vrot.lane.b32.xlu0 %v4635, 112
        %v5614 = vpop.permute.xlu0 %5613
        %5615 = vrot.lane.b32.xlu0 %v4636, 112
        %v5616 = vpop.permute.xlu0 %5615
        %5617 = vrot.lane.b32.xlu0 %v4637, 112
        %v5618 = vpop.permute.xlu0 %5617
        %5619 = vrot.lane.b32.xlu0 %v4638, 112
        %v5620 = vpop.permute.xlu0 %5619
        %5621 = vrot.lane.b32.xlu0 %v4639, 112
        %v5622 = vpop.permute.xlu0 %5621
        %5623 = vrot.lane.b32.xlu0 %v4640, 112
        %v5624 = vpop.permute.xlu0 %5623
        %5625 = vrot.lane.b32.xlu0 %v4641, 112
        %v5626 = vpop.permute.xlu0 %5625
        %5627 = vrot.lane.b32.xlu0 %v4642, 112
        %v5628 = vpop.permute.xlu0 %5627
        %5629 = vrot.lane.b32.xlu0 %v4643, 112
        %v5630 = vpop.permute.xlu0 %5629
        %5631 = vrot.lane.b32.xlu0 %v4644, 112
        %v5632 = vpop.permute.xlu0 %5631
        %5633 = vrot.lane.b32.xlu0 %v4645, 112
        %v5634 = vpop.permute.xlu0 %5633
        %5635 = vrot.lane.b32.xlu0 %v4646, 112
        %v5636 = vpop.permute.xlu0 %5635
        %5637 = vrot.lane.b32.xlu0 %v4647, 112
        %v5638 = vpop.permute.xlu0 %5637
        %5639 = vrot.lane.b32.xlu0 %v4648, 112
        %v5640 = vpop.permute.xlu0 %5639
        %5641 = vrot.lane.b32.xlu0 %v4649, 112
        %v5642 = vpop.permute.xlu0 %5641
        %5643 = vrot.lane.b32.xlu0 %v4650, 112
        %v5644 = vpop.permute.xlu0 %5643
        %5645 = vrot.lane.b32.xlu0 %v4651, 112
        %v5646 = vpop.permute.xlu0 %5645
        %5647 = vrot.lane.b32.xlu0 %v4652, 112
        %v5648 = vpop.permute.xlu0 %5647
        %5649 = vrot.lane.b32.xlu0 %v4653, 112
        %v5650 = vpop.permute.xlu0 %5649
        %5651 = vrot.lane.b32.xlu0 %v4654, 112
        %v5652 = vpop.permute.xlu0 %5651
        %5653 = vrot.lane.b32.xlu0 %v4655, 112
        %v5654 = vpop.permute.xlu0 %5653
        %5655 = vrot.lane.b32.xlu0 %v4656, 112
        %v5656 = vpop.permute.xlu0 %5655
        %5657 = vrot.lane.b32.xlu0 %v4755, 112
        %v5658 = vpop.permute.xlu0 %5657
        %5659 = vrot.lane.b32.xlu0 %v4756, 112
        %v5660 = vpop.permute.xlu0 %5659
        %5661 = vrot.lane.b32.xlu0 %v4825, 112
        %v5662 = vpop.permute.xlu0 %5661
        %5663 = vrot.lane.b32.xlu0 %v4826, 112
        %v5664 = vpop.permute.xlu0 %5663
        %v5697 = vsel %vm340, %v4593, %v4894
        %v5698 = vsel %vm340, %v4594, %v4896
        %v5699 = vsel %vm340, %v4595, %v4898
        %v5700 = vsel %vm340, %v4596, %v4900
        %v5701 = vsel %vm340, %v4597, %v4902
        %v5702 = vsel %vm340, %v4598, %v4904
        %v5703 = vsel %vm340, %v4599, %v4906
        %v5704 = vsel %vm340, %v4600, %v4908
        %v5705 = vsel %vm340, %v4601, %v4910
        %v5706 = vsel %vm340, %v4602, %v4912
        %v5707 = vsel %vm340, %v4603, %v4914
        %v5708 = vsel %vm340, %v4604, %v4916
        %v5709 = vsel %vm340, %v4605, %v4918
        %v5710 = vsel %vm340, %v4606, %v4920
        %v5711 = vsel %vm340, %v4607, %v4922
        %v5712 = vsel %vm340, %v4608, %v4924
        %v5713 = vsel %vm340, %v4609, %v4926
        %v5714 = vsel %vm340, %v4610, %v4928
        %v5715 = vsel %vm340, %v4611, %v4930
        %v5716 = vsel %vm340, %v4612, %v4932
        %v5717 = vsel %vm340, %v4613, %v4934
        %v5718 = vsel %vm340, %v4614, %v4936
        %v5719 = vsel %vm340, %v4615, %v4938
        %v5720 = vsel %vm340, %v4616, %v4940
        %v5721 = vsel %vm340, %v4617, %v4942
        %v5722 = vsel %vm340, %v4618, %v4944
        %v5723 = vsel %vm340, %v4619, %v4946
        %v5724 = vsel %vm340, %v4620, %v4948
        %v5725 = vsel %vm340, %v4621, %v4950
        %v5726 = vsel %vm340, %v4622, %v4952
        %v5727 = vsel %vm340, %v4623, %v4954
        %v5728 = vsel %vm340, %v4624, %v4956
        %v5729 = vsel %vm2519, %v5697, %v5022
        %v5730 = vsel %vm2519, %v5698, %v5024
        %v5731 = vsel %vm2519, %v5699, %v5026
        %v5732 = vsel %vm2519, %v5700, %v5028
        %v5733 = vsel %vm2519, %v5701, %v5030
        %v5734 = vsel %vm2519, %v5702, %v5032
        %v5735 = vsel %vm2519, %v5703, %v5034
        %v5736 = vsel %vm2519, %v5704, %v5036
        %v5737 = vsel %vm2519, %v5705, %v5038
        %v5738 = vsel %vm2519, %v5706, %v5040
        %v5739 = vsel %vm2519, %v5707, %v5042
        %v5740 = vsel %vm2519, %v5708, %v5044
        %v5741 = vsel %vm2519, %v5709, %v5046
        %v5742 = vsel %vm2519, %v5710, %v5048
        %v5743 = vsel %vm2519, %v5711, %v5050
        %v5744 = vsel %vm2519, %v5712, %v5052
        %v5745 = vsel %vm2519, %v5713, %v5054
        %v5746 = vsel %vm2519, %v5714, %v5056
        %v5747 = vsel %vm2519, %v5715, %v5058
        %v5748 = vsel %vm2519, %v5716, %v5060
        %v5749 = vsel %vm2519, %v5717, %v5062
        %v5750 = vsel %vm2519, %v5718, %v5064
        %v5751 = vsel %vm2519, %v5719, %v5066
        %v5752 = vsel %vm2519, %v5720, %v5068
        %v5753 = vsel %vm2519, %v5721, %v5070
        %v5754 = vsel %vm2519, %v5722, %v5072
        %v5755 = vsel %vm2519, %v5723, %v5074
        %v5756 = vsel %vm2519, %v5724, %v5076
        %v5757 = vsel %vm2519, %v5725, %v5078
        %v5758 = vsel %vm2519, %v5726, %v5080
        %v5759 = vsel %vm2519, %v5727, %v5082
        %v5760 = vsel %vm2519, %v5728, %v5084
        %v5761 = vsel %vm3998, %v5729, %v5150
        %v5762 = vsel %vm3998, %v5730, %v5152
        %v5763 = vsel %vm3998, %v5731, %v5154
        %v5764 = vsel %vm3998, %v5732, %v5156
        %v5765 = vsel %vm3998, %v5733, %v5158
        %v5766 = vsel %vm3998, %v5734, %v5160
        %v5767 = vsel %vm3998, %v5735, %v5162
        %v5768 = vsel %vm3998, %v5736, %v5164
        %v5769 = vsel %vm3998, %v5737, %v5166
        %v5770 = vsel %vm3998, %v5738, %v5168
        %v5771 = vsel %vm3998, %v5739, %v5170
        %v5772 = vsel %vm3998, %v5740, %v5172
        %v5773 = vsel %vm3998, %v5741, %v5174
        %v5774 = vsel %vm3998, %v5742, %v5176
        %v5775 = vsel %vm3998, %v5743, %v5178
        %v5776 = vsel %vm3998, %v5744, %v5180
        %v5777 = vsel %vm3998, %v5745, %v5182
        %v5778 = vsel %vm3998, %v5746, %v5184
        %v5779 = vsel %vm3998, %v5747, %v5186
        %v5780 = vsel %vm3998, %v5748, %v5188
        %v5781 = vsel %vm3998, %v5749, %v5190
        %v5782 = vsel %vm3998, %v5750, %v5192
        %v5783 = vsel %vm3998, %v5751, %v5194
        %v5784 = vsel %vm3998, %v5752, %v5196
        %v5785 = vsel %vm3998, %v5753, %v5198
        %v5786 = vsel %vm3998, %v5754, %v5200
        %v5787 = vsel %vm3998, %v5755, %v5202
        %v5788 = vsel %vm3998, %v5756, %v5204
        %v5789 = vsel %vm3998, %v5757, %v5206
        %v5790 = vsel %vm3998, %v5758, %v5208
        %v5791 = vsel %vm3998, %v5759, %v5210
        %v5792 = vsel %vm3998, %v5760, %v5212
        %v5793 = vsel %vm4031, %v5761, %v5248
        %v5794 = vsel %vm4031, %v5762, %v5250
        %v5795 = vsel %vm4031, %v5763, %v5252
        %v5796 = vsel %vm4031, %v5764, %v5254
        %v5797 = vsel %vm4031, %v5765, %v5256
        %v5798 = vsel %vm4031, %v5766, %v5258
        %v5799 = vsel %vm4031, %v5767, %v5260
        %v5800 = vsel %vm4031, %v5768, %v5262
        %v5801 = vsel %vm4031, %v5769, %v5264
        %v5802 = vsel %vm4031, %v5770, %v5266
        %v5803 = vsel %vm4031, %v5771, %v5268
        %v5804 = vsel %vm4031, %v5772, %v5270
        %v5805 = vsel %vm4031, %v5773, %v5272
        %v5806 = vsel %vm4031, %v5774, %v5274
        %v5807 = vsel %vm4031, %v5775, %v5276
        %v5808 = vsel %vm4031, %v5776, %v5278
        %v5809 = vsel %vm4031, %v5777, %v5280
        %v5810 = vsel %vm4031, %v5778, %v5282
        %v5811 = vsel %vm4031, %v5779, %v5284
        %v5812 = vsel %vm4031, %v5780, %v5286
        %v5813 = vsel %vm4031, %v5781, %v5288
        %v5814 = vsel %vm4031, %v5782, %v5290
        %v5815 = vsel %vm4031, %v5783, %v5292
        %v5816 = vsel %vm4031, %v5784, %v5294
        %v5817 = vsel %vm4031, %v5785, %v5296
        %v5818 = vsel %vm4031, %v5786, %v5298
        %v5819 = vsel %vm4031, %v5787, %v5300
        %v5820 = vsel %vm4031, %v5788, %v5302
        %v5821 = vsel %vm4031, %v5789, %v5304
        %v5822 = vsel %vm4031, %v5790, %v5306
        %v5823 = vsel %vm4031, %v5791, %v5308
        %v5824 = vsel %vm4031, %v5792, %v5310
        %v5825 = vsel %vm4064, %v5793, %v5376
        %v5826 = vsel %vm4064, %v5794, %v5378
        %v5827 = vsel %vm4064, %v5795, %v5380
        %v5828 = vsel %vm4064, %v5796, %v5382
        %v5829 = vsel %vm4064, %v5797, %v5384
        %v5830 = vsel %vm4064, %v5798, %v5386
        %v5831 = vsel %vm4064, %v5799, %v5388
        %v5832 = vsel %vm4064, %v5800, %v5390
        %v5833 = vsel %vm4064, %v5801, %v5392
        %v5834 = vsel %vm4064, %v5802, %v5394
        %v5835 = vsel %vm4064, %v5803, %v5396
        %v5836 = vsel %vm4064, %v5804, %v5398
        %v5837 = vsel %vm4064, %v5805, %v5400
        %v5838 = vsel %vm4064, %v5806, %v5402
        %v5839 = vsel %vm4064, %v5807, %v5404
        %v5840 = vsel %vm4064, %v5808, %v5406
        %v5841 = vsel %vm4064, %v5809, %v5408
        %v5842 = vsel %vm4064, %v5810, %v5410
        %v5843 = vsel %vm4064, %v5811, %v5412
        %v5844 = vsel %vm4064, %v5812, %v5414
        %v5845 = vsel %vm4064, %v5813, %v5416
        %v5846 = vsel %vm4064, %v5814, %v5418
        %v5847 = vsel %vm4064, %v5815, %v5420
        %v5848 = vsel %vm4064, %v5816, %v5422
        %v5849 = vsel %vm4064, %v5817, %v5424
        %v5850 = vsel %vm4064, %v5818, %v5426
        %v5851 = vsel %vm4064, %v5819, %v5428
        %v5852 = vsel %vm4064, %v5820, %v5430
        %v5853 = vsel %vm4064, %v5821, %v5432
        %v5854 = vsel %vm4064, %v5822, %v5434
        %v5855 = vsel %vm4064, %v5823, %v5436
        %v5856 = vsel %vm4064, %v5824, %v5438
        %v5857 = vsel %vm4097, %v5825, %v5504
        %v5858 = vsel %vm4097, %v5826, %v5506
        %v5859 = vsel %vm4097, %v5827, %v5508
        %v5860 = vsel %vm4097, %v5828, %v5510
        %v5861 = vsel %vm4097, %v5829, %v5512
        %v5862 = vsel %vm4097, %v5830, %v5514
        %v5863 = vsel %vm4097, %v5831, %v5516
        %v5864 = vsel %vm4097, %v5832, %v5518
        %v5865 = vsel %vm4097, %v5833, %v5520
        %v5866 = vsel %vm4097, %v5834, %v5522
        %v5867 = vsel %vm4097, %v5835, %v5524
        %v5868 = vsel %vm4097, %v5836, %v5526
        %v5869 = vsel %vm4097, %v5837, %v5528
        %v5870 = vsel %vm4097, %v5838, %v5530
        %v5871 = vsel %vm4097, %v5839, %v5532
        %v5872 = vsel %vm4097, %v5840, %v5534
        %v5873 = vsel %vm4097, %v5841, %v5536
        %v5874 = vsel %vm4097, %v5842, %v5538
        %v5875 = vsel %vm4097, %v5843, %v5540
        %v5876 = vsel %vm4097, %v5844, %v5542
        %v5877 = vsel %vm4097, %v5845, %v5544
        %v5878 = vsel %vm4097, %v5846, %v5546
        %v5879 = vsel %vm4097, %v5847, %v5548
        %v5880 = vsel %vm4097, %v5848, %v5550
        %v5881 = vsel %vm4097, %v5849, %v5552
        %v5882 = vsel %vm4097, %v5850, %v5554
        %v5883 = vsel %vm4097, %v5851, %v5556
        %v5884 = vsel %vm4097, %v5852, %v5558
        %v5885 = vsel %vm4097, %v5853, %v5560
        %v5886 = vsel %vm4097, %v5854, %v5562
        %v5887 = vsel %vm4097, %v5855, %v5564
        %v5888 = vsel %vm4097, %v5856, %v5566
        %v5889 = vsel %vm4130, %v5857, %v5602
        %v5890 = vsel %vm4130, %v5858, %v5604
        %v5891 = vsel %vm4130, %v5859, %v5606
        %v5892 = vsel %vm4130, %v5860, %v5608
        %v5893 = vsel %vm4130, %v5861, %v5610
        %v5894 = vsel %vm4130, %v5862, %v5612
        %v5895 = vsel %vm4130, %v5863, %v5614
        %v5896 = vsel %vm4130, %v5864, %v5616
        %v5897 = vsel %vm4130, %v5865, %v5618
        %v5898 = vsel %vm4130, %v5866, %v5620
        %v5899 = vsel %vm4130, %v5867, %v5622
        %v5900 = vsel %vm4130, %v5868, %v5624
        %v5901 = vsel %vm4130, %v5869, %v5626
        %v5902 = vsel %vm4130, %v5870, %v5628
        %v5903 = vsel %vm4130, %v5871, %v5630
        %v5904 = vsel %vm4130, %v5872, %v5632
        %v5905 = vsel %vm4130, %v5873, %v5634
        %v5906 = vsel %vm4130, %v5874, %v5636
        %v5907 = vsel %vm4130, %v5875, %v5638
        %v5908 = vsel %vm4130, %v5876, %v5640
        %v5909 = vsel %vm4130, %v5877, %v5642
        %v5910 = vsel %vm4130, %v5878, %v5644
        %v5911 = vsel %vm4130, %v5879, %v5646
        %v5912 = vsel %vm4130, %v5880, %v5648
        %v5913 = vsel %vm4130, %v5881, %v5650
        %v5914 = vsel %vm4130, %v5882, %v5652
        %v5915 = vsel %vm4130, %v5883, %v5654
        %v5916 = vsel %vm4130, %v5884, %v5656
        %v5917 = vsel %vm4130, %v5885, %v5658
        %v5918 = vsel %vm4130, %v5886, %v5660
        %v5919 = vsel %vm4130, %v5887, %v5662
        %v5920 = vsel %vm4130, %v5888, %v5664
        %v5921 = vpack.c.bf16 %v5890, %v5889
        %v5922 = vpack.c.bf16 %v4830, %v4829
        %v5923 = vpack.c.bf16 %v5892, %v5891
        %v5924 = vpack.c.bf16 %v4832, %v4831
        %v5925 = vpack.c.bf16 %v5894, %v5893
        %v5926 = vpack.c.bf16 %v4834, %v4833
        %v5927 = vpack.c.bf16 %v5896, %v5895
        %v5928 = vpack.c.bf16 %v4836, %v4835
        %v5929 = vpack.c.bf16 %v5898, %v5897
        %v5930 = vpack.c.bf16 %v4838, %v4837
        %v5931 = vpack.c.bf16 %v5900, %v5899
        %v5932 = vpack.c.bf16 %v4840, %v4839
        %v5933 = vpack.c.bf16 %v5902, %v5901
        %v5934 = vpack.c.bf16 %v4842, %v4841
        %v5935 = vpack.c.bf16 %v5904, %v5903
        %v5936 = vpack.c.bf16 %v4844, %v4843
        %v5937 = vpack.c.bf16 %v5906, %v5905
        %v5938 = vpack.c.bf16 %v4846, %v4845
        %v5939 = vpack.c.bf16 %v5908, %v5907
        %v5940 = vpack.c.bf16 %v4848, %v4847
        %v5941 = vpack.c.bf16 %v5910, %v5909
        %v5942 = vpack.c.bf16 %v4850, %v4849
        %v5943 = vpack.c.bf16 %v5912, %v5911
        %v5944 = vpack.c.bf16 %v4852, %v4851
        %v5945 = vpack.c.bf16 %v5914, %v5913
        %v5946 = vpack.c.bf16 %v4854, %v4853
        %v5947 = vpack.c.bf16 %v5916, %v5915
        %v5948 = vpack.c.bf16 %v4856, %v4855
        %v5949 = vpack.c.bf16 %v5918, %v5917
        %v5950 = vpack.c.bf16 %v4858, %v4857
        %v5951 = vpack.c.bf16 %v5920, %v5919
        %v5952 = vpack.c.bf16 %v4860, %v4859
        %v5953 = vld [vmem:[%s5] sm:$0xf]
        %v5954 = vld [vmem:[%s5 + $0x4] sm:$0xf]
        %v5955 = vld [vmem:[%s5 + $0x8] sm:$0xf]
        %v5956 = vld [vmem:[%s5 + $0xc] sm:$0xf]
        %v5957 = vld [vmem:[%s5 + $0x10] sm:$0xf]
        %v5958 = vld [vmem:[%s5 + $0x14] sm:$0xf]
        %v5959 = vld [vmem:[%s5 + $0x18] sm:$0xf]
        %v5960 = vld [vmem:[%s5 + $0x1c] sm:$0xf]
        %v5961 = vld [vmem:[%s5 + $0x20] sm:$0xf]
        %v5962 = vld [vmem:[%s5 + $0x24] sm:$0xf]
        %v5963 = vld [vmem:[%s5 + $0x28] sm:$0xf]
        %v5964 = vld [vmem:[%s5 + $0x2c] sm:$0xf]
        %v5965 = vld [vmem:[%s5 + $0x30] sm:$0xf]
        %v5966 = vld [vmem:[%s5 + $0x34] sm:$0xf]
        %v5967 = vld [vmem:[%s5 + $0x38] sm:$0xf]
        %v5968 = vld [vmem:[%s5 + $0x3c] sm:$0xf]
        %v5969 = vld [vmem:[%s5 + $0x40] sm:$0xf]
        %v5970 = vld [vmem:[%s5 + $0x44] sm:$0xf]
        %v5971 = vld [vmem:[%s6] sm:$0x1]
        %v5973 = vperm.slane %v5971, 0
        %v5993 = vunpack.c.l.b16 %v5953
        %v5994 = vunpack.c.l.b16 %v5954
        %v5995 = vunpack.c.l.b16 %v5955
        %v5996 = vunpack.c.l.b16 %v5956
        %v5997 = vunpack.c.l.b16 %v5957
        %v5998 = vunpack.c.l.b16 %v5958
        %v5999 = vunpack.c.l.b16 %v5959
        %v6000 = vunpack.c.l.b16 %v5960
        %v6001 = vunpack.c.l.b16 %v5961
        %v6002 = vunpack.c.l.b16 %v5962
        %v6003 = vunpack.c.l.b16 %v5963
        %v6004 = vunpack.c.l.b16 %v5964
        %v6005 = vunpack.c.l.b16 %v5965
        %v6006 = vunpack.c.l.b16 %v5966
        %v6007 = vunpack.c.l.b16 %v5967
        %v6008 = vunpack.c.l.b16 %v5968
        %v6009 = vunpack.c.l.b16 %v5969
        %v6010 = vunpack.c.l.b16 %v5970
        %v6011 = vpack.c.b16 %v5994, %v5993
        %v6012 = vpack.c.b16 %v5996, %v5995
        %v6013 = vpack.c.b16 %v5998, %v5997
        %v6014 = vpack.c.b16 %v6000, %v5999
        %v6015 = vpack.c.b16 %v6002, %v6001
        %v6016 = vpack.c.b16 %v6004, %v6003
        %v6017 = vpack.c.b16 %v6006, %v6005
        %v6018 = vpack.c.b16 %v6008, %v6007
        %v6019 = vpack.c.b16 %v6010, %v6009
        %v6030 = vsel %vm340, %v5922, 0
        %v6033 = vsel %vm340, %v5924, 0
        %v6036 = vsel %vm340, %v5926, 0
        %v6039 = vsel %vm340, %v5928, 0
        %v6042 = vsel %vm340, %v5930, 0
        %v6045 = vsel %vm340, %v5932, 0
        %v6048 = vsel %vm340, %v5934, 0
        %v6051 = vsel %vm340, %v5936, 0
        %v6054 = vsel %vm340, %v5938, 0
        %v6057 = vsel %vm340, %v5940, 0
        %v6060 = vsel %vm340, %v5942, 0
        %v6063 = vsel %vm340, %v5944, 0
        %v6066 = vsel %vm340, %v5946, 0
        %v6069 = vsel %vm340, %v5948, 0
        %v6072 = vsel %vm340, %v5950, 0
        %v6075 = vsel %vm340, %v5952, 0
        %6077 = vmatpush.bf16.msra.mxu0 %v6018
        %6078 = vmatpush.bf16.msra.mxu0 %v6017
        %6079 = vmatpush.bf16.msra.mxu0 %v6016
        %6080 = vmatpush.bf16.msra.mxu0 %v6015
        %6081 = vmatpush.bf16.msra.mxu0 %v6014
        %6082 = vmatpush.bf16.msra.mxu0 %v6013
        %6083 = vmatpush.bf16.msra.mxu0 %v6012
        %6084 = vmatpush.bf16.msra.mxu0 %v6011
        %6085 = vmatmul.bf16.gmra.mxu0 %v5921
        %v6086 = vpop.f32.mrf.mxu0
        %v6087 = vadd.f32 %v5973, %v6086
        %v6088 = vpop.f32.mrf.mxu0
        %v6089 = vadd.f32 %v5973, %v6088
        %6090 = vmatmul.bf16.gmra.mxu0 %v5923
        %v6091 = vpop.f32.mrf.mxu0
        %v6092 = vadd.f32 %v5973, %v6091
        %v6093 = vpop.f32.mrf.mxu0
        %v6094 = vadd.f32 %v5973, %v6093
        %6095 = vmatmul.bf16.gmra.mxu0 %v5925
        %v6096 = vpop.f32.mrf.mxu0
        %v6097 = vadd.f32 %v5973, %v6096
        %v6098 = vpop.f32.mrf.mxu0
        %v6099 = vadd.f32 %v5973, %v6098
        %6100 = vmatmul.bf16.gmra.mxu0 %v5927
        %v6101 = vpop.f32.mrf.mxu0
        %v6102 = vadd.f32 %v5973, %v6101
        %v6103 = vpop.f32.mrf.mxu0
        %v6104 = vadd.f32 %v5973, %v6103
        %6105 = vmatmul.bf16.gmra.mxu0 %v5929
        %v6106 = vpop.f32.mrf.mxu0
        %v6107 = vadd.f32 %v5973, %v6106
        %v6108 = vpop.f32.mrf.mxu0
        %v6109 = vadd.f32 %v5973, %v6108
        %6110 = vmatmul.bf16.gmra.mxu0 %v5931
        %v6111 = vpop.f32.mrf.mxu0
        %v6112 = vadd.f32 %v5973, %v6111
        %v6113 = vpop.f32.mrf.mxu0
        %v6114 = vadd.f32 %v5973, %v6113
        %6115 = vmatmul.bf16.gmra.mxu0 %v5933
        %v6116 = vpop.f32.mrf.mxu0
        %v6117 = vadd.f32 %v5973, %v6116
        %v6118 = vpop.f32.mrf.mxu0
        %v6119 = vadd.f32 %v5973, %v6118
        %6120 = vmatmul.bf16.gmra.mxu0 %v5935
        %v6121 = vpop.f32.mrf.mxu0
        %v6122 = vadd.f32 %v5973, %v6121
        %v6123 = vpop.f32.mrf.mxu0
        %v6124 = vadd.f32 %v5973, %v6123
        %6125 = vmatmul.bf16.gmra.mxu0 %v5937
        %v6126 = vpop.f32.mrf.mxu0
        %v6127 = vadd.f32 %v5973, %v6126
        %v6128 = vpop.f32.mrf.mxu0
        %v6129 = vadd.f32 %v5973, %v6128
        %6130 = vmatmul.bf16.gmra.mxu0 %v5939
        %v6131 = vpop.f32.mrf.mxu0
        %v6132 = vadd.f32 %v5973, %v6131
        %v6133 = vpop.f32.mrf.mxu0
        %v6134 = vadd.f32 %v5973, %v6133
        %6135 = vmatmul.bf16.gmra.mxu0 %v5941
        %v6136 = vpop.f32.mrf.mxu0
        %v6137 = vadd.f32 %v5973, %v6136
        %v6138 = vpop.f32.mrf.mxu0
        %v6139 = vadd.f32 %v5973, %v6138
        %6140 = vmatmul.bf16.gmra.mxu0 %v5943
        %v6141 = vpop.f32.mrf.mxu0
        %v6142 = vadd.f32 %v5973, %v6141
        %v6143 = vpop.f32.mrf.mxu0
        %v6144 = vadd.f32 %v5973, %v6143
        %6145 = vmatmul.bf16.gmra.mxu0 %v5945
        %v6146 = vpop.f32.mrf.mxu0
        %v6147 = vadd.f32 %v5973, %v6146
        %v6148 = vpop.f32.mrf.mxu0
        %v6149 = vadd.f32 %v5973, %v6148
        %6150 = vmatmul.bf16.gmra.mxu0 %v5947
        %v6151 = vpop.f32.mrf.mxu0
        %v6152 = vadd.f32 %v5973, %v6151
        %v6153 = vpop.f32.mrf.mxu0
        %v6154 = vadd.f32 %v5973, %v6153
        %6155 = vmatmul.bf16.gmra.mxu0 %v5949
        %v6156 = vpop.f32.mrf.mxu0
        %v6157 = vadd.f32 %v5973, %v6156
        %v6158 = vpop.f32.mrf.mxu0
        %v6159 = vadd.f32 %v5973, %v6158
        %6160 = vmatmul.bf16.gmra.mxu0 %v5951
        %v6161 = vpop.f32.mrf.mxu0
        %v6162 = vadd.f32 %v5973, %v6161
        %v6163 = vpop.f32.mrf.mxu0
        %v6164 = vadd.f32 %v5973, %v6163
        %6165 = vdwg.mxu0
        %6166 = vmatpush.bf16.msra.mxu0 0
        %6167 = vmatpush.bf16.msra.mxu0 0
        %6168 = vmatpush.bf16.msra.mxu0 0
        %6169 = vmatpush.bf16.msra.mxu0 0
        %6170 = vmatpush.bf16.msra.mxu0 0
        %6171 = vmatpush.bf16.msra.mxu0 0
        %6172 = vmatpush.bf16.msra.mxu0 0
        %6173 = vmatpush.bf16.msra.mxu0 %v6019
        %6174 = vmatmul.bf16.gmra.mxu0 %v6030
        %v6175 = vpop.f32.mrf.mxu0
        %v6176 = vadd.f32 %v6087, %v6175
        %v6177 = vpop.f32.mrf.mxu0
        %v6178 = vadd.f32 %v6089, %v6177
        %6179 = vmatmul.bf16.gmra.mxu0 %v6033
        %v6180 = vpop.f32.mrf.mxu0
        %v6181 = vadd.f32 %v6092, %v6180
        %v6182 = vpop.f32.mrf.mxu0
        %v6183 = vadd.f32 %v6094, %v6182
        %6184 = vmatmul.bf16.gmra.mxu0 %v6036
        %v6185 = vpop.f32.mrf.mxu0
        %v6186 = vadd.f32 %v6097, %v6185
        %v6187 = vpop.f32.mrf.mxu0
        %v6188 = vadd.f32 %v6099, %v6187
        %6189 = vmatmul.bf16.gmra.mxu0 %v6039
        %v6190 = vpop.f32.mrf.mxu0
        %v6191 = vadd.f32 %v6102, %v6190
        %v6192 = vpop.f32.mrf.mxu0
        %v6193 = vadd.f32 %v6104, %v6192
        %6194 = vmatmul.bf16.gmra.mxu0 %v6042
        %v6195 = vpop.f32.mrf.mxu0
        %v6196 = vadd.f32 %v6107, %v6195
        %v6197 = vpop.f32.mrf.mxu0
        %v6198 = vadd.f32 %v6109, %v6197
        %6199 = vmatmul.bf16.gmra.mxu0 %v6045
        %v6200 = vpop.f32.mrf.mxu0
        %v6201 = vadd.f32 %v6112, %v6200
        %v6202 = vpop.f32.mrf.mxu0
        %v6203 = vadd.f32 %v6114, %v6202
        %6204 = vmatmul.bf16.gmra.mxu0 %v6048
        %v6205 = vpop.f32.mrf.mxu0
        %v6206 = vadd.f32 %v6117, %v6205
        %v6207 = vpop.f32.mrf.mxu0
        %v6208 = vadd.f32 %v6119, %v6207
        %6209 = vmatmul.bf16.gmra.mxu0 %v6051
        %v6210 = vpop.f32.mrf.mxu0
        %v6211 = vadd.f32 %v6122, %v6210
        %v6212 = vpop.f32.mrf.mxu0
        %v6213 = vadd.f32 %v6124, %v6212
        %6214 = vmatmul.bf16.gmra.mxu0 %v6054
        %v6215 = vpop.f32.mrf.mxu0
        %v6216 = vadd.f32 %v6127, %v6215
        %v6217 = vpop.f32.mrf.mxu0
        %v6218 = vadd.f32 %v6129, %v6217
        %6219 = vmatmul.bf16.gmra.mxu0 %v6057
        %v6220 = vpop.f32.mrf.mxu0
        %v6221 = vadd.f32 %v6132, %v6220
        %v6222 = vpop.f32.mrf.mxu0
        %v6223 = vadd.f32 %v6134, %v6222
        %6224 = vmatmul.bf16.gmra.mxu0 %v6060
        %v6225 = vpop.f32.mrf.mxu0
        %v6226 = vadd.f32 %v6137, %v6225
        %v6227 = vpop.f32.mrf.mxu0
        %v6228 = vadd.f32 %v6139, %v6227
        %6229 = vmatmul.bf16.gmra.mxu0 %v6063
        %v6230 = vpop.f32.mrf.mxu0
        %v6231 = vadd.f32 %v6142, %v6230
        %v6232 = vpop.f32.mrf.mxu0
        %v6233 = vadd.f32 %v6144, %v6232
        %6234 = vmatmul.bf16.gmra.mxu0 %v6066
        %v6235 = vpop.f32.mrf.mxu0
        %v6236 = vadd.f32 %v6147, %v6235
        %v6237 = vpop.f32.mrf.mxu0
        %v6238 = vadd.f32 %v6149, %v6237
        %6239 = vmatmul.bf16.gmra.mxu0 %v6069
        %v6240 = vpop.f32.mrf.mxu0
        %v6241 = vadd.f32 %v6152, %v6240
        %v6242 = vpop.f32.mrf.mxu0
        %v6243 = vadd.f32 %v6154, %v6242
        %6244 = vmatmul.bf16.gmra.mxu0 %v6072
        %v6245 = vpop.f32.mrf.mxu0
        %v6246 = vadd.f32 %v6157, %v6245
        %v6247 = vpop.f32.mrf.mxu0
        %v6248 = vadd.f32 %v6159, %v6247
        %6249 = vmatmul.bf16.gmra.mxu0 %v6075
        %v6250 = vpop.f32.mrf.mxu0
        %v6251 = vadd.f32 %v6162, %v6250
        %v6252 = vpop.f32.mrf.mxu0
        %v6253 = vadd.f32 %v6164, %v6252
        %6254 = vdwg.mxu0
        %v6255 = vld [vmem:[#allocation3 + $0x18] sm:$0xff]
        %v6256 = vld [vmem:[#allocation3 + $0x20] sm:$0xff]
        %v6257 = vld [vmem:[#allocation3 + $0x28] sm:$0xff]
        %v6258 = vld [vmem:[#allocation3 + $0x30] sm:$0xff]
        %v6259 = vld [vmem:[#allocation3 + $0x38] sm:$0xff]
        %v6260 = vld [vmem:[#allocation3 + $0x40] sm:$0xff]
        %v6261 = vld [vmem:[#allocation3 + $0x48] sm:$0xff]
        %v6262 = vld [vmem:[#allocation3 + $0x50] sm:$0xff]
        %v6263 = vld [vmem:[#allocation3 + $0x58] sm:$0xff]
        %v6264 = vld [vmem:[#allocation3 + $0x60] sm:$0xff]
        %v6265 = vld [vmem:[#allocation3 + $0x68] sm:$0xff]
        %v6266 = vld [vmem:[#allocation3 + $0x70] sm:$0xff]
        %v6267 = vld [vmem:[#allocation3 + $0x78] sm:$0xff]
        %v6268 = vld [vmem:[#allocation3 + $0x80] sm:$0xff]
        %v6269 = vld [vmem:[#allocation3 + $0x88] sm:$0xff]
        %v6270 = vld [vmem:[#allocation3 + $0x90] sm:$0xff]
        %v6271 = vld [vmem:[#allocation3 + $0x98] sm:$0xff]
        %v6272 = vld [vmem:[#allocation3 + $0xa0] sm:$0xff]
        %v6273 = vld [vmem:[#allocation3 + $0xa8] sm:$0xff]
        %v6274 = vld [vmem:[#allocation3 + $0xb0] sm:$0xff]
        %v6275 = vld [vmem:[#allocation3 + $0xb8] sm:$0xff]
        %v6276 = vld [vmem:[#allocation3 + $0xc0] sm:$0xff]
        %v6277 = vld [vmem:[#allocation3 + $0xc8] sm:$0xff]
        %v6278 = vld [vmem:[#allocation3 + $0xd0] sm:$0xff]
        %v6279 = vld [vmem:[#allocation3 + $0xd8] sm:$0xff]
        %v6280 = vld [vmem:[#allocation3 + $0xe0] sm:$0xff]
        %v6281 = vld [vmem:[#allocation3 + $0xe8] sm:$0xff]
        %v6282 = vld [vmem:[#allocation3 + $0xf0] sm:$0xff]
        %v6283 = vld [vmem:[#allocation3 + $0xf8] sm:$0xff]
        %v6284 = vld [vmem:[#allocation3 + $0x100] sm:$0xff]
        %v6285 = vld [vmem:[#allocation3 + $0x108] sm:$0xff]
        %v6286 = vld [vmem:[#allocation3 + $0x110] sm:$0xff]
        %v6287 = vadd.f32 %v6176, %v6255
        %v6288 = vadd.f32 %v6178, %v6256
        %v6289 = vadd.f32 %v6181, %v6257
        %v6290 = vadd.f32 %v6183, %v6258
        %v6291 = vadd.f32 %v6186, %v6259
        %v6292 = vadd.f32 %v6188, %v6260
        %v6293 = vadd.f32 %v6191, %v6261
        %v6294 = vadd.f32 %v6193, %v6262
        %v6295 = vadd.f32 %v6196, %v6263
        %v6296 = vadd.f32 %v6198, %v6264
        %v6297 = vadd.f32 %v6201, %v6265
        %v6298 = vadd.f32 %v6203, %v6266
        %v6299 = vadd.f32 %v6206, %v6267
        %v6300 = vadd.f32 %v6208, %v6268
        %v6301 = vadd.f32 %v6211, %v6269
        %v6302 = vadd.f32 %v6213, %v6270
        %v6303 = vadd.f32 %v6216, %v6271
        %v6304 = vadd.f32 %v6218, %v6272
        %v6305 = vadd.f32 %v6221, %v6273
        %v6306 = vadd.f32 %v6223, %v6274
        %v6307 = vadd.f32 %v6226, %v6275
        %v6308 = vadd.f32 %v6228, %v6276
        %v6309 = vadd.f32 %v6231, %v6277
        %v6310 = vadd.f32 %v6233, %v6278
        %v6311 = vadd.f32 %v6236, %v6279
        %v6312 = vadd.f32 %v6238, %v6280
        %v6313 = vadd.f32 %v6241, %v6281
        %v6314 = vadd.f32 %v6243, %v6282
        %v6315 = vadd.f32 %v6246, %v6283
        %v6316 = vadd.f32 %v6248, %v6284
        %v6317 = vadd.f32 %v6251, %v6285
        %v6318 = vadd.f32 %v6253, %v6286
        %v6319 = vmax.f32 %v6287, 0.0
        %v6320 = vmax.f32 %v6288, 0.0
        %v6321 = vmax.f32 %v6289, 0.0
        %v6322 = vmax.f32 %v6290, 0.0
        %v6323 = vmax.f32 %v6291, 0.0
        %v6324 = vmax.f32 %v6292, 0.0
        %v6325 = vmax.f32 %v6293, 0.0
        %v6326 = vmax.f32 %v6294, 0.0
        %v6327 = vmax.f32 %v6295, 0.0
        %v6328 = vmax.f32 %v6296, 0.0
        %v6329 = vmax.f32 %v6297, 0.0
        %v6330 = vmax.f32 %v6298, 0.0
        %v6331 = vmax.f32 %v6299, 0.0
        %v6332 = vmax.f32 %v6300, 0.0
        %v6333 = vmax.f32 %v6301, 0.0
        %v6334 = vmax.f32 %v6302, 0.0
        %v6335 = vmax.f32 %v6303, 0.0
        %v6336 = vmax.f32 %v6304, 0.0
        %v6337 = vmax.f32 %v6305, 0.0
        %v6338 = vmax.f32 %v6306, 0.0
        %v6339 = vmax.f32 %v6307, 0.0
        %v6340 = vmax.f32 %v6308, 0.0
        %v6341 = vmax.f32 %v6309, 0.0
        %v6342 = vmax.f32 %v6310, 0.0
        %v6343 = vmax.f32 %v6311, 0.0
        %v6344 = vmax.f32 %v6312, 0.0
        %v6345 = vmax.f32 %v6313, 0.0
        %v6346 = vmax.f32 %v6314, 0.0
        %v6347 = vmax.f32 %v6315, 0.0
        %v6348 = vmax.f32 %v6316, 0.0
        %v6349 = vmax.f32 %v6317, 0.0
        %v6350 = vmax.f32 %v6318, 0.0
        %v6351 = vsel %vm340, %v6319, 0.0
        %v6352 = vsel %vm340, %v6320, 0.0
        %v6353 = vadd.f32 %v6351, %v6352
        %v6354 = vsel %vm340, %v6321, 0.0
        %v6355 = vadd.f32 %v6353, %v6354
        %v6356 = vsel %vm340, %v6322, 0.0
        %v6357 = vadd.f32 %v6355, %v6356
        %v6358 = vsel %vm340, %v6323, 0.0
        %v6359 = vadd.f32 %v6357, %v6358
        %v6360 = vsel %vm340, %v6324, 0.0
        %v6361 = vadd.f32 %v6359, %v6360
        %v6362 = vsel %vm340, %v6325, 0.0
        %v6363 = vadd.f32 %v6361, %v6362
        %v6364 = vsel %vm340, %v6326, 0.0
        %v6365 = vadd.f32 %v6363, %v6364
        %v6366 = vsel %vm340, %v6327, 0.0
        %v6367 = vadd.f32 %v6365, %v6366
        %v6368 = vsel %vm340, %v6328, 0.0
        %v6369 = vadd.f32 %v6367, %v6368
        %v6370 = vsel %vm340, %v6329, 0.0
        %v6371 = vadd.f32 %v6369, %v6370
        %v6372 = vsel %vm340, %v6330, 0.0
        %v6373 = vadd.f32 %v6371, %v6372
        %v6374 = vsel %vm340, %v6331, 0.0
        %v6375 = vadd.f32 %v6373, %v6374
        %v6376 = vsel %vm340, %v6332, 0.0
        %v6377 = vadd.f32 %v6375, %v6376
        %v6378 = vsel %vm340, %v6333, 0.0
        %v6379 = vadd.f32 %v6377, %v6378
        %v6380 = vsel %vm340, %v6334, 0.0
        %v6381 = vadd.f32 %v6379, %v6380
        %v6382 = vsel %vm340, %v6335, 0.0
        %v6383 = vadd.f32 %v6381, %v6382
        %v6384 = vsel %vm340, %v6336, 0.0
        %v6385 = vadd.f32 %v6383, %v6384
        %v6386 = vsel %vm340, %v6337, 0.0
        %v6387 = vadd.f32 %v6385, %v6386
        %v6388 = vsel %vm340, %v6338, 0.0
        %v6389 = vadd.f32 %v6387, %v6388
        %v6390 = vsel %vm340, %v6339, 0.0
        %v6391 = vadd.f32 %v6389, %v6390
        %v6392 = vsel %vm340, %v6340, 0.0
        %v6393 = vadd.f32 %v6391, %v6392
        %v6394 = vsel %vm340, %v6341, 0.0
        %v6395 = vadd.f32 %v6393, %v6394
        %v6396 = vsel %vm340, %v6342, 0.0
        %v6397 = vadd.f32 %v6395, %v6396
        %v6398 = vsel %vm340, %v6343, 0.0
        %v6399 = vadd.f32 %v6397, %v6398
        %v6400 = vsel %vm340, %v6344, 0.0
        %v6401 = vadd.f32 %v6399, %v6400
        %v6402 = vsel %vm340, %v6345, 0.0
        %v6403 = vadd.f32 %v6401, %v6402
        %v6404 = vsel %vm340, %v6346, 0.0
        %v6405 = vadd.f32 %v6403, %v6404
        %v6406 = vsel %vm340, %v6347, 0.0
        %v6407 = vadd.f32 %v6405, %v6406
        %v6408 = vsel %vm340, %v6348, 0.0
        %v6409 = vadd.f32 %v6407, %v6408
        %v6410 = vsel %vm340, %v6349, 0.0
        %v6411 = vadd.f32 %v6409, %v6410
        %v6412 = vsel %vm340, %v6350, 0.0
        %v6413 = vadd.f32 %v6411, %v6412
        %v6414 = vrot.slane %v6413, 4
        %v6415 = vadd.f32 %v6413, %v6414
        %v6416 = vrot.slane %v6415, 2
        %v6417 = vadd.f32 %v6415, %v6416
        %v6418 = vrot.slane %v6417, 1
        %v6419 = vadd.f32 %v6417, %v6418
        %v6420 = vmul.f32 %v6419, 0.00390625
        %v6421 = vpack.c.bf16 %v6420, %v6420
        %v6422 = vld [vmem:[%s7] sm:$0xf]
        %v6423 = vld [vmem:[%s7 + $0x4] sm:$0xf]
        %v6424 = vld [vmem:[%s8] sm:$0x1]
        %v6427 = vunpack.c.l.b16 %v6422
        %v6428 = vunpack.c.l.b16 %v6423
        %v6429 = vpack.c.b16 %v6428, %v6427
        %v6432 = vsel %vm340, %v6421, 0
        %6434 = vmatpush.bf16.msra.mxu0 0
        %6435 = vmatpush.bf16.msra.mxu0 0
        %6436 = vmatpush.bf16.msra.mxu0 0
        %6437 = vmatpush.bf16.msra.mxu0 0
        %6438 = vmatpush.bf16.msra.mxu0 0
        %6439 = vmatpush.bf16.msra.mxu0 0
        %6440 = vmatpush.bf16.msra.mxu0 0
        %6441 = vmatpush.bf16.msra.mxu0 %v6429
        %6442 = vmatmul.bf16.gmra.mxu0 %v6432
        %v6443 = vpop.f32.mrf.mxu0
        %v6444 = vadd.f32 %v6424, %v6443
        %v6445 = vpop.f32.mrf.mxu0
        %6446 = vdwg.mxu0
        %6447 = vst [vmem:[%s325] sm:$0x1] %v6444
        %s6448 = sand.u32 %s225, 1
        %s6449 = scalar_lea.sflag [#allocation6], %s6448
        %s6450 = sand.u32 %s225, 1
        %s6451 = scalar_lea.vmem [#allocation5], %s6450
        // Predicated region
        $region57: #{semi_scratch_forward.1} parent=55 // pred_check
          %p6452 = pneg %p235
        $region58: #{semi_scratch_forward.1} parent=55 // pred_check_branch
          %6454 = sbr.rel (%p6452) target = $region60
        $region59: #{semi_scratch_forward.1} parent=55 // pred_region
          %6456 = vsyncadd %s6449, 0
          %s6457 = scalar_lea.hbm %s9, %s23
          %s6459 = sshll.u32 %s6451, 4
          %s6460 = int_to_ptr.vmem [resolvable:$true] %s6459
          %s6461 = sshll.u32 %s6457, 4
          %s6462 = int_to_ptr.hbm [resolvable:$true] %s6461
          %6464 = dma.vmem_to_hbm [thread:$0]  %s6460, 16, %s6462, %s6449
        $region60: #{semi_scratch_forward.1} parent=55 // pred_fallthru
          _
      $region56: #{semi_scratch_forward.1} parent=5 // pred_fallthru
        _
      %p6465 = scmp.le.s32.totalorder 2, %s18
      // Predicated region
      $region61: #{semi_scratch_forward.1} parent=5 // pred_check
        %p6466 = pneg %p6465
      $region62: #{semi_scratch_forward.1} parent=5 // pred_check_branch
        %6468 = sbr.rel (%p6466) target = $region64
      $region63: #{semi_scratch_forward.1} parent=5 // pred_region
        %s6469 = ssub.s32 %s18, 2
        // Predicated region
        $region65: #{semi_scratch_forward.1} parent=63 // pred_check
          %p6470 = pneg %p241
        $region66: #{semi_scratch_forward.1} parent=63 // pred_check_branch
          %6472 = sbr.rel (%p6470) target = $region68
        $region67: #{semi_scratch_forward.1} parent=63 // pred_region
          %s6473 = sand.u32 %s226, 1
          %s6474 = scalar_lea.sflag [#allocation6], %s6473
          %s6475 = sand.u32 %s226, 1
          %s6476 = scalar_lea.vmem [#allocation5], %s6475
          %6478 = dma.done %s6474, 16
        $region68: #{semi_scratch_forward.1} parent=63 // pred_fallthru
          _
      $region64: #{semi_scratch_forward.1} parent=5 // pred_fallthru
        _
    $region6: #{semi_scratch_forward.1} parent=1 // loop_footer
      %s22 = sadd.s32 1, %s18
    $region7: #{semi_scratch_forward.1} parent=1 // loop_footer_branch
      %17 = sbr.rel target = $region3
    $region8: #{semi_scratch_forward.1} parent=1 // loop_exit
      _
    %6479 = vsyncpa [#allocation6], 1
    %s6480 = scalar_lea.sflag [#allocation6], 1
    %6481 = vsyncpa %s6480, 1

</llo_original>
